<compile_context>
chip_gen: v7x
topology: tpu7x:2x2x1
jax: 0.10.0
libtpu: 0.0.40
codegen_flags: <defaults>
</compile_context>

<pallas_src>
import jax
import jax.numpy as jnp
from jax.experimental import pallas as pl
from jax.experimental.pallas import tpu as pltpu


# --------------------------------------------------------------------------- #
# Kernel
# --------------------------------------------------------------------------- #
def _sdcn_ae_kernel(
    x_ref,
    we1_ref, be1_ref, we2_ref, be2_ref, we3_ref, be3_ref, wz_ref, bz_ref,
    wd1_ref, bd1_ref, wd2_ref, bd2_ref, wd3_ref, bd3_ref, wxb_ref, bxb_ref,
    xbar_ref, h1_ref, h2_ref, h3_ref, z_ref,
):
    def lin(a_bf16, w_ref, b_ref):
        # bf16 x bf16 matmul on the MXU, f32 accumulation, f32 bias add (VPU).
        acc = jnp.dot(a_bf16, w_ref[...], preferred_element_type=jnp.float32)
        return acc + b_ref[...]

    x = x_ref[...]                                            # bf16 input tile

    h1 = jnp.maximum(lin(x, we1_ref, be1_ref), 0.0)           # f32
    h2 = jnp.maximum(lin(h1.astype(jnp.bfloat16), we2_ref, be2_ref), 0.0)
    h3 = jnp.maximum(lin(h2.astype(jnp.bfloat16), we3_ref, be3_ref), 0.0)
    z = lin(h3.astype(jnp.bfloat16), wz_ref, bz_ref)
    d1 = jnp.maximum(lin(z.astype(jnp.bfloat16), wd1_ref, bd1_ref), 0.0)
    d2 = jnp.maximum(lin(d1.astype(jnp.bfloat16), wd2_ref, bd2_ref), 0.0)
    d3 = jnp.maximum(lin(d2.astype(jnp.bfloat16), wd3_ref, bd3_ref), 0.0)
    x_bar = lin(d3.astype(jnp.bfloat16), wxb_ref, bxb_ref)

    # TODO(synk): if downstream only consumes (x_bar, z), drop h1/h2/h3 stores
    # to cut HBM writeback; kept here to preserve the module's full output.
    xbar_ref[...] = x_bar.astype(xbar_ref.dtype)
    h1_ref[...] = h1.astype(h1_ref.dtype)
    h2_ref[...] = h2.astype(h2_ref.dtype)
    h3_ref[...] = h3.astype(h3_ref.dtype)
    z_ref[...] = z.astype(z_ref.dtype)


# --------------------------------------------------------------------------- #
# Wrapper helpers
# --------------------------------------------------------------------------- #
_ORDER = ["enc_1", "enc_2", "enc_3", "z_layer",
          "dec_1", "dec_2", "dec_3", "x_bar_layer"]


def _round_up(v, m):
    return -(-v // m) * m


def _choose_tile_b(n):
    """Large tiles for MXU occupancy, but keep >=2 grid steps when possible
    so the 'parallel' batch axis can shard across v7x's 2 TensorCores."""
    if n <= 8:
        return 8
    half = _round_up(_round_up(n, 2) // 2, 8)
    return min(256, max(8, half))


def _vmem_limit_bytes(tile_b, pdims, single_buffer_weights):
    w_bytes = sum(pdims[i] * pdims[i + 1] for i in range(8)) * 2     # bf16 weights
    b_bytes = sum(8 * p * 4 for p in pdims[1:])                      # f32 biases (sublane-padded)
    w_buf = 1 if single_buffer_weights else 2
    x_tile = tile_b * pdims[0] * 2                                   # bf16 input tile
    out_dims = (pdims[8], pdims[1], pdims[2], pdims[3], pdims[4])
    out_tiles = tile_b * sum(out_dims) * 4                           # f32 output tiles
    act_live = tile_b * sum(pdims[1:]) * 4                           # live f32 activations
    need = (w_buf * (w_bytes + b_bytes)
            + 2 * x_tile + 2 * out_tiles + act_live + (4 << 20))
    try:
        cap = pltpu.get_tpu_info().vmem_capacity_bytes               # 64 MiB v7x, 128 MiB v5e/v6e
    except Exception:
        cap = 64 << 20                                               # conservative (v7x) floor
    return int(max(32 << 20, min(need, int(cap * 0.9))))


def _pallas_forward(x_p, flat_params, tile_b, pdims, cost, single_buffer_weights):
    n_pad = x_p.shape[0]
    grid = (n_pad // tile_b,)

    def const_spec(arr):
        # Grid-invariant weight/bias block: stays resident in VMEM.
        if single_buffer_weights:
            return pl.BlockSpec(arr.shape, lambda i: (0, 0),
                                pipeline_mode=pl.Buffered(1))
        return pl.BlockSpec(arr.shape, lambda i: (0, 0))

    in_specs = [pl.BlockSpec((tile_b, pdims[0]), lambda i: (i, 0))]
    in_specs += [const_spec(p) for p in flat_params]

    out_dims = (pdims[8], pdims[1], pdims[2], pdims[3], pdims[4])
    out_shape = tuple(jax.ShapeDtypeStruct((n_pad, d), jnp.float32) for d in out_dims)
    out_specs = tuple(pl.BlockSpec((tile_b, d), lambda i: (i, 0)) for d in out_dims)

    grid_spec = pltpu.PrefetchScalarGridSpec(
        num_scalar_prefetch=0,
        grid=grid,
        in_specs=in_specs,
        out_specs=out_specs,
    )

    fn = pl.pallas_call(
        _sdcn_ae_kernel,
        out_shape=out_shape,
        grid_spec=grid_spec,
        cost_estimate=cost,
        compiler_params=pltpu.CompilerParams(
            dimension_semantics=("parallel",),
            vmem_limit_bytes=_vmem_limit_bytes(tile_b, pdims, single_buffer_weights),
        ),
    )
    return fn(x_p, *flat_params)


def sdcn_ae_forward(x, params, *, tile_b=None):
    """params: dict name -> (weight (in,out) f32, bias (1,out) f32).

    Returns (x_bar, enc_h1, enc_h2, enc_h3, z) in float32, matching the
    PyTorch forward (bf16 matmul inputs, f32 accumulation)."""
    n, n_input = x.shape

    dims = [n_input] + [params[name][0].shape[1] for name in _ORDER]   # 9 dims
    pdims = [_round_up(d, 128) for d in dims]                          # lane-dense

    # Pad + cast weights once (bf16) and biases (f32, kept full precision).
    flat_params = []
    for li, name in enumerate(_ORDER):
        w, b = params[name]
        d_in, d_out = w.shape
        pi, po = pdims[li], pdims[li + 1]
        w_p = jnp.pad(w.astype(jnp.bfloat16), ((0, pi - d_in), (0, po - d_out)))
        b_p = jnp.pad(b.astype(jnp.float32), ((0, 0), (0, po - d_out)))
        flat_params += [w_p, b_p]

    if tile_b is None:
        tile_b = _choose_tile_b(n)
    assert tile_b % 8 == 0
    n_pad = _round_up(n, tile_b)
    x_p = jnp.pad(x.astype(jnp.bfloat16),
                  ((0, n_pad - n), (0, pdims[0] - n_input)))

    flops = 2 * n_pad * sum(pdims[i] * pdims[i + 1] for i in range(8))
    out_bytes = n_pad * (pdims[8] + pdims[1] + pdims[2] + pdims[3] + pdims[4]) * 4
    bytes_accessed = (x_p.size * 2
                      + sum(int(p.size) * p.dtype.itemsize for p in flat_params)
                      + out_bytes)
    cost = pl.CostEstimate(flops=int(flops), transcendentals=0,
                           bytes_accessed=int(bytes_accessed))

    try:
        outs = _pallas_forward(x_p, flat_params, tile_b, pdims, cost,
                               single_buffer_weights=True)
    except Exception:
        # pipeline_mode=pl.Buffered(1) not supported on this jax build:
        # fall back to default (double-buffered) weight specs.
        outs = _pallas_forward(x_p, flat_params, tile_b, pdims, cost,
                               single_buffer_weights=False)

    xbar_p, h1_p, h2_p, h3_p, z_p = outs
    x_bar = xbar_p[:n, :dims[8]]
    h1 = h1_p[:n, :dims[1]]
    h2 = h2_p[:n, :dims[2]]
    h3 = h3_p[:n, :dims[3]]
    z = z_p[:n, :dims[4]]
    return x_bar, h1, h2, h3, z


# --------------------------------------------------------------------------- #
# Parameter init + reference
# --------------------------------------------------------------------------- #
def init_params(key, n_enc_1, n_enc_2, n_enc_3, n_dec_1, n_dec_2, n_dec_3,
                n_input, n_z):
    """Deterministic synthetic init. Weights stored as (in, out), bias (1, out)."""
    dims = {
        "enc_1": (n_input, n_enc_1),
        "enc_2": (n_enc_1, n_enc_2),
        "enc_3": (n_enc_2, n_enc_3),
        "z_layer": (n_enc_3, n_z),
        "dec_1": (n_z, n_dec_1),
        "dec_2": (n_dec_1, n_dec_2),
        "dec_3": (n_dec_2, n_dec_3),
        "x_bar_layer": (n_dec_3, n_input),
    }
    params = {}
    for name, (fan_in, fan_out) in dims.items():
        key, kw, kb = jax.random.split(key, 3)
        bound = 1.0 / (fan_in ** 0.5)  # matches PyTorch Linear default range
        w = jax.random.uniform(kw, (fan_in, fan_out), jnp.float32, -bound, bound)
        b = jax.random.uniform(kb, (1, fan_out), jnp.float32, -bound, bound)
        params[name] = (w, b)
    return params


def reference_forward(x, params):
    """Plain-JAX reference mirroring the kernel's numeric path
    (bf16 matmul inputs, f32 accumulation, f32 bias/ReLU)."""
    def lin(a, name):
        w, b = params[name]
        return jnp.dot(a.astype(jnp.bfloat16), w.astype(jnp.bfloat16),
                       preferred_element_type=jnp.float32) + b

    h1 = jax.nn.relu(lin(x, "enc_1"))
    h2 = jax.nn.relu(lin(h1, "enc_2"))
    h3 = jax.nn.relu(lin(h2, "enc_3"))
    z = lin(h3, "z_layer")
    d1 = jax.nn.relu(lin(z, "dec_1"))
    d2 = jax.nn.relu(lin(d1, "dec_2"))
    d3 = jax.nn.relu(lin(d2, "dec_3"))
    x_bar = lin(d3, "x_bar_layer")
    return x_bar, h1, h2, h3, z


# --------------------------------------------------------------------------- #
# Self-test
# --------------------------------------------------------------------------- #
if __name__ == "__main__":
    n_input = 64
    n_enc_1, n_enc_2, n_enc_3 = 32, 48, 32
    n_dec_1, n_dec_2, n_dec_3 = 32, 48, 32
    n_z = 16
    batch = 16

    key = jax.random.PRNGKey(0)
    key, kx = jax.random.split(key)
    x = jax.random.normal(kx, (batch, n_input), jnp.float32)

    params = init_params(key, n_enc_1, n_enc_2, n_enc_3,
                         n_dec_1, n_dec_2, n_dec_3, n_input, n_z)

    outs = sdcn_ae_forward(x, params)
    outs = jax.block_until_ready(outs)

    refs = reference_forward(x, params)
    names = ("x_bar", "enc_h1", "enc_h2", "enc_h3", "z")
    for name, o, r in zip(names, outs, refs):
        assert o.shape == r.shape and o.dtype == r.dtype, name
        if not jnp.allclose(o, r, atol=5e-3, rtol=5e-3):
            raise AssertionError(f"Pallas output mismatch vs reference: {name}")

    print("KERNEL_OK")
</pallas_src>

<mosaic_0001>
module attributes {stable_mosaic.version = 11 : i64} {
  func.func @_sdcn_ae_kernel(%arg0: i32, %arg1: memref<8x128xbf16, #tpu.memory_space<vmem>>, %arg2: memref<128x128xbf16, #tpu.memory_space<vmem>>, %arg3: memref<1x128xf32, #tpu.memory_space<vmem>>, %arg4: memref<128x128xbf16, #tpu.memory_space<vmem>>, %arg5: memref<1x128xf32, #tpu.memory_space<vmem>>, %arg6: memref<128x128xbf16, #tpu.memory_space<vmem>>, %arg7: memref<1x128xf32, #tpu.memory_space<vmem>>, %arg8: memref<128x128xbf16, #tpu.memory_space<vmem>>, %arg9: memref<1x128xf32, #tpu.memory_space<vmem>>, %arg10: memref<128x128xbf16, #tpu.memory_space<vmem>>, %arg11: memref<1x128xf32, #tpu.memory_space<vmem>>, %arg12: memref<128x128xbf16, #tpu.memory_space<vmem>>, %arg13: memref<1x128xf32, #tpu.memory_space<vmem>>, %arg14: memref<128x128xbf16, #tpu.memory_space<vmem>>, %arg15: memref<1x128xf32, #tpu.memory_space<vmem>>, %arg16: memref<128x128xbf16, #tpu.memory_space<vmem>>, %arg17: memref<1x128xf32, #tpu.memory_space<vmem>>, %arg18: memref<8x128xf32, #tpu.memory_space<vmem>>, %arg19: memref<8x128xf32, #tpu.memory_space<vmem>>, %arg20: memref<8x128xf32, #tpu.memory_space<vmem>>, %arg21: memref<8x128xf32, #tpu.memory_space<vmem>>, %arg22: memref<8x128xf32, #tpu.memory_space<vmem>>) attributes {dimension_semantics = [#tpu.dimension_semantics<parallel>], iteration_bounds = array<i64: 2>, scalar_prefetch = 0 : i64, scratch_operands = 0 : i64, tpu.core_type = #tpu.core_type<tc>, window_params = [{transform_indices = @transform_0, window_bounds = array<i64: 8, 128>}, {pipeline_mode = #tpu.pipeline_mode<synchronous>, transform_indices = @transform_1, window_bounds = array<i64: 128, 128>}, {pipeline_mode = #tpu.pipeline_mode<synchronous>, transform_indices = @transform_2, window_bounds = array<i64: 1, 128>}, {pipeline_mode = #tpu.pipeline_mode<synchronous>, transform_indices = @transform_3, window_bounds = array<i64: 128, 128>}, {pipeline_mode = #tpu.pipeline_mode<synchronous>, transform_indices = @transform_4, window_bounds = array<i64: 1, 128>}, {pipeline_mode = #tpu.pipeline_mode<synchronous>, transform_indices = @transform_5, window_bounds = array<i64: 128, 128>}, {pipeline_mode = #tpu.pipeline_mode<synchronous>, transform_indices = @transform_6, window_bounds = array<i64: 1, 128>}, {pipeline_mode = #tpu.pipeline_mode<synchronous>, transform_indices = @transform_7, window_bounds = array<i64: 128, 128>}, {pipeline_mode = #tpu.pipeline_mode<synchronous>, transform_indices = @transform_8, window_bounds = array<i64: 1, 128>}, {pipeline_mode = #tpu.pipeline_mode<synchronous>, transform_indices = @transform_9, window_bounds = array<i64: 128, 128>}, {pipeline_mode = #tpu.pipeline_mode<synchronous>, transform_indices = @transform_10, window_bounds = array<i64: 1, 128>}, {pipeline_mode = #tpu.pipeline_mode<synchronous>, transform_indices = @transform_11, window_bounds = array<i64: 128, 128>}, {pipeline_mode = #tpu.pipeline_mode<synchronous>, transform_indices = @transform_12, window_bounds = array<i64: 1, 128>}, {pipeline_mode = #tpu.pipeline_mode<synchronous>, transform_indices = @transform_13, window_bounds = array<i64: 128, 128>}, {pipeline_mode = #tpu.pipeline_mode<synchronous>, transform_indices = @transform_14, window_bounds = array<i64: 1, 128>}, {pipeline_mode = #tpu.pipeline_mode<synchronous>, transform_indices = @transform_15, window_bounds = array<i64: 128, 128>}, {pipeline_mode = #tpu.pipeline_mode<synchronous>, transform_indices = @transform_16, window_bounds = array<i64: 1, 128>}, {transform_indices = @transform_17, window_bounds = array<i64: 8, 128>}, {transform_indices = @transform_18, window_bounds = array<i64: 8, 128>}, {transform_indices = @transform_19, window_bounds = array<i64: 8, 128>}, {transform_indices = @transform_20, window_bounds = array<i64: 8, 128>}, {transform_indices = @transform_21, window_bounds = array<i64: 8, 128>}]} {
    %c0 = arith.constant 0 : index
    %c0_0 = arith.constant 0 : index
    %0 = vector.load %arg1[%c0, %c0_0] : memref<8x128xbf16, #tpu.memory_space<vmem>>, vector<8x128xbf16>
    %c0_1 = arith.constant 0 : index
    %c0_2 = arith.constant 0 : index
    %1 = vector.load %arg2[%c0_1, %c0_2] : memref<128x128xbf16, #tpu.memory_space<vmem>>, vector<128x128xbf16>
    %cst = arith.constant dense<0.000000e+00> : vector<8x128xf32>
    %2 = tpu.matmul %0, %1, %cst {dimension_numbers = #tpu.dot_dimension_numbers<[1], [0], [0], [1], [0, 0, 1, 1], [], []>} : vector<8x128xbf16>, vector<128x128xbf16>, vector<8x128xf32> -> vector<8x128xf32>
    %c0_3 = arith.constant 0 : index
    %c0_4 = arith.constant 0 : index
    %3 = vector.load %arg3[%c0_3, %c0_4] : memref<1x128xf32, #tpu.memory_space<vmem>>, vector<1x128xf32>
    %4 = vector.broadcast %3 : vector<1x128xf32> to vector<8x128xf32>
    %5 = arith.addf %2, %4 : vector<8x128xf32>
    %cst_5 = arith.constant 0.000000e+00 : f32
    %6 = vector.broadcast %cst_5 : f32 to vector<8x128xf32>
    %7 = arith.maximumf %5, %6 : vector<8x128xf32>
    %8 = arith.truncf %7 : vector<8x128xf32> to vector<8x128xbf16>
    %c0_6 = arith.constant 0 : index
    %c0_7 = arith.constant 0 : index
    %9 = vector.load %arg4[%c0_6, %c0_7] : memref<128x128xbf16, #tpu.memory_space<vmem>>, vector<128x128xbf16>
    %cst_8 = arith.constant dense<0.000000e+00> : vector<8x128xf32>
    %10 = tpu.matmul %8, %9, %cst_8 {dimension_numbers = #tpu.dot_dimension_numbers<[1], [0], [0], [1], [0, 0, 1, 1], [], []>} : vector<8x128xbf16>, vector<128x128xbf16>, vector<8x128xf32> -> vector<8x128xf32>
    %c0_9 = arith.constant 0 : index
    %c0_10 = arith.constant 0 : index
    %11 = vector.load %arg5[%c0_9, %c0_10] : memref<1x128xf32, #tpu.memory_space<vmem>>, vector<1x128xf32>
    %12 = vector.broadcast %11 : vector<1x128xf32> to vector<8x128xf32>
    %13 = arith.addf %10, %12 : vector<8x128xf32>
    %cst_11 = arith.constant 0.000000e+00 : f32
    %14 = vector.broadcast %cst_11 : f32 to vector<8x128xf32>
    %15 = arith.maximumf %13, %14 : vector<8x128xf32>
    %16 = arith.truncf %15 : vector<8x128xf32> to vector<8x128xbf16>
    %c0_12 = arith.constant 0 : index
    %c0_13 = arith.constant 0 : index
    %17 = vector.load %arg6[%c0_12, %c0_13] : memref<128x128xbf16, #tpu.memory_space<vmem>>, vector<128x128xbf16>
    %cst_14 = arith.constant dense<0.000000e+00> : vector<8x128xf32>
    %18 = tpu.matmul %16, %17, %cst_14 {dimension_numbers = #tpu.dot_dimension_numbers<[1], [0], [0], [1], [0, 0, 1, 1], [], []>} : vector<8x128xbf16>, vector<128x128xbf16>, vector<8x128xf32> -> vector<8x128xf32>
    %c0_15 = arith.constant 0 : index
    %c0_16 = arith.constant 0 : index
    %19 = vector.load %arg7[%c0_15, %c0_16] : memref<1x128xf32, #tpu.memory_space<vmem>>, vector<1x128xf32>
    %20 = vector.broadcast %19 : vector<1x128xf32> to vector<8x128xf32>
    %21 = arith.addf %18, %20 : vector<8x128xf32>
    %cst_17 = arith.constant 0.000000e+00 : f32
    %22 = vector.broadcast %cst_17 : f32 to vector<8x128xf32>
    %23 = arith.maximumf %21, %22 : vector<8x128xf32>
    %24 = arith.truncf %23 : vector<8x128xf32> to vector<8x128xbf16>
    %c0_18 = arith.constant 0 : index
    %c0_19 = arith.constant 0 : index
    %25 = vector.load %arg8[%c0_18, %c0_19] : memref<128x128xbf16, #tpu.memory_space<vmem>>, vector<128x128xbf16>
    %cst_20 = arith.constant dense<0.000000e+00> : vector<8x128xf32>
    %26 = tpu.matmul %24, %25, %cst_20 {dimension_numbers = #tpu.dot_dimension_numbers<[1], [0], [0], [1], [0, 0, 1, 1], [], []>} : vector<8x128xbf16>, vector<128x128xbf16>, vector<8x128xf32> -> vector<8x128xf32>
    %c0_21 = arith.constant 0 : index
    %c0_22 = arith.constant 0 : index
    %27 = vector.load %arg9[%c0_21, %c0_22] : memref<1x128xf32, #tpu.memory_space<vmem>>, vector<1x128xf32>
    %28 = vector.broadcast %27 : vector<1x128xf32> to vector<8x128xf32>
    %29 = arith.addf %26, %28 : vector<8x128xf32>
    %30 = arith.truncf %29 : vector<8x128xf32> to vector<8x128xbf16>
    %c0_23 = arith.constant 0 : index
    %c0_24 = arith.constant 0 : index
    %31 = vector.load %arg10[%c0_23, %c0_24] : memref<128x128xbf16, #tpu.memory_space<vmem>>, vector<128x128xbf16>
    %cst_25 = arith.constant dense<0.000000e+00> : vector<8x128xf32>
    %32 = tpu.matmul %30, %31, %cst_25 {dimension_numbers = #tpu.dot_dimension_numbers<[1], [0], [0], [1], [0, 0, 1, 1], [], []>} : vector<8x128xbf16>, vector<128x128xbf16>, vector<8x128xf32> -> vector<8x128xf32>
    %c0_26 = arith.constant 0 : index
    %c0_27 = arith.constant 0 : index
    %33 = vector.load %arg11[%c0_26, %c0_27] : memref<1x128xf32, #tpu.memory_space<vmem>>, vector<1x128xf32>
    %34 = vector.broadcast %33 : vector<1x128xf32> to vector<8x128xf32>
    %35 = arith.addf %32, %34 : vector<8x128xf32>
    %cst_28 = arith.constant 0.000000e+00 : f32
    %36 = vector.broadcast %cst_28 : f32 to vector<8x128xf32>
    %37 = arith.maximumf %35, %36 : vector<8x128xf32>
    %38 = arith.truncf %37 : vector<8x128xf32> to vector<8x128xbf16>
    %c0_29 = arith.constant 0 : index
    %c0_30 = arith.constant 0 : index
    %39 = vector.load %arg12[%c0_29, %c0_30] : memref<128x128xbf16, #tpu.memory_space<vmem>>, vector<128x128xbf16>
    %cst_31 = arith.constant dense<0.000000e+00> : vector<8x128xf32>
    %40 = tpu.matmul %38, %39, %cst_31 {dimension_numbers = #tpu.dot_dimension_numbers<[1], [0], [0], [1], [0, 0, 1, 1], [], []>} : vector<8x128xbf16>, vector<128x128xbf16>, vector<8x128xf32> -> vector<8x128xf32>
    %c0_32 = arith.constant 0 : index
    %c0_33 = arith.constant 0 : index
    %41 = vector.load %arg13[%c0_32, %c0_33] : memref<1x128xf32, #tpu.memory_space<vmem>>, vector<1x128xf32>
    %42 = vector.broadcast %41 : vector<1x128xf32> to vector<8x128xf32>
    %43 = arith.addf %40, %42 : vector<8x128xf32>
    %cst_34 = arith.constant 0.000000e+00 : f32
    %44 = vector.broadcast %cst_34 : f32 to vector<8x128xf32>
    %45 = arith.maximumf %43, %44 : vector<8x128xf32>
    %46 = arith.truncf %45 : vector<8x128xf32> to vector<8x128xbf16>
    %c0_35 = arith.constant 0 : index
    %c0_36 = arith.constant 0 : index
    %47 = vector.load %arg14[%c0_35, %c0_36] : memref<128x128xbf16, #tpu.memory_space<vmem>>, vector<128x128xbf16>
    %cst_37 = arith.constant dense<0.000000e+00> : vector<8x128xf32>
    %48 = tpu.matmul %46, %47, %cst_37 {dimension_numbers = #tpu.dot_dimension_numbers<[1], [0], [0], [1], [0, 0, 1, 1], [], []>} : vector<8x128xbf16>, vector<128x128xbf16>, vector<8x128xf32> -> vector<8x128xf32>
    %c0_38 = arith.constant 0 : index
    %c0_39 = arith.constant 0 : index
    %49 = vector.load %arg15[%c0_38, %c0_39] : memref<1x128xf32, #tpu.memory_space<vmem>>, vector<1x128xf32>
    %50 = vector.broadcast %49 : vector<1x128xf32> to vector<8x128xf32>
    %51 = arith.addf %48, %50 : vector<8x128xf32>
    %cst_40 = arith.constant 0.000000e+00 : f32
    %52 = vector.broadcast %cst_40 : f32 to vector<8x128xf32>
    %53 = arith.maximumf %51, %52 : vector<8x128xf32>
    %54 = arith.truncf %53 : vector<8x128xf32> to vector<8x128xbf16>
    %c0_41 = arith.constant 0 : index
    %c0_42 = arith.constant 0 : index
    %55 = vector.load %arg16[%c0_41, %c0_42] : memref<128x128xbf16, #tpu.memory_space<vmem>>, vector<128x128xbf16>
    %cst_43 = arith.constant dense<0.000000e+00> : vector<8x128xf32>
    %56 = tpu.matmul %54, %55, %cst_43 {dimension_numbers = #tpu.dot_dimension_numbers<[1], [0], [0], [1], [0, 0, 1, 1], [], []>} : vector<8x128xbf16>, vector<128x128xbf16>, vector<8x128xf32> -> vector<8x128xf32>
    %c0_44 = arith.constant 0 : index
    %c0_45 = arith.constant 0 : index
    %57 = vector.load %arg17[%c0_44, %c0_45] : memref<1x128xf32, #tpu.memory_space<vmem>>, vector<1x128xf32>
    %58 = vector.broadcast %57 : vector<1x128xf32> to vector<8x128xf32>
    %59 = arith.addf %56, %58 : vector<8x128xf32>
    %c0_46 = arith.constant 0 : index
    %c0_47 = arith.constant 0 : index
    %60 = vector.load %arg18[%c0_46, %c0_47] : memref<8x128xf32, #tpu.memory_space<vmem>>, vector<8x128xf32>
    tpu.vector_store %arg18[%c0_46, %c0_47], %59 {strides = array<i32>} : memref<8x128xf32, #tpu.memory_space<vmem>>, vector<8x128xf32>,
    %c0_48 = arith.constant 0 : index
    %c0_49 = arith.constant 0 : index
    %61 = vector.load %arg19[%c0_48, %c0_49] : memref<8x128xf32, #tpu.memory_space<vmem>>, vector<8x128xf32>
    tpu.vector_store %arg19[%c0_48, %c0_49], %7 {strides = array<i32>} : memref<8x128xf32, #tpu.memory_space<vmem>>, vector<8x128xf32>,
    %c0_50 = arith.constant 0 : index
    %c0_51 = arith.constant 0 : index
    %62 = vector.load %arg20[%c0_50, %c0_51] : memref<8x128xf32, #tpu.memory_space<vmem>>, vector<8x128xf32>
    tpu.vector_store %arg20[%c0_50, %c0_51], %15 {strides = array<i32>} : memref<8x128xf32, #tpu.memory_space<vmem>>, vector<8x128xf32>,
    %c0_52 = arith.constant 0 : index
    %c0_53 = arith.constant 0 : index
    %63 = vector.load %arg21[%c0_52, %c0_53] : memref<8x128xf32, #tpu.memory_space<vmem>>, vector<8x128xf32>
    tpu.vector_store %arg21[%c0_52, %c0_53], %23 {strides = array<i32>} : memref<8x128xf32, #tpu.memory_space<vmem>>, vector<8x128xf32>,
    %c0_54 = arith.constant 0 : index
    %c0_55 = arith.constant 0 : index
    %64 = vector.load %arg22[%c0_54, %c0_55] : memref<8x128xf32, #tpu.memory_space<vmem>>, vector<8x128xf32>
    tpu.vector_store %arg22[%c0_54, %c0_55], %29 {strides = array<i32>} : memref<8x128xf32, #tpu.memory_space<vmem>>, vector<8x128xf32>,
    return
  }
  func.func @transform_0(%arg0: i32) -> (i32, i32) {
    %c0_i32 = arith.constant 0 : i32
    %c0_i32_0 = arith.constant 0 : i32
    return %arg0, %c0_i32 : i32, i32
  }
  func.func @transform_1(%arg0: i32) -> (i32, i32) {
    %c0_i32 = arith.constant 0 : i32
    %c0_i32_0 = arith.constant 0 : i32
    %c0_i32_1 = arith.constant 0 : i32
    return %c0_i32, %c0_i32_0 : i32, i32
  }
  func.func @transform_2(%arg0: i32) -> (i32, i32) {
    %c0_i32 = arith.constant 0 : i32
    %c0_i32_0 = arith.constant 0 : i32
    %c0_i32_1 = arith.constant 0 : i32
    return %c0_i32, %c0_i32_0 : i32, i32
  }
  func.func @transform_3(%arg0: i32) -> (i32, i32) {
    %c0_i32 = arith.constant 0 : i32
    %c0_i32_0 = arith.constant 0 : i32
    %c0_i32_1 = arith.constant 0 : i32
    return %c0_i32, %c0_i32_0 : i32, i32
  }
  func.func @transform_4(%arg0: i32) -> (i32, i32) {
    %c0_i32 = arith.constant 0 : i32
    %c0_i32_0 = arith.constant 0 : i32
    %c0_i32_1 = arith.constant 0 : i32
    return %c0_i32, %c0_i32_0 : i32, i32
  }
  func.func @transform_5(%arg0: i32) -> (i32, i32) {
    %c0_i32 = arith.constant 0 : i32
    %c0_i32_0 = arith.constant 0 : i32
    %c0_i32_1 = arith.constant 0 : i32
    return %c0_i32, %c0_i32_0 : i32, i32
  }
  func.func @transform_6(%arg0: i32) -> (i32, i32) {
    %c0_i32 = arith.constant 0 : i32
    %c0_i32_0 = arith.constant 0 : i32
    %c0_i32_1 = arith.constant 0 : i32
    return %c0_i32, %c0_i32_0 : i32, i32
  }
  func.func @transform_7(%arg0: i32) -> (i32, i32) {
    %c0_i32 = arith.constant 0 : i32
    %c0_i32_0 = arith.constant 0 : i32
    %c0_i32_1 = arith.constant 0 : i32
    return %c0_i32, %c0_i32_0 : i32, i32
  }
  func.func @transform_8(%arg0: i32) -> (i32, i32) {
    %c0_i32 = arith.constant 0 : i32
    %c0_i32_0 = arith.constant 0 : i32
    %c0_i32_1 = arith.constant 0 : i32
    return %c0_i32, %c0_i32_0 : i32, i32
  }
  func.func @transform_9(%arg0: i32) -> (i32, i32) {
    %c0_i32 = arith.constant 0 : i32
    %c0_i32_0 = arith.constant 0 : i32
    %c0_i32_1 = arith.constant 0 : i32
    return %c0_i32, %c0_i32_0 : i32, i32
  }
  func.func @transform_10(%arg0: i32) -> (i32, i32) {
    %c0_i32 = arith.constant 0 : i32
    %c0_i32_0 = arith.constant 0 : i32
    %c0_i32_1 = arith.constant 0 : i32
    return %c0_i32, %c0_i32_0 : i32, i32
  }
  func.func @transform_11(%arg0: i32) -> (i32, i32) {
    %c0_i32 = arith.constant 0 : i32
    %c0_i32_0 = arith.constant 0 : i32
    %c0_i32_1 = arith.constant 0 : i32
    return %c0_i32, %c0_i32_0 : i32, i32
  }
  func.func @transform_12(%arg0: i32) -> (i32, i32) {
    %c0_i32 = arith.constant 0 : i32
    %c0_i32_0 = arith.constant 0 : i32
    %c0_i32_1 = arith.constant 0 : i32
    return %c0_i32, %c0_i32_0 : i32, i32
  }
  func.func @transform_13(%arg0: i32) -> (i32, i32) {
    %c0_i32 = arith.constant 0 : i32
    %c0_i32_0 = arith.constant 0 : i32
    %c0_i32_1 = arith.constant 0 : i32
    return %c0_i32, %c0_i32_0 : i32, i32
  }
  func.func @transform_14(%arg0: i32) -> (i32, i32) {
    %c0_i32 = arith.constant 0 : i32
    %c0_i32_0 = arith.constant 0 : i32
    %c0_i32_1 = arith.constant 0 : i32
    return %c0_i32, %c0_i32_0 : i32, i32
  }
  func.func @transform_15(%arg0: i32) -> (i32, i32) {
    %c0_i32 = arith.constant 0 : i32
    %c0_i32_0 = arith.constant 0 : i32
    %c0_i32_1 = arith.constant 0 : i32
    return %c0_i32, %c0_i32_0 : i32, i32
  }
  func.func @transform_16(%arg0: i32) -> (i32, i32) {
    %c0_i32 = arith.constant 0 : i32
    %c0_i32_0 = arith.constant 0 : i32
    %c0_i32_1 = arith.constant 0 : i32
    return %c0_i32, %c0_i32_0 : i32, i32
  }
  func.func @transform_17(%arg0: i32) -> (i32, i32) {
    %c0_i32 = arith.constant 0 : i32
    %c0_i32_0 = arith.constant 0 : i32
    return %arg0, %c0_i32 : i32, i32
  }
  func.func @transform_18(%arg0: i32) -> (i32, i32) {
    %c0_i32 = arith.constant 0 : i32
    %c0_i32_0 = arith.constant 0 : i32
    return %arg0, %c0_i32 : i32, i32
  }
  func.func @transform_19(%arg0: i32) -> (i32, i32) {
    %c0_i32 = arith.constant 0 : i32
    %c0_i32_0 = arith.constant 0 : i32
    return %arg0, %c0_i32 : i32, i32
  }
  func.func @transform_20(%arg0: i32) -> (i32, i32) {
    %c0_i32 = arith.constant 0 : i32
    %c0_i32_0 = arith.constant 0 : i32
    return %arg0, %c0_i32 : i32, i32
  }
  func.func @transform_21(%arg0: i32) -> (i32, i32) {
    %c0_i32 = arith.constant 0 : i32
    %c0_i32_0 = arith.constant 0 : i32
    return %arg0, %c0_i32 : i32, i32
  }
}

module attributes {stable_mosaic.version = 11 : i64} {
  func.func @_sdcn_ae_kernel(%arg0: i32, %arg1: memref<8x128xbf16, #tpu.memory_space<vmem>>, %arg2: memref<128x128xbf16, #tpu.memory_space<vmem>>, %arg3: memref<1x128xf32, #tpu.memory_space<vmem>>, %arg4: memref<128x128xbf16, #tpu.memory_space<vmem>>, %arg5: memref<1x128xf32, #tpu.memory_space<vmem>>, %arg6: memref<128x128xbf16, #tpu.memory_space<vmem>>, %arg7: memref<1x128xf32, #tpu.memory_space<vmem>>, %arg8: memref<128x128xbf16, #tpu.memory_space<vmem>>, %arg9: memref<1x128xf32, #tpu.memory_space<vmem>>, %arg10: memref<128x128xbf16, #tpu.memory_space<vmem>>, %arg11: memref<1x128xf32, #tpu.memory_space<vmem>>, %arg12: memref<128x128xbf16, #tpu.memory_space<vmem>>, %arg13: memref<1x128xf32, #tpu.memory_space<vmem>>, %arg14: memref<128x128xbf16, #tpu.memory_space<vmem>>, %arg15: memref<1x128xf32, #tpu.memory_space<vmem>>, %arg16: memref<128x128xbf16, #tpu.memory_space<vmem>>, %arg17: memref<1x128xf32, #tpu.memory_space<vmem>>, %arg18: memref<8x128xf32, #tpu.memory_space<vmem>>, %arg19: memref<8x128xf32, #tpu.memory_space<vmem>>, %arg20: memref<8x128xf32, #tpu.memory_space<vmem>>, %arg21: memref<8x128xf32, #tpu.memory_space<vmem>>, %arg22: memref<8x128xf32, #tpu.memory_space<vmem>>) attributes {dimension_semantics = [#tpu.dimension_semantics<parallel>], iteration_bounds = array<i64: 2>, scalar_prefetch = 0 : i64, scratch_operands = 0 : i64, tpu.core_type = #tpu.core_type<tc>, window_params = [{transform_indices = @transform_0, window_bounds = array<i64: 8, 128>}, {pipeline_mode = #tpu.pipeline_mode<synchronous>, transform_indices = @transform_1, window_bounds = array<i64: 128, 128>}, {pipeline_mode = #tpu.pipeline_mode<synchronous>, transform_indices = @transform_2, window_bounds = array<i64: 1, 128>}, {pipeline_mode = #tpu.pipeline_mode<synchronous>, transform_indices = @transform_3, window_bounds = array<i64: 128, 128>}, {pipeline_mode = #tpu.pipeline_mode<synchronous>, transform_indices = @transform_4, window_bounds = array<i64: 1, 128>}, {pipeline_mode = #tpu.pipeline_mode<synchronous>, transform_indices = @transform_5, window_bounds = array<i64: 128, 128>}, {pipeline_mode = #tpu.pipeline_mode<synchronous>, transform_indices = @transform_6, window_bounds = array<i64: 1, 128>}, {pipeline_mode = #tpu.pipeline_mode<synchronous>, transform_indices = @transform_7, window_bounds = array<i64: 128, 128>}, {pipeline_mode = #tpu.pipeline_mode<synchronous>, transform_indices = @transform_8, window_bounds = array<i64: 1, 128>}, {pipeline_mode = #tpu.pipeline_mode<synchronous>, transform_indices = @transform_9, window_bounds = array<i64: 128, 128>}, {pipeline_mode = #tpu.pipeline_mode<synchronous>, transform_indices = @transform_10, window_bounds = array<i64: 1, 128>}, {pipeline_mode = #tpu.pipeline_mode<synchronous>, transform_indices = @transform_11, window_bounds = array<i64: 128, 128>}, {pipeline_mode = #tpu.pipeline_mode<synchronous>, transform_indices = @transform_12, window_bounds = array<i64: 1, 128>}, {pipeline_mode = #tpu.pipeline_mode<synchronous>, transform_indices = @transform_13, window_bounds = array<i64: 128, 128>}, {pipeline_mode = #tpu.pipeline_mode<synchronous>, transform_indices = @transform_14, window_bounds = array<i64: 1, 128>}, {pipeline_mode = #tpu.pipeline_mode<synchronous>, transform_indices = @transform_15, window_bounds = array<i64: 128, 128>}, {pipeline_mode = #tpu.pipeline_mode<synchronous>, transform_indices = @transform_16, window_bounds = array<i64: 1, 128>}, {transform_indices = @transform_17, window_bounds = array<i64: 8, 128>}, {transform_indices = @transform_18, window_bounds = array<i64: 8, 128>}, {transform_indices = @transform_19, window_bounds = array<i64: 8, 128>}, {transform_indices = @transform_20, window_bounds = array<i64: 8, 128>}, {transform_indices = @transform_21, window_bounds = array<i64: 8, 128>}]} {
    %c0 = arith.constant 0 : index
    %c0_0 = arith.constant 0 : index
    %0 = vector.load %arg1[%c0, %c0_0] : memref<8x128xbf16, #tpu.memory_space<vmem>>, vector<8x128xbf16>
    %c0_1 = arith.constant 0 : index
    %c0_2 = arith.constant 0 : index
    %1 = vector.load %arg2[%c0_1, %c0_2] : memref<128x128xbf16, #tpu.memory_space<vmem>>, vector<128x128xbf16>
    %cst = arith.constant dense<0.000000e+00> : vector<8x128xf32>
    %2 = tpu.matmul %0, %1, %cst {dimension_numbers = #tpu.dot_dimension_numbers<[1], [0], [0], [1], [0, 0, 1, 1], [], []>} : vector<8x128xbf16>, vector<128x128xbf16>, vector<8x128xf32> -> vector<8x128xf32>
    %c0_3 = arith.constant 0 : index
    %c0_4 = arith.constant 0 : index
    %3 = vector.load %arg3[%c0_3, %c0_4] : memref<1x128xf32, #tpu.memory_space<vmem>>, vector<1x128xf32>
    %4 = vector.broadcast %3 : vector<1x128xf32> to vector<8x128xf32>
    %5 = arith.addf %2, %4 : vector<8x128xf32>
    %cst_5 = arith.constant 0.000000e+00 : f32
    %6 = vector.broadcast %cst_5 : f32 to vector<8x128xf32>
    %7 = arith.maximumf %5, %6 : vector<8x128xf32>
    %8 = arith.truncf %7 : vector<8x128xf32> to vector<8x128xbf16>
    %c0_6 = arith.constant 0 : index
    %c0_7 = arith.constant 0 : index
    %9 = vector.load %arg4[%c0_6, %c0_7] : memref<128x128xbf16, #tpu.memory_space<vmem>>, vector<128x128xbf16>
    %cst_8 = arith.constant dense<0.000000e+00> : vector<8x128xf32>
    %10 = tpu.matmul %8, %9, %cst_8 {dimension_numbers = #tpu.dot_dimension_numbers<[1], [0], [0], [1], [0, 0, 1, 1], [], []>} : vector<8x128xbf16>, vector<128x128xbf16>, vector<8x128xf32> -> vector<8x128xf32>
    %c0_9 = arith.constant 0 : index
    %c0_10 = arith.constant 0 : index
    %11 = vector.load %arg5[%c0_9, %c0_10] : memref<1x128xf32, #tpu.memory_space<vmem>>, vector<1x128xf32>
    %12 = vector.broadcast %11 : vector<1x128xf32> to vector<8x128xf32>
    %13 = arith.addf %10, %12 : vector<8x128xf32>
    %cst_11 = arith.constant 0.000000e+00 : f32
    %14 = vector.broadcast %cst_11 : f32 to vector<8x128xf32>
    %15 = arith.maximumf %13, %14 : vector<8x128xf32>
    %16 = arith.truncf %15 : vector<8x128xf32> to vector<8x128xbf16>
    %c0_12 = arith.constant 0 : index
    %c0_13 = arith.constant 0 : index
    %17 = vector.load %arg6[%c0_12, %c0_13] : memref<128x128xbf16, #tpu.memory_space<vmem>>, vector<128x128xbf16>
    %cst_14 = arith.constant dense<0.000000e+00> : vector<8x128xf32>
    %18 = tpu.matmul %16, %17, %cst_14 {dimension_numbers = #tpu.dot_dimension_numbers<[1], [0], [0], [1], [0, 0, 1, 1], [], []>} : vector<8x128xbf16>, vector<128x128xbf16>, vector<8x128xf32> -> vector<8x128xf32>
    %c0_15 = arith.constant 0 : index
    %c0_16 = arith.constant 0 : index
    %19 = vector.load %arg7[%c0_15, %c0_16] : memref<1x128xf32, #tpu.memory_space<vmem>>, vector<1x128xf32>
    %20 = vector.broadcast %19 : vector<1x128xf32> to vector<8x128xf32>
    %21 = arith.addf %18, %20 : vector<8x128xf32>
    %cst_17 = arith.constant 0.000000e+00 : f32
    %22 = vector.broadcast %cst_17 : f32 to vector<8x128xf32>
    %23 = arith.maximumf %21, %22 : vector<8x128xf32>
    %24 = arith.truncf %23 : vector<8x128xf32> to vector<8x128xbf16>
    %c0_18 = arith.constant 0 : index
    %c0_19 = arith.constant 0 : index
    %25 = vector.load %arg8[%c0_18, %c0_19] : memref<128x128xbf16, #tpu.memory_space<vmem>>, vector<128x128xbf16>
    %cst_20 = arith.constant dense<0.000000e+00> : vector<8x128xf32>
    %26 = tpu.matmul %24, %25, %cst_20 {dimension_numbers = #tpu.dot_dimension_numbers<[1], [0], [0], [1], [0, 0, 1, 1], [], []>} : vector<8x128xbf16>, vector<128x128xbf16>, vector<8x128xf32> -> vector<8x128xf32>
    %c0_21 = arith.constant 0 : index
    %c0_22 = arith.constant 0 : index
    %27 = vector.load %arg9[%c0_21, %c0_22] : memref<1x128xf32, #tpu.memory_space<vmem>>, vector<1x128xf32>
    %28 = vector.broadcast %27 : vector<1x128xf32> to vector<8x128xf32>
    %29 = arith.addf %26, %28 : vector<8x128xf32>
    %30 = arith.truncf %29 : vector<8x128xf32> to vector<8x128xbf16>
    %c0_23 = arith.constant 0 : index
    %c0_24 = arith.constant 0 : index
    %31 = vector.load %arg10[%c0_23, %c0_24] : memref<128x128xbf16, #tpu.memory_space<vmem>>, vector<128x128xbf16>
    %cst_25 = arith.constant dense<0.000000e+00> : vector<8x128xf32>
    %32 = tpu.matmul %30, %31, %cst_25 {dimension_numbers = #tpu.dot_dimension_numbers<[1], [0], [0], [1], [0, 0, 1, 1], [], []>} : vector<8x128xbf16>, vector<128x128xbf16>, vector<8x128xf32> -> vector<8x128xf32>
    %c0_26 = arith.constant 0 : index
    %c0_27 = arith.constant 0 : index
    %33 = vector.load %arg11[%c0_26, %c0_27] : memref<1x128xf32, #tpu.memory_space<vmem>>, vector<1x128xf32>
    %34 = vector.broadcast %33 : vector<1x128xf32> to vector<8x128xf32>
    %35 = arith.addf %32, %34 : vector<8x128xf32>
    %cst_28 = arith.constant 0.000000e+00 : f32
    %36 = vector.broadcast %cst_28 : f32 to vector<8x128xf32>
    %37 = arith.maximumf %35, %36 : vector<8x128xf32>
    %38 = arith.truncf %37 : vector<8x128xf32> to vector<8x128xbf16>
    %c0_29 = arith.constant 0 : index
    %c0_30 = arith.constant 0 : index
    %39 = vector.load %arg12[%c0_29, %c0_30] : memref<128x128xbf16, #tpu.memory_space<vmem>>, vector<128x128xbf16>
    %cst_31 = arith.constant dense<0.000000e+00> : vector<8x128xf32>
    %40 = tpu.matmul %38, %39, %cst_31 {dimension_numbers = #tpu.dot_dimension_numbers<[1], [0], [0], [1], [0, 0, 1, 1], [], []>} : vector<8x128xbf16>, vector<128x128xbf16>, vector<8x128xf32> -> vector<8x128xf32>
    %c0_32 = arith.constant 0 : index
    %c0_33 = arith.constant 0 : index
    %41 = vector.load %arg13[%c0_32, %c0_33] : memref<1x128xf32, #tpu.memory_space<vmem>>, vector<1x128xf32>
    %42 = vector.broadcast %41 : vector<1x128xf32> to vector<8x128xf32>
    %43 = arith.addf %40, %42 : vector<8x128xf32>
    %cst_34 = arith.constant 0.000000e+00 : f32
    %44 = vector.broadcast %cst_34 : f32 to vector<8x128xf32>
    %45 = arith.maximumf %43, %44 : vector<8x128xf32>
    %46 = arith.truncf %45 : vector<8x128xf32> to vector<8x128xbf16>
    %c0_35 = arith.constant 0 : index
    %c0_36 = arith.constant 0 : index
    %47 = vector.load %arg14[%c0_35, %c0_36] : memref<128x128xbf16, #tpu.memory_space<vmem>>, vector<128x128xbf16>
    %cst_37 = arith.constant dense<0.000000e+00> : vector<8x128xf32>
    %48 = tpu.matmul %46, %47, %cst_37 {dimension_numbers = #tpu.dot_dimension_numbers<[1], [0], [0], [1], [0, 0, 1, 1], [], []>} : vector<8x128xbf16>, vector<128x128xbf16>, vector<8x128xf32> -> vector<8x128xf32>
    %c0_38 = arith.constant 0 : index
    %c0_39 = arith.constant 0 : index
    %49 = vector.load %arg15[%c0_38, %c0_39] : memref<1x128xf32, #tpu.memory_space<vmem>>, vector<1x128xf32>
    %50 = vector.broadcast %49 : vector<1x128xf32> to vector<8x128xf32>
    %51 = arith.addf %48, %50 : vector<8x128xf32>
    %cst_40 = arith.constant 0.000000e+00 : f32
    %52 = vector.broadcast %cst_40 : f32 to vector<8x128xf32>
    %53 = arith.maximumf %51, %52 : vector<8x128xf32>
    %54 = arith.truncf %53 : vector<8x128xf32> to vector<8x128xbf16>
    %c0_41 = arith.constant 0 : index
    %c0_42 = arith.constant 0 : index
    %55 = vector.load %arg16[%c0_41, %c0_42] : memref<128x128xbf16, #tpu.memory_space<vmem>>, vector<128x128xbf16>
    %cst_43 = arith.constant dense<0.000000e+00> : vector<8x128xf32>
    %56 = tpu.matmul %54, %55, %cst_43 {dimension_numbers = #tpu.dot_dimension_numbers<[1], [0], [0], [1], [0, 0, 1, 1], [], []>} : vector<8x128xbf16>, vector<128x128xbf16>, vector<8x128xf32> -> vector<8x128xf32>
    %c0_44 = arith.constant 0 : index
    %c0_45 = arith.constant 0 : index
    %57 = vector.load %arg17[%c0_44, %c0_45] : memref<1x128xf32, #tpu.memory_space<vmem>>, vector<1x128xf32>
    %58 = vector.broadcast %57 : vector<1x128xf32> to vector<8x128xf32>
    %59 = arith.addf %56, %58 : vector<8x128xf32>
    %c0_46 = arith.constant 0 : index
    %c0_47 = arith.constant 0 : index
    %60 = vector.load %arg18[%c0_46, %c0_47] : memref<8x128xf32, #tpu.memory_space<vmem>>, vector<8x128xf32>
    tpu.vector_store %arg18[%c0_46, %c0_47], %59 {strides = array<i32>} : memref<8x128xf32, #tpu.memory_space<vmem>>, vector<8x128xf32>,
    %c0_48 = arith.constant 0 : index
    %c0_49 = arith.constant 0 : index
    %61 = vector.load %arg19[%c0_48, %c0_49] : memref<8x128xf32, #tpu.memory_space<vmem>>, vector<8x128xf32>
    tpu.vector_store %arg19[%c0_48, %c0_49], %7 {strides = array<i32>} : memref<8x128xf32, #tpu.memory_space<vmem>>, vector<8x128xf32>,
    %c0_50 = arith.constant 0 : index
    %c0_51 = arith.constant 0 : index
    %62 = vector.load %arg20[%c0_50, %c0_51] : memref<8x128xf32, #tpu.memory_space<vmem>>, vector<8x128xf32>
    tpu.vector_store %arg20[%c0_50, %c0_51], %15 {strides = array<i32>} : memref<8x128xf32, #tpu.memory_space<vmem>>, vector<8x128xf32>,
    %c0_52 = arith.constant 0 : index
    %c0_53 = arith.constant 0 : index
    %63 = vector.load %arg21[%c0_52, %c0_53] : memref<8x128xf32, #tpu.memory_space<vmem>>, vector<8x128xf32>
    tpu.vector_store %arg21[%c0_52, %c0_53], %23 {strides = array<i32>} : memref<8x128xf32, #tpu.memory_space<vmem>>, vector<8x128xf32>,
    %c0_54 = arith.constant 0 : index
    %c0_55 = arith.constant 0 : index
    %64 = vector.load %arg22[%c0_54, %c0_55] : memref<8x128xf32, #tpu.memory_space<vmem>>, vector<8x128xf32>
    tpu.vector_store %arg22[%c0_54, %c0_55], %29 {strides = array<i32>} : memref<8x128xf32, #tpu.memory_space<vmem>>, vector<8x128xf32>,
    return
  }
  func.func @transform_0(%arg0: i32) -> (i32, i32) {
    %c0_i32 = arith.constant 0 : i32
    %c0_i32_0 = arith.constant 0 : i32
    return %arg0, %c0_i32 : i32, i32
  }
  func.func @transform_1(%arg0: i32) -> (i32, i32) {
    %c0_i32 = arith.constant 0 : i32
    %c0_i32_0 = arith.constant 0 : i32
    %c0_i32_1 = arith.constant 0 : i32
    return %c0_i32, %c0_i32_0 : i32, i32
  }
  func.func @transform_2(%arg0: i32) -> (i32, i32) {
    %c0_i32 = arith.constant 0 : i32
    %c0_i32_0 = arith.constant 0 : i32
    %c0_i32_1 = arith.constant 0 : i32
    return %c0_i32, %c0_i32_0 : i32, i32
  }
  func.func @transform_3(%arg0: i32) -> (i32, i32) {
    %c0_i32 = arith.constant 0 : i32
    %c0_i32_0 = arith.constant 0 : i32
    %c0_i32_1 = arith.constant 0 : i32
    return %c0_i32, %c0_i32_0 : i32, i32
  }
  func.func @transform_4(%arg0: i32) -> (i32, i32) {
    %c0_i32 = arith.constant 0 : i32
    %c0_i32_0 = arith.constant 0 : i32
    %c0_i32_1 = arith.constant 0 : i32
    return %c0_i32, %c0_i32_0 : i32, i32
  }
  func.func @transform_5(%arg0: i32) -> (i32, i32) {
    %c0_i32 = arith.constant 0 : i32
    %c0_i32_0 = arith.constant 0 : i32
    %c0_i32_1 = arith.constant 0 : i32
    return %c0_i32, %c0_i32_0 : i32, i32
  }
  func.func @transform_6(%arg0: i32) -> (i32, i32) {
    %c0_i32 = arith.constant 0 : i32
    %c0_i32_0 = arith.constant 0 : i32
    %c0_i32_1 = arith.constant 0 : i32
    return %c0_i32, %c0_i32_0 : i32, i32
  }
  func.func @transform_7(%arg0: i32) -> (i32, i32) {
    %c0_i32 = arith.constant 0 : i32
    %c0_i32_0 = arith.constant 0 : i32
    %c0_i32_1 = arith.constant 0 : i32
    return %c0_i32, %c0_i32_0 : i32, i32
  }
  func.func @transform_8(%arg0: i32) -> (i32, i32) {
    %c0_i32 = arith.constant 0 : i32
    %c0_i32_0 = arith.constant 0 : i32
    %c0_i32_1 = arith.constant 0 : i32
    return %c0_i32, %c0_i32_0 : i32, i32
  }
  func.func @transform_9(%arg0: i32) -> (i32, i32) {
    %c0_i32 = arith.constant 0 : i32
    %c0_i32_0 = arith.constant 0 : i32
    %c0_i32_1 = arith.constant 0 : i32
    return %c0_i32, %c0_i32_0 : i32, i32
  }
  func.func @transform_10(%arg0: i32) -> (i32, i32) {
    %c0_i32 = arith.constant 0 : i32
    %c0_i32_0 = arith.constant 0 : i32
    %c0_i32_1 = arith.constant 0 : i32
    return %c0_i32, %c0_i32_0 : i32, i32
  }
  func.func @transform_11(%arg0: i32) -> (i32, i32) {
    %c0_i32 = arith.constant 0 : i32
    %c0_i32_0 = arith.constant 0 : i32
    %c0_i32_1 = arith.constant 0 : i32
    return %c0_i32, %c0_i32_0 : i32, i32
  }
  func.func @transform_12(%arg0: i32) -> (i32, i32) {
    %c0_i32 = arith.constant 0 : i32
    %c0_i32_0 = arith.constant 0 : i32
    %c0_i32_1 = arith.constant 0 : i32
    return %c0_i32, %c0_i32_0 : i32, i32
  }
  func.func @transform_13(%arg0: i32) -> (i32, i32) {
    %c0_i32 = arith.constant 0 : i32
    %c0_i32_0 = arith.constant 0 : i32
    %c0_i32_1 = arith.constant 0 : i32
    return %c0_i32, %c0_i32_0 : i32, i32
  }
  func.func @transform_14(%arg0: i32) -> (i32, i32) {
    %c0_i32 = arith.constant 0 : i32
    %c0_i32_0 = arith.constant 0 : i32
    %c0_i32_1 = arith.constant 0 : i32
    return %c0_i32, %c0_i32_0 : i32, i32
  }
  func.func @transform_15(%arg0: i32) -> (i32, i32) {
    %c0_i32 = arith.constant 0 : i32
    %c0_i32_0 = arith.constant 0 : i32
    %c0_i32_1 = arith.constant 0 : i32
    return %c0_i32, %c0_i32_0 : i32, i32
  }
  func.func @transform_16(%arg0: i32) -> (i32, i32) {
    %c0_i32 = arith.constant 0 : i32
    %c0_i32_0 = arith.constant 0 : i32
    %c0_i32_1 = arith.constant 0 : i32
    return %c0_i32, %c0_i32_0 : i32, i32
  }
  func.func @transform_17(%arg0: i32) -> (i32, i32) {
    %c0_i32 = arith.constant 0 : i32
    %c0_i32_0 = arith.constant 0 : i32
    return %arg0, %c0_i32 : i32, i32
  }
  func.func @transform_18(%arg0: i32) -> (i32, i32) {
    %c0_i32 = arith.constant 0 : i32
    %c0_i32_0 = arith.constant 0 : i32
    return %arg0, %c0_i32 : i32, i32
  }
  func.func @transform_19(%arg0: i32) -> (i32, i32) {
    %c0_i32 = arith.constant 0 : i32
    %c0_i32_0 = arith.constant 0 : i32
    return %arg0, %c0_i32 : i32, i32
  }
  func.func @transform_20(%arg0: i32) -> (i32, i32) {
    %c0_i32 = arith.constant 0 : i32
    %c0_i32_0 = arith.constant 0 : i32
    return %arg0, %c0_i32 : i32, i32
  }
  func.func @transform_21(%arg0: i32) -> (i32, i32) {
    %c0_i32 = arith.constant 0 : i32
    %c0_i32_0 = arith.constant 0 : i32
    return %arg0, %c0_i32 : i32, i32
  }
}

</mosaic_0001>

<llo_original>
// kernel: tpu_custom_call.1
$region0: #{tpu_custom_call.1}
  #allocation0 [shape = 'u32[]', space=smem, size = 0x4, offset = 0x4, fixed_abs, tag = 'smem constant byte address 0x4 - core index']
  #allocation1 [shape = 'u32[144,128]{1,0:T(1,128)}', space=vmem, size = 0x12000, scoped, tag = 'internal scratch']
  %s0 = inlined_call_operand.hbm [shape: bf16[16,128], index: 0, kind: input, shape index: {}]
  %s1 = inlined_call_operand.hbm [shape: bf16[128,128], index: 1, kind: input, shape index: {}]
  %s2 = inlined_call_operand.vmem [shape: f32[1,128], index: 2, kind: input, shape index: {}]
  %s3 = inlined_call_operand.hbm [shape: bf16[128,128], index: 3, kind: input, shape index: {}]
  %s4 = inlined_call_operand.vmem [shape: f32[1,128], index: 4, kind: input, shape index: {}]
  %s5 = inlined_call_operand.hbm [shape: bf16[128,128], index: 5, kind: input, shape index: {}]
  %s6 = inlined_call_operand.vmem [shape: f32[1,128], index: 6, kind: input, shape index: {}]
  %s7 = inlined_call_operand.hbm [shape: bf16[128,128], index: 7, kind: input, shape index: {}]
  %s8 = inlined_call_operand.vmem [shape: f32[1,128], index: 8, kind: input, shape index: {}]
  %s9 = inlined_call_operand.hbm [shape: bf16[128,128], index: 9, kind: input, shape index: {}]
  %s10 = inlined_call_operand.vmem [shape: f32[1,128], index: 10, kind: input, shape index: {}]
  %s11 = inlined_call_operand.hbm [shape: bf16[128,128], index: 11, kind: input, shape index: {}]
  %s12 = inlined_call_operand.vmem [shape: f32[1,128], index: 12, kind: input, shape index: {}]
  %s13 = inlined_call_operand.hbm [shape: bf16[128,128], index: 13, kind: input, shape index: {}]
  %s14 = inlined_call_operand.vmem [shape: f32[1,128], index: 14, kind: input, shape index: {}]
  %s15 = inlined_call_operand.hbm [shape: bf16[128,128], index: 15, kind: input, shape index: {}]
  %s16 = inlined_call_operand.vmem [shape: f32[1,128], index: 16, kind: input, shape index: {}]
  %s17 = inlined_call_operand.hbm [shape: f32[16,128], index: 17, kind: output, shape index: {0}]
  %s18 = inlined_call_operand.hbm [shape: f32[16,128], index: 18, kind: output, shape index: {1}]
  %s19 = inlined_call_operand.hbm [shape: f32[16,128], index: 19, kind: output, shape index: {2}]
  %s20 = inlined_call_operand.hbm [shape: f32[16,128], index: 20, kind: output, shape index: {3}]
  %s21 = inlined_call_operand.hbm [shape: f32[16,128], index: 21, kind: output, shape index: {4}]
  %22 = xla_tuple %s17, %s18, %s19, %s20, %s21
  %s23 = sld [smem:[#allocation0]]
  $region169: #{tpu_custom_call.1} parent=0
    _
  %s25 = ssub.s32 1, %s23
  %s26 = scalar_select 0, %s25, %s23
  $region1: #{tpu_custom_call.1} parent=0
    #allocation2 [shape = 'u8[4096]{0}', space=vmem, size = 0x1000, scoped, tag = 'input window, operand 0']
    #allocation3 [shape = 's32[2]{0}', space=sflag, size = 0x8, scoped, tag = 'scoped memory for tpu_custom_call.1']
    #allocation4 [shape = 's32[2]{0}', space=sflag, size = 0x8, scoped, tag = 'scoped memory for tpu_custom_call.1']
    #allocation5 [shape = 'u8[32768]{0}', space=vmem, size = 0x8000, scoped, tag = 'input window, operand 1, single buffered']
    #allocation6 [shape = 's32[1]{0}', space=sflag, size = 0x4, scoped, tag = 'scoped memory for tpu_custom_call.1']
    #allocation7 [shape = 'u8[32768]{0}', space=vmem, size = 0x8000, scoped, tag = 'input window, operand 3, single buffered']
    #allocation8 [shape = 'u8[32768]{0}', space=vmem, size = 0x8000, scoped, tag = 'input window, operand 5, single buffered']
    #allocation9 [shape = 's32[1]{0}', space=sflag, size = 0x4, scoped, tag = 'scoped memory for tpu_custom_call.1']
    #allocation10 [shape = 'u8[32768]{0}', space=vmem, size = 0x8000, scoped, tag = 'input window, operand 7, single buffered']
    #allocation11 [shape = 'u8[32768]{0}', space=vmem, size = 0x8000, scoped, tag = 'input window, operand 9, single buffered']
    #allocation12 [shape = 's32[1]{0}', space=sflag, size = 0x4, scoped, tag = 'scoped memory for tpu_custom_call.1']
    #allocation13 [shape = 'u8[32768]{0}', space=vmem, size = 0x8000, scoped, tag = 'input window, operand 11, single buffered']
    #allocation14 [shape = 'u8[32768]{0}', space=vmem, size = 0x8000, scoped, tag = 'input window, operand 13, single buffered']
    #allocation15 [shape = 's32[1]{0}', space=sflag, size = 0x4, scoped, tag = 'scoped memory for tpu_custom_call.1']
    #allocation16 [shape = 'u8[32768]{0}', space=vmem, size = 0x8000, scoped, tag = 'input window, operand 15, single buffered']
    #allocation17 [shape = 'u8[8192]{0}', space=vmem, size = 0x2000, scoped, tag = 'output window, operand 0']
    #allocation18 [shape = 'u8[8192]{0}', space=vmem, size = 0x2000, scoped, tag = 'output window, operand 1']
    #allocation19 [shape = 's32[2]{0}', space=sflag, size = 0x8, scoped, tag = 'scoped memory for tpu_custom_call.1']
    #allocation20 [shape = 'u8[8192]{0}', space=vmem, size = 0x2000, scoped, tag = 'output window, operand 2']
    #allocation21 [shape = 'u8[8192]{0}', space=vmem, size = 0x2000, scoped, tag = 'output window, operand 3']
    #allocation22 [shape = 's32[2]{0}', space=sflag, size = 0x8, scoped, tag = 'scoped memory for tpu_custom_call.1']
    #allocation23 [shape = 'u8[8192]{0}', space=vmem, size = 0x2000, scoped, tag = 'output window, operand 4']
    %27 = vsyncpa [#allocation3], 0
    %s28 = scalar_lea.sflag [#allocation3], 1
    %29 = vsyncpa %s28, 0
    %30 = vsyncpa [#allocation6], 0
    %31 = vsyncpa [#allocation9], 0
    %32 = vsyncpa [#allocation12], 0
    %33 = vsyncpa [#allocation15], 0
    %34 = vsyncpa [#allocation4], 0
    %s35 = scalar_lea.sflag [#allocation4], 1
    %36 = vsyncpa %s35, 0
    %37 = vsyncpa [#allocation19], 0
    %s38 = scalar_lea.sflag [#allocation19], 1
    %39 = vsyncpa %s38, 0
    %40 = vsyncpa [#allocation22], 0
    %s41 = scalar_lea.sflag [#allocation22], 1
    %42 = vsyncpa %s41, 0
    loop: start=0, step=1, limit=4
    $region2: #{tpu_custom_call.1} parent=1 // loop_pre_header
      _
    $region3: #{tpu_custom_call.1} parent=1 // loop_header
      %s44 = sphi 0, %s48
      %p45 = scmp.ge.s32.totalorder %s44, 4
      %s54 = sphi 0, %s56
      %s57 = sphi 0, %s54
      %s58 = sphi 0, %s57
      %s74 = sphi 0, %s58
      %s78 = sphi 0, %s78
      %s80 = sphi 0, %s78
      %s81 = sphi 0, %s80
      %s95 = sphi 0, %s81
      %s99 = sphi 0, %s99
      %s101 = sphi 0, %s99
      %s102 = sphi 0, %s101
      %s116 = sphi 0, %s102
      %s120 = sphi 0, %s120
      %s122 = sphi 0, %s120
      %s123 = sphi 0, %s122
      %s137 = sphi 0, %s123
      %s141 = sphi 0, %s141
      %s143 = sphi 0, %s141
      %s144 = sphi 0, %s143
      %s158 = sphi 0, %s144
      %s162 = sphi 0, %s162
      %s164 = sphi 0, %s162
      %s165 = sphi 0, %s164
      %s179 = sphi 0, %s165
      %s183 = sphi 0, %s183
      %s185 = sphi 0, %s183
      %s186 = sphi 0, %s185
      %s200 = sphi 0, %s186
      %s204 = sphi 0, %s204
      %s206 = sphi 0, %s204
      %s207 = sphi 0, %s206
      %s221 = sphi 0, %s207
      %s225 = sphi 0, %s225
      %s227 = sphi 0, %s225
      %s228 = sphi 0, %s227
      %s242 = sphi 0, %s228
      %s246 = sphi 0, %s246
      %s248 = sphi 0, %s246
      %s249 = sphi 0, %s248
      %s263 = sphi 0, %s249
      %s267 = sphi 0, %s267
      %s269 = sphi 0, %s267
      %s270 = sphi 0, %s269
      %s284 = sphi 0, %s270
      %s288 = sphi 0, %s288
      %s290 = sphi 0, %s288
      %s291 = sphi 0, %s290
      %s305 = sphi 0, %s291
      %s309 = sphi 0, %s309
      %s311 = sphi 0, %s309
      %s312 = sphi 0, %s311
      %s326 = sphi 0, %s312
      %s330 = sphi 0, %s330
      %s332 = sphi 0, %s330
      %s333 = sphi 0, %s332
      %s347 = sphi 0, %s333
      %s351 = sphi 0, %s351
      %s353 = sphi 0, %s351
      %s354 = sphi 0, %s353
      %s368 = sphi 0, %s354
      %s372 = sphi 0, %s372
      %s374 = sphi 0, %s372
      %s375 = sphi 0, %s374
      %s389 = sphi 0, %s375
      %s393 = sphi 0, %s393
      %s395 = sphi 0, %s393
      %s396 = sphi 0, %s395
      %s410 = sphi 0, %s396
      %s416 = sphi 0, %s418
      %s419 = sphi 0, %s416
      %s420 = sphi 0, %s419
      %s436 = sphi 0, %s420
      %s442 = sphi 0, %s444
      %s445 = sphi 0, %s442
      %s446 = sphi 0, %s445
      %s462 = sphi 0, %s446
      %s468 = sphi 0, %s470
      %s471 = sphi 0, %s468
      %s472 = sphi 0, %s471
      %s488 = sphi 0, %s472
      %s494 = sphi 0, %s496
      %s497 = sphi 0, %s494
      %s498 = sphi 0, %s497
      %s514 = sphi 0, %s498
      %s520 = sphi 0, %s522
      %s523 = sphi 0, %s520
      %s524 = sphi 0, %s523
      %s540 = sphi 0, %s524
    $region4: #{tpu_custom_call.1} parent=1 // loop_header_branch
      %47 = sbr.rel (%p45) target = $region8
    $region5: #{tpu_custom_call.1} parent=1 // loop_body
      %s49 = ssub.s32 %s44, 1
      %s50 = ssub.s32 %s44, 2
      %s51 = sadd.s32 %s44, 1
      %s52 = ssub.s32 %s44, %s51
      %p53 = scmp.eq.s32.totalorder %s52, 0
      %s55 = sadd.s32 %s54, 1
      %s56 = scalar_select %p53, %s54, %s55
      %p59 = pneg %p53
      %p60 = scmp.eq.s32.totalorder %s44, 1
      %p61 = por %p59, %p60
      %p62 = scmp.ne.s32.totalorder %s54, %s57
      %p63 = scmp.eq.s32.totalorder %s44, 0
      %p64 = por %p62, %p63
      %p65 = scmp.ne.s32.totalorder %s54, %s57
      %p66 = scmp.eq.s32.totalorder %s49, 1
      %p67 = por %p65, %p66
      %p68 = scmp.ne.s32.totalorder %s57, %s58
      %p69 = scmp.eq.s32.totalorder %s49, 0
      %p70 = por %p68, %p69
      %p71 = scmp.ne.s32.totalorder %s57, %s58
      %p72 = scmp.eq.s32.totalorder %s50, 1
      %p73 = por %p71, %p72
      %p75 = scmp.ne.s32.totalorder %s58, %s74
      %p76 = scmp.eq.s32.totalorder %s50, 0
      %p77 = por %p75, %p76
      %s79 = sadd.s32 %s78, 1
      %p82 = scmp.eq.s32.totalorder %s44, 1
      %p83 = scmp.ne.s32.totalorder %s78, %s80
      %p84 = scmp.eq.s32.totalorder %s44, 0
      %p85 = por %p83, %p84
      %p86 = scmp.ne.s32.totalorder %s78, %s80
      %p87 = scmp.eq.s32.totalorder %s49, 1
      %p88 = por %p86, %p87
      %p89 = scmp.ne.s32.totalorder %s80, %s81
      %p90 = scmp.eq.s32.totalorder %s49, 0
      %p91 = por %p89, %p90
      %p92 = scmp.ne.s32.totalorder %s80, %s81
      %p93 = scmp.eq.s32.totalorder %s50, 1
      %p94 = por %p92, %p93
      %p96 = scmp.ne.s32.totalorder %s81, %s95
      %p97 = scmp.eq.s32.totalorder %s50, 0
      %p98 = por %p96, %p97
      %s100 = sadd.s32 %s99, 1
      %p103 = scmp.eq.s32.totalorder %s44, 1
      %p104 = scmp.ne.s32.totalorder %s99, %s101
      %p105 = scmp.eq.s32.totalorder %s44, 0
      %p106 = por %p104, %p105
      %p107 = scmp.ne.s32.totalorder %s99, %s101
      %p108 = scmp.eq.s32.totalorder %s49, 1
      %p109 = por %p107, %p108
      %p110 = scmp.ne.s32.totalorder %s101, %s102
      %p111 = scmp.eq.s32.totalorder %s49, 0
      %p112 = por %p110, %p111
      %p113 = scmp.ne.s32.totalorder %s101, %s102
      %p114 = scmp.eq.s32.totalorder %s50, 1
      %p115 = por %p113, %p114
      %p117 = scmp.ne.s32.totalorder %s102, %s116
      %p118 = scmp.eq.s32.totalorder %s50, 0
      %p119 = por %p117, %p118
      %s121 = sadd.s32 %s120, 1
      %p124 = scmp.eq.s32.totalorder %s44, 1
      %p125 = scmp.ne.s32.totalorder %s120, %s122
      %p126 = scmp.eq.s32.totalorder %s44, 0
      %p127 = por %p125, %p126
      %p128 = scmp.ne.s32.totalorder %s120, %s122
      %p129 = scmp.eq.s32.totalorder %s49, 1
      %p130 = por %p128, %p129
      %p131 = scmp.ne.s32.totalorder %s122, %s123
      %p132 = scmp.eq.s32.totalorder %s49, 0
      %p133 = por %p131, %p132
      %p134 = scmp.ne.s32.totalorder %s122, %s123
      %p135 = scmp.eq.s32.totalorder %s50, 1
      %p136 = por %p134, %p135
      %p138 = scmp.ne.s32.totalorder %s123, %s137
      %p139 = scmp.eq.s32.totalorder %s50, 0
      %p140 = por %p138, %p139
      %s142 = sadd.s32 %s141, 1
      %p145 = scmp.eq.s32.totalorder %s44, 1
      %p146 = scmp.ne.s32.totalorder %s141, %s143
      %p147 = scmp.eq.s32.totalorder %s44, 0
      %p148 = por %p146, %p147
      %p149 = scmp.ne.s32.totalorder %s141, %s143
      %p150 = scmp.eq.s32.totalorder %s49, 1
      %p151 = por %p149, %p150
      %p152 = scmp.ne.s32.totalorder %s143, %s144
      %p153 = scmp.eq.s32.totalorder %s49, 0
      %p154 = por %p152, %p153
      %p155 = scmp.ne.s32.totalorder %s143, %s144
      %p156 = scmp.eq.s32.totalorder %s50, 1
      %p157 = por %p155, %p156
      %p159 = scmp.ne.s32.totalorder %s144, %s158
      %p160 = scmp.eq.s32.totalorder %s50, 0
      %p161 = por %p159, %p160
      %s163 = sadd.s32 %s162, 1
      %p166 = scmp.eq.s32.totalorder %s44, 1
      %p167 = scmp.ne.s32.totalorder %s162, %s164
      %p168 = scmp.eq.s32.totalorder %s44, 0
      %p169 = por %p167, %p168
      %p170 = scmp.ne.s32.totalorder %s162, %s164
      %p171 = scmp.eq.s32.totalorder %s49, 1
      %p172 = por %p170, %p171
      %p173 = scmp.ne.s32.totalorder %s164, %s165
      %p174 = scmp.eq.s32.totalorder %s49, 0
      %p175 = por %p173, %p174
      %p176 = scmp.ne.s32.totalorder %s164, %s165
      %p177 = scmp.eq.s32.totalorder %s50, 1
      %p178 = por %p176, %p177
      %p180 = scmp.ne.s32.totalorder %s165, %s179
      %p181 = scmp.eq.s32.totalorder %s50, 0
      %p182 = por %p180, %p181
      %s184 = sadd.s32 %s183, 1
      %p187 = scmp.eq.s32.totalorder %s44, 1
      %p188 = scmp.ne.s32.totalorder %s183, %s185
      %p189 = scmp.eq.s32.totalorder %s44, 0
      %p190 = por %p188, %p189
      %p191 = scmp.ne.s32.totalorder %s183, %s185
      %p192 = scmp.eq.s32.totalorder %s49, 1
      %p193 = por %p191, %p192
      %p194 = scmp.ne.s32.totalorder %s185, %s186
      %p195 = scmp.eq.s32.totalorder %s49, 0
      %p196 = por %p194, %p195
      %p197 = scmp.ne.s32.totalorder %s185, %s186
      %p198 = scmp.eq.s32.totalorder %s50, 1
      %p199 = por %p197, %p198
      %p201 = scmp.ne.s32.totalorder %s186, %s200
      %p202 = scmp.eq.s32.totalorder %s50, 0
      %p203 = por %p201, %p202
      %s205 = sadd.s32 %s204, 1
      %p208 = scmp.eq.s32.totalorder %s44, 1
      %p209 = scmp.ne.s32.totalorder %s204, %s206
      %p210 = scmp.eq.s32.totalorder %s44, 0
      %p211 = por %p209, %p210
      %p212 = scmp.ne.s32.totalorder %s204, %s206
      %p213 = scmp.eq.s32.totalorder %s49, 1
      %p214 = por %p212, %p213
      %p215 = scmp.ne.s32.totalorder %s206, %s207
      %p216 = scmp.eq.s32.totalorder %s49, 0
      %p217 = por %p215, %p216
      %p218 = scmp.ne.s32.totalorder %s206, %s207
      %p219 = scmp.eq.s32.totalorder %s50, 1
      %p220 = por %p218, %p219
      %p222 = scmp.ne.s32.totalorder %s207, %s221
      %p223 = scmp.eq.s32.totalorder %s50, 0
      %p224 = por %p222, %p223
      %s226 = sadd.s32 %s225, 1
      %p229 = scmp.eq.s32.totalorder %s44, 1
      %p230 = scmp.ne.s32.totalorder %s225, %s227
      %p231 = scmp.eq.s32.totalorder %s44, 0
      %p232 = por %p230, %p231
      %p233 = scmp.ne.s32.totalorder %s225, %s227
      %p234 = scmp.eq.s32.totalorder %s49, 1
      %p235 = por %p233, %p234
      %p236 = scmp.ne.s32.totalorder %s227, %s228
      %p237 = scmp.eq.s32.totalorder %s49, 0
      %p238 = por %p236, %p237
      %p239 = scmp.ne.s32.totalorder %s227, %s228
      %p240 = scmp.eq.s32.totalorder %s50, 1
      %p241 = por %p239, %p240
      %p243 = scmp.ne.s32.totalorder %s228, %s242
      %p244 = scmp.eq.s32.totalorder %s50, 0
      %p245 = por %p243, %p244
      %s247 = sadd.s32 %s246, 1
      %p250 = scmp.eq.s32.totalorder %s44, 1
      %p251 = scmp.ne.s32.totalorder %s246, %s248
      %p252 = scmp.eq.s32.totalorder %s44, 0
      %p253 = por %p251, %p252
      %p254 = scmp.ne.s32.totalorder %s246, %s248
      %p255 = scmp.eq.s32.totalorder %s49, 1
      %p256 = por %p254, %p255
      %p257 = scmp.ne.s32.totalorder %s248, %s249
      %p258 = scmp.eq.s32.totalorder %s49, 0
      %p259 = por %p257, %p258
      %p260 = scmp.ne.s32.totalorder %s248, %s249
      %p261 = scmp.eq.s32.totalorder %s50, 1
      %p262 = por %p260, %p261
      %p264 = scmp.ne.s32.totalorder %s249, %s263
      %p265 = scmp.eq.s32.totalorder %s50, 0
      %p266 = por %p264, %p265
      %s268 = sadd.s32 %s267, 1
      %p271 = scmp.eq.s32.totalorder %s44, 1
      %p272 = scmp.ne.s32.totalorder %s267, %s269
      %p273 = scmp.eq.s32.totalorder %s44, 0
      %p274 = por %p272, %p273
      %p275 = scmp.ne.s32.totalorder %s267, %s269
      %p276 = scmp.eq.s32.totalorder %s49, 1
      %p277 = por %p275, %p276
      %p278 = scmp.ne.s32.totalorder %s269, %s270
      %p279 = scmp.eq.s32.totalorder %s49, 0
      %p280 = por %p278, %p279
      %p281 = scmp.ne.s32.totalorder %s269, %s270
      %p282 = scmp.eq.s32.totalorder %s50, 1
      %p283 = por %p281, %p282
      %p285 = scmp.ne.s32.totalorder %s270, %s284
      %p286 = scmp.eq.s32.totalorder %s50, 0
      %p287 = por %p285, %p286
      %s289 = sadd.s32 %s288, 1
      %p292 = scmp.eq.s32.totalorder %s44, 1
      %p293 = scmp.ne.s32.totalorder %s288, %s290
      %p294 = scmp.eq.s32.totalorder %s44, 0
      %p295 = por %p293, %p294
      %p296 = scmp.ne.s32.totalorder %s288, %s290
      %p297 = scmp.eq.s32.totalorder %s49, 1
      %p298 = por %p296, %p297
      %p299 = scmp.ne.s32.totalorder %s290, %s291
      %p300 = scmp.eq.s32.totalorder %s49, 0
      %p301 = por %p299, %p300
      %p302 = scmp.ne.s32.totalorder %s290, %s291
      %p303 = scmp.eq.s32.totalorder %s50, 1
      %p304 = por %p302, %p303
      %p306 = scmp.ne.s32.totalorder %s291, %s305
      %p307 = scmp.eq.s32.totalorder %s50, 0
      %p308 = por %p306, %p307
      %s310 = sadd.s32 %s309, 1
      %p313 = scmp.eq.s32.totalorder %s44, 1
      %p314 = scmp.ne.s32.totalorder %s309, %s311
      %p315 = scmp.eq.s32.totalorder %s44, 0
      %p316 = por %p314, %p315
      %p317 = scmp.ne.s32.totalorder %s309, %s311
      %p318 = scmp.eq.s32.totalorder %s49, 1
      %p319 = por %p317, %p318
      %p320 = scmp.ne.s32.totalorder %s311, %s312
      %p321 = scmp.eq.s32.totalorder %s49, 0
      %p322 = por %p320, %p321
      %p323 = scmp.ne.s32.totalorder %s311, %s312
      %p324 = scmp.eq.s32.totalorder %s50, 1
      %p325 = por %p323, %p324
      %p327 = scmp.ne.s32.totalorder %s312, %s326
      %p328 = scmp.eq.s32.totalorder %s50, 0
      %p329 = por %p327, %p328
      %s331 = sadd.s32 %s330, 1
      %p334 = scmp.eq.s32.totalorder %s44, 1
      %p335 = scmp.ne.s32.totalorder %s330, %s332
      %p336 = scmp.eq.s32.totalorder %s44, 0
      %p337 = por %p335, %p336
      %p338 = scmp.ne.s32.totalorder %s330, %s332
      %p339 = scmp.eq.s32.totalorder %s49, 1
      %p340 = por %p338, %p339
      %p341 = scmp.ne.s32.totalorder %s332, %s333
      %p342 = scmp.eq.s32.totalorder %s49, 0
      %p343 = por %p341, %p342
      %p344 = scmp.ne.s32.totalorder %s332, %s333
      %p345 = scmp.eq.s32.totalorder %s50, 1
      %p346 = por %p344, %p345
      %p348 = scmp.ne.s32.totalorder %s333, %s347
      %p349 = scmp.eq.s32.totalorder %s50, 0
      %p350 = por %p348, %p349
      %s352 = sadd.s32 %s351, 1
      %p355 = scmp.eq.s32.totalorder %s44, 1
      %p356 = scmp.ne.s32.totalorder %s351, %s353
      %p357 = scmp.eq.s32.totalorder %s44, 0
      %p358 = por %p356, %p357
      %p359 = scmp.ne.s32.totalorder %s351, %s353
      %p360 = scmp.eq.s32.totalorder %s49, 1
      %p361 = por %p359, %p360
      %p362 = scmp.ne.s32.totalorder %s353, %s354
      %p363 = scmp.eq.s32.totalorder %s49, 0
      %p364 = por %p362, %p363
      %p365 = scmp.ne.s32.totalorder %s353, %s354
      %p366 = scmp.eq.s32.totalorder %s50, 1
      %p367 = por %p365, %p366
      %p369 = scmp.ne.s32.totalorder %s354, %s368
      %p370 = scmp.eq.s32.totalorder %s50, 0
      %p371 = por %p369, %p370
      %s373 = sadd.s32 %s372, 1
      %p376 = scmp.eq.s32.totalorder %s44, 1
      %p377 = scmp.ne.s32.totalorder %s372, %s374
      %p378 = scmp.eq.s32.totalorder %s44, 0
      %p379 = por %p377, %p378
      %p380 = scmp.ne.s32.totalorder %s372, %s374
      %p381 = scmp.eq.s32.totalorder %s49, 1
      %p382 = por %p380, %p381
      %p383 = scmp.ne.s32.totalorder %s374, %s375
      %p384 = scmp.eq.s32.totalorder %s49, 0
      %p385 = por %p383, %p384
      %p386 = scmp.ne.s32.totalorder %s374, %s375
      %p387 = scmp.eq.s32.totalorder %s50, 1
      %p388 = por %p386, %p387
      %p390 = scmp.ne.s32.totalorder %s375, %s389
      %p391 = scmp.eq.s32.totalorder %s50, 0
      %p392 = por %p390, %p391
      %s394 = sadd.s32 %s393, 1
      %p397 = scmp.eq.s32.totalorder %s44, 1
      %p398 = scmp.ne.s32.totalorder %s393, %s395
      %p399 = scmp.eq.s32.totalorder %s44, 0
      %p400 = por %p398, %p399
      %p401 = scmp.ne.s32.totalorder %s393, %s395
      %p402 = scmp.eq.s32.totalorder %s49, 1
      %p403 = por %p401, %p402
      %p404 = scmp.ne.s32.totalorder %s395, %s396
      %p405 = scmp.eq.s32.totalorder %s49, 0
      %p406 = por %p404, %p405
      %p407 = scmp.ne.s32.totalorder %s395, %s396
      %p408 = scmp.eq.s32.totalorder %s50, 1
      %p409 = por %p407, %p408
      %p411 = scmp.ne.s32.totalorder %s396, %s410
      %p412 = scmp.eq.s32.totalorder %s50, 0
      %p413 = por %p411, %p412
      %s414 = ssub.s32 %s44, %s51
      %p415 = scmp.eq.s32.totalorder %s414, 0
      %s417 = sadd.s32 %s416, 1
      %s418 = scalar_select %p415, %s416, %s417
      %p421 = pneg %p415
      %p422 = scmp.eq.s32.totalorder %s44, 1
      %p423 = por %p421, %p422
      %p424 = scmp.ne.s32.totalorder %s416, %s419
      %p425 = scmp.eq.s32.totalorder %s44, 0
      %p426 = por %p424, %p425
      %p427 = scmp.ne.s32.totalorder %s416, %s419
      %p428 = scmp.eq.s32.totalorder %s49, 1
      %p429 = por %p427, %p428
      %p430 = scmp.ne.s32.totalorder %s419, %s420
      %p431 = scmp.eq.s32.totalorder %s49, 0
      %p432 = por %p430, %p431
      %p433 = scmp.ne.s32.totalorder %s419, %s420
      %p434 = scmp.eq.s32.totalorder %s50, 1
      %p435 = por %p433, %p434
      %p437 = scmp.ne.s32.totalorder %s420, %s436
      %p438 = scmp.eq.s32.totalorder %s50, 0
      %p439 = por %p437, %p438
      %s440 = ssub.s32 %s44, %s51
      %p441 = scmp.eq.s32.totalorder %s440, 0
      %s443 = sadd.s32 %s442, 1
      %s444 = scalar_select %p441, %s442, %s443
      %p447 = pneg %p441
      %p448 = scmp.eq.s32.totalorder %s44, 1
      %p449 = por %p447, %p448
      %p450 = scmp.ne.s32.totalorder %s442, %s445
      %p451 = scmp.eq.s32.totalorder %s44, 0
      %p452 = por %p450, %p451
      %p453 = scmp.ne.s32.totalorder %s442, %s445
      %p454 = scmp.eq.s32.totalorder %s49, 1
      %p455 = por %p453, %p454
      %p456 = scmp.ne.s32.totalorder %s445, %s446
      %p457 = scmp.eq.s32.totalorder %s49, 0
      %p458 = por %p456, %p457
      %p459 = scmp.ne.s32.totalorder %s445, %s446
      %p460 = scmp.eq.s32.totalorder %s50, 1
      %p461 = por %p459, %p460
      %p463 = scmp.ne.s32.totalorder %s446, %s462
      %p464 = scmp.eq.s32.totalorder %s50, 0
      %p465 = por %p463, %p464
      %s466 = ssub.s32 %s44, %s51
      %p467 = scmp.eq.s32.totalorder %s466, 0
      %s469 = sadd.s32 %s468, 1
      %s470 = scalar_select %p467, %s468, %s469
      %p473 = pneg %p467
      %p474 = scmp.eq.s32.totalorder %s44, 1
      %p475 = por %p473, %p474
      %p476 = scmp.ne.s32.totalorder %s468, %s471
      %p477 = scmp.eq.s32.totalorder %s44, 0
      %p478 = por %p476, %p477
      %p479 = scmp.ne.s32.totalorder %s468, %s471
      %p480 = scmp.eq.s32.totalorder %s49, 1
      %p481 = por %p479, %p480
      %p482 = scmp.ne.s32.totalorder %s471, %s472
      %p483 = scmp.eq.s32.totalorder %s49, 0
      %p484 = por %p482, %p483
      %p485 = scmp.ne.s32.totalorder %s471, %s472
      %p486 = scmp.eq.s32.totalorder %s50, 1
      %p487 = por %p485, %p486
      %p489 = scmp.ne.s32.totalorder %s472, %s488
      %p490 = scmp.eq.s32.totalorder %s50, 0
      %p491 = por %p489, %p490
      %s492 = ssub.s32 %s44, %s51
      %p493 = scmp.eq.s32.totalorder %s492, 0
      %s495 = sadd.s32 %s494, 1
      %s496 = scalar_select %p493, %s494, %s495
      %p499 = pneg %p493
      %p500 = scmp.eq.s32.totalorder %s44, 1
      %p501 = por %p499, %p500
      %p502 = scmp.ne.s32.totalorder %s494, %s497
      %p503 = scmp.eq.s32.totalorder %s44, 0
      %p504 = por %p502, %p503
      %p505 = scmp.ne.s32.totalorder %s494, %s497
      %p506 = scmp.eq.s32.totalorder %s49, 1
      %p507 = por %p505, %p506
      %p508 = scmp.ne.s32.totalorder %s497, %s498
      %p509 = scmp.eq.s32.totalorder %s49, 0
      %p510 = por %p508, %p509
      %p511 = scmp.ne.s32.totalorder %s497, %s498
      %p512 = scmp.eq.s32.totalorder %s50, 1
      %p513 = por %p511, %p512
      %p515 = scmp.ne.s32.totalorder %s498, %s514
      %p516 = scmp.eq.s32.totalorder %s50, 0
      %p517 = por %p515, %p516
      %s518 = ssub.s32 %s44, %s51
      %p519 = scmp.eq.s32.totalorder %s518, 0
      %s521 = sadd.s32 %s520, 1
      %s522 = scalar_select %p519, %s520, %s521
      %p525 = pneg %p519
      %p526 = scmp.eq.s32.totalorder %s44, 1
      %p527 = por %p525, %p526
      %p528 = scmp.ne.s32.totalorder %s520, %s523
      %p529 = scmp.eq.s32.totalorder %s44, 0
      %p530 = por %p528, %p529
      %p531 = scmp.ne.s32.totalorder %s520, %s523
      %p532 = scmp.eq.s32.totalorder %s49, 1
      %p533 = por %p531, %p532
      %p534 = scmp.ne.s32.totalorder %s523, %s524
      %p535 = scmp.eq.s32.totalorder %s49, 0
      %p536 = por %p534, %p535
      %p537 = scmp.ne.s32.totalorder %s523, %s524
      %p538 = scmp.eq.s32.totalorder %s50, 1
      %p539 = por %p537, %p538
      %p541 = scmp.ne.s32.totalorder %s524, %s540
      %p542 = scmp.eq.s32.totalorder %s50, 0
      %p543 = por %p541, %p542
      %p544 = scmp.le.s32.totalorder 1, %s44
      %p545 = scmp.lt.s32.totalorder %s44, 3
      %p546 = pnand %p544, %p545
      %p547 = pneg %p546
      // Predicated region
      $region9: #{tpu_custom_call.1} parent=5 // pred_check
        _
      $region10: #{tpu_custom_call.1} parent=5 // pred_check_branch
        %549 = sbr.rel (%p546) target = $region12
      $region11: #{tpu_custom_call.1} parent=5 // pred_region
        %s550 = ssub.s32 %s44, 1
        // Predicated region
        $region13: #{tpu_custom_call.1} parent=11 // pred_check
          %p551 = pneg %p91
        $region14: #{tpu_custom_call.1} parent=11 // pred_check_branch
          %553 = sbr.rel (%p551) target = $region16
        $region15: #{tpu_custom_call.1} parent=11 // pred_region
          %s555 = ssub.s32 1024, 1024
          %556 = vsyncadd [#allocation6], %s555
          %s557 = sshll.u32 [#allocation5], 4
          %s558 = int_to_ptr.vmem [resolvable:$true] %s557
          %563 = dma.hbm_to_vmem [thread:$0]  %s1, 1024, %s558, [#allocation6], 64, 64, 4
        $region16: #{tpu_custom_call.1} parent=11 // pred_fallthru
          _
        // Predicated region
        $region17: #{tpu_custom_call.1} parent=11 // pred_check
          %p564 = pneg %p112
        $region18: #{tpu_custom_call.1} parent=11 // pred_check_branch
          %566 = sbr.rel (%p564) target = $region20
        $region19: #{tpu_custom_call.1} parent=11 // pred_region
          _
        $region20: #{tpu_custom_call.1} parent=11 // pred_fallthru
          _
        // Predicated region
        $region21: #{tpu_custom_call.1} parent=11 // pred_check
          %p567 = pneg %p133
        $region22: #{tpu_custom_call.1} parent=11 // pred_check_branch
          %569 = sbr.rel (%p567) target = $region24
        $region23: #{tpu_custom_call.1} parent=11 // pred_region
          %s571 = ssub.s32 1024, 1024
          %572 = vsyncadd [#allocation6], %s571
          %s573 = sshll.u32 [#allocation7], 4
          %s574 = int_to_ptr.vmem [resolvable:$true] %s573
          %579 = dma.hbm_to_vmem [thread:$0]  %s3, 1024, %s574, [#allocation6], 64, 64, 4
        $region24: #{tpu_custom_call.1} parent=11 // pred_fallthru
          _
        // Predicated region
        $region25: #{tpu_custom_call.1} parent=11 // pred_check
          %p580 = pneg %p154
        $region26: #{tpu_custom_call.1} parent=11 // pred_check_branch
          %582 = sbr.rel (%p580) target = $region28
        $region27: #{tpu_custom_call.1} parent=11 // pred_region
          _
        $region28: #{tpu_custom_call.1} parent=11 // pred_fallthru
          _
        // Predicated region
        $region29: #{tpu_custom_call.1} parent=11 // pred_check
          %p583 = pneg %p175
        $region30: #{tpu_custom_call.1} parent=11 // pred_check_branch
          %585 = sbr.rel (%p583) target = $region32
        $region31: #{tpu_custom_call.1} parent=11 // pred_region
          %s587 = ssub.s32 1024, 1024
          %588 = vsyncadd [#allocation9], %s587
          %s589 = sshll.u32 [#allocation8], 4
          %s590 = int_to_ptr.vmem [resolvable:$true] %s589
          %595 = dma.hbm_to_vmem [thread:$0]  %s5, 1024, %s590, [#allocation9], 64, 64, 4
        $region32: #{tpu_custom_call.1} parent=11 // pred_fallthru
          _
        // Predicated region
        $region33: #{tpu_custom_call.1} parent=11 // pred_check
          %p596 = pneg %p196
        $region34: #{tpu_custom_call.1} parent=11 // pred_check_branch
          %598 = sbr.rel (%p596) target = $region36
        $region35: #{tpu_custom_call.1} parent=11 // pred_region
          _
        $region36: #{tpu_custom_call.1} parent=11 // pred_fallthru
          _
        // Predicated region
        $region37: #{tpu_custom_call.1} parent=11 // pred_check
          %p599 = pneg %p217
        $region38: #{tpu_custom_call.1} parent=11 // pred_check_branch
          %601 = sbr.rel (%p599) target = $region40
        $region39: #{tpu_custom_call.1} parent=11 // pred_region
          %s603 = ssub.s32 1024, 1024
          %604 = vsyncadd [#allocation9], %s603
          %s605 = sshll.u32 [#allocation10], 4
          %s606 = int_to_ptr.vmem [resolvable:$true] %s605
          %611 = dma.hbm_to_vmem [thread:$0]  %s7, 1024, %s606, [#allocation9], 64, 64, 4
        $region40: #{tpu_custom_call.1} parent=11 // pred_fallthru
          _
        // Predicated region
        $region41: #{tpu_custom_call.1} parent=11 // pred_check
          %p612 = pneg %p238
        $region42: #{tpu_custom_call.1} parent=11 // pred_check_branch
          %614 = sbr.rel (%p612) target = $region44
        $region43: #{tpu_custom_call.1} parent=11 // pred_region
          _
        $region44: #{tpu_custom_call.1} parent=11 // pred_fallthru
          _
        // Predicated region
        $region45: #{tpu_custom_call.1} parent=11 // pred_check
          %p615 = pneg %p259
        $region46: #{tpu_custom_call.1} parent=11 // pred_check_branch
          %617 = sbr.rel (%p615) target = $region48
        $region47: #{tpu_custom_call.1} parent=11 // pred_region
          %s619 = ssub.s32 1024, 1024
          %620 = vsyncadd [#allocation12], %s619
          %s621 = sshll.u32 [#allocation11], 4
          %s622 = int_to_ptr.vmem [resolvable:$true] %s621
          %627 = dma.hbm_to_vmem [thread:$0]  %s9, 1024, %s622, [#allocation12], 64, 64, 4
        $region48: #{tpu_custom_call.1} parent=11 // pred_fallthru
          _
        // Predicated region
        $region49: #{tpu_custom_call.1} parent=11 // pred_check
          %p628 = pneg %p280
        $region50: #{tpu_custom_call.1} parent=11 // pred_check_branch
          %630 = sbr.rel (%p628) target = $region52
        $region51: #{tpu_custom_call.1} parent=11 // pred_region
          _
        $region52: #{tpu_custom_call.1} parent=11 // pred_fallthru
          _
        // Predicated region
        $region53: #{tpu_custom_call.1} parent=11 // pred_check
          %p631 = pneg %p301
        $region54: #{tpu_custom_call.1} parent=11 // pred_check_branch
          %633 = sbr.rel (%p631) target = $region56
        $region55: #{tpu_custom_call.1} parent=11 // pred_region
          %s635 = ssub.s32 1024, 1024
          %636 = vsyncadd [#allocation12], %s635
          %s637 = sshll.u32 [#allocation13], 4
          %s638 = int_to_ptr.vmem [resolvable:$true] %s637
          %643 = dma.hbm_to_vmem [thread:$0]  %s11, 1024, %s638, [#allocation12], 64, 64, 4
        $region56: #{tpu_custom_call.1} parent=11 // pred_fallthru
          _
        // Predicated region
        $region57: #{tpu_custom_call.1} parent=11 // pred_check
          %p644 = pneg %p322
        $region58: #{tpu_custom_call.1} parent=11 // pred_check_branch
          %646 = sbr.rel (%p644) target = $region60
        $region59: #{tpu_custom_call.1} parent=11 // pred_region
          _
        $region60: #{tpu_custom_call.1} parent=11 // pred_fallthru
          _
        // Predicated region
        $region61: #{tpu_custom_call.1} parent=11 // pred_check
          %p647 = pneg %p343
        $region62: #{tpu_custom_call.1} parent=11 // pred_check_branch
          %649 = sbr.rel (%p647) target = $region64
        $region63: #{tpu_custom_call.1} parent=11 // pred_region
          %s651 = ssub.s32 1024, 1024
          %652 = vsyncadd [#allocation15], %s651
          %s653 = sshll.u32 [#allocation14], 4
          %s654 = int_to_ptr.vmem [resolvable:$true] %s653
          %659 = dma.hbm_to_vmem [thread:$0]  %s13, 1024, %s654, [#allocation15], 64, 64, 4
        $region64: #{tpu_custom_call.1} parent=11 // pred_fallthru
          _
        // Predicated region
        $region65: #{tpu_custom_call.1} parent=11 // pred_check
          %p660 = pneg %p364
        $region66: #{tpu_custom_call.1} parent=11 // pred_check_branch
          %662 = sbr.rel (%p660) target = $region68
        $region67: #{tpu_custom_call.1} parent=11 // pred_region
          _
        $region68: #{tpu_custom_call.1} parent=11 // pred_fallthru
          _
        // Predicated region
        $region69: #{tpu_custom_call.1} parent=11 // pred_check
          %p663 = pneg %p385
        $region70: #{tpu_custom_call.1} parent=11 // pred_check_branch
          %665 = sbr.rel (%p663) target = $region72
        $region71: #{tpu_custom_call.1} parent=11 // pred_region
          %s667 = ssub.s32 1024, 1024
          %668 = vsyncadd [#allocation15], %s667
          %s669 = sshll.u32 [#allocation16], 4
          %s670 = int_to_ptr.vmem [resolvable:$true] %s669
          %675 = dma.hbm_to_vmem [thread:$0]  %s15, 1024, %s670, [#allocation15], 64, 64, 4
        $region72: #{tpu_custom_call.1} parent=11 // pred_fallthru
          _
        // Predicated region
        $region73: #{tpu_custom_call.1} parent=11 // pred_check
          %p676 = pneg %p406
        $region74: #{tpu_custom_call.1} parent=11 // pred_check_branch
          %678 = sbr.rel (%p676) target = $region76
        $region75: #{tpu_custom_call.1} parent=11 // pred_region
          _
        $region76: #{tpu_custom_call.1} parent=11 // pred_fallthru
          _
      $region12: #{tpu_custom_call.1} parent=5 // pred_fallthru
        _
      %p679 = scmp.lt.s32.totalorder %s44, 2
      // Predicated region
      $region77: #{tpu_custom_call.1} parent=5 // pred_check
        %p680 = pneg %p679
      $region78: #{tpu_custom_call.1} parent=5 // pred_check_branch
        %682 = sbr.rel (%p680) target = $region80
      $region79: #{tpu_custom_call.1} parent=5 // pred_region
        // Predicated region
        $region81: #{tpu_custom_call.1} parent=79 // pred_check
          %p683 = pneg %p64
        $region82: #{tpu_custom_call.1} parent=79 // pred_check_branch
          %685 = sbr.rel (%p683) target = $region84
        $region83: #{tpu_custom_call.1} parent=79 // pred_region
          %s686 = sand.u32 %s54, 1
          %s687 = scalar_lea.sflag [#allocation3], %s686
          %s688 = sand.u32 %s54, 1
          %s689 = smul.addr %s688, 4
          %s690 = scalar_lea.vmem [#allocation2], %s689
          %s692 = ssub.s32 64, 64
          %693 = vsyncadd %s687, %s692
          %s694 = smul.addr %s44, 64
          %s695 = scalar_lea.hbm %s0, %s694
          %s697 = sshll.u32 %s690, 4
          %s698 = int_to_ptr.vmem [resolvable:$true] %s697
          %700 = dma.hbm_to_vmem [thread:$0]  %s695, 64, %s698, %s687
        $region84: #{tpu_custom_call.1} parent=79 // pred_fallthru
          _
      $region80: #{tpu_custom_call.1} parent=5 // pred_fallthru
        _
      %p701 = scmp.le.s32.totalorder 1, %s44
      %p702 = scmp.lt.s32.totalorder %s44, 3
      %p703 = pnand %p701, %p702
      %p704 = pneg %p703
      // Predicated region
      $region85: #{tpu_custom_call.1} parent=5 // pred_check
        _
      $region86: #{tpu_custom_call.1} parent=5 // pred_check_branch
        %706 = sbr.rel (%p703) target = $region88
      $region87: #{tpu_custom_call.1} parent=5 // pred_region
        %s707 = ssub.s32 %s44, 1
        %s708 = sand.u32 %s57, 1
        %s709 = scalar_lea.sflag [#allocation3], %s708
        %s710 = sand.u32 %s57, 1
        %s711 = smul.addr %s710, 4
        %s712 = scalar_lea.vmem [#allocation2], %s711
        // Predicated region
        $region89: #{tpu_custom_call.1} parent=87 // pred_check
          %p713 = pneg %p70
        $region90: #{tpu_custom_call.1} parent=87 // pred_check_branch
          %715 = sbr.rel (%p713) target = $region92
        $region91: #{tpu_custom_call.1} parent=87 // pred_region
          %716 = dma.done %s709, 64
        $region92: #{tpu_custom_call.1} parent=87 // pred_fallthru
          _
        // Predicated region
        $region93: #{tpu_custom_call.1} parent=87 // pred_check
          %p717 = pneg %p91
        $region94: #{tpu_custom_call.1} parent=87 // pred_check_branch
          %719 = sbr.rel (%p717) target = $region96
        $region95: #{tpu_custom_call.1} parent=87 // pred_region
          %720 = dma.done [#allocation6], 1024
        $region96: #{tpu_custom_call.1} parent=87 // pred_fallthru
          _
        // Predicated region
        $region97: #{tpu_custom_call.1} parent=87 // pred_check
          %p721 = pneg %p133
        $region98: #{tpu_custom_call.1} parent=87 // pred_check_branch
          %723 = sbr.rel (%p721) target = $region100
        $region99: #{tpu_custom_call.1} parent=87 // pred_region
          %724 = dma.done [#allocation6], 1024
        $region100: #{tpu_custom_call.1} parent=87 // pred_fallthru
          _
        // Predicated region
        $region101: #{tpu_custom_call.1} parent=87 // pred_check
          %p725 = pneg %p175
        $region102: #{tpu_custom_call.1} parent=87 // pred_check_branch
          %727 = sbr.rel (%p725) target = $region104
        $region103: #{tpu_custom_call.1} parent=87 // pred_region
          %728 = dma.done [#allocation9], 1024
        $region104: #{tpu_custom_call.1} parent=87 // pred_fallthru
          _
        // Predicated region
        $region105: #{tpu_custom_call.1} parent=87 // pred_check
          %p729 = pneg %p217
        $region106: #{tpu_custom_call.1} parent=87 // pred_check_branch
          %731 = sbr.rel (%p729) target = $region108
        $region107: #{tpu_custom_call.1} parent=87 // pred_region
          %732 = dma.done [#allocation9], 1024
        $region108: #{tpu_custom_call.1} parent=87 // pred_fallthru
          _
        // Predicated region
        $region109: #{tpu_custom_call.1} parent=87 // pred_check
          %p733 = pneg %p259
        $region110: #{tpu_custom_call.1} parent=87 // pred_check_branch
          %735 = sbr.rel (%p733) target = $region112
        $region111: #{tpu_custom_call.1} parent=87 // pred_region
          %736 = dma.done [#allocation12], 1024
        $region112: #{tpu_custom_call.1} parent=87 // pred_fallthru
          _
        // Predicated region
        $region113: #{tpu_custom_call.1} parent=87 // pred_check
          %p737 = pneg %p301
        $region114: #{tpu_custom_call.1} parent=87 // pred_check_branch
          %739 = sbr.rel (%p737) target = $region116
        $region115: #{tpu_custom_call.1} parent=87 // pred_region
          %740 = dma.done [#allocation12], 1024
        $region116: #{tpu_custom_call.1} parent=87 // pred_fallthru
          _
        // Predicated region
        $region117: #{tpu_custom_call.1} parent=87 // pred_check
          %p741 = pneg %p343
        $region118: #{tpu_custom_call.1} parent=87 // pred_check_branch
          %743 = sbr.rel (%p741) target = $region120
        $region119: #{tpu_custom_call.1} parent=87 // pred_region
          %744 = dma.done [#allocation15], 1024
        $region120: #{tpu_custom_call.1} parent=87 // pred_fallthru
          _
        // Predicated region
        $region121: #{tpu_custom_call.1} parent=87 // pred_check
          %p745 = pneg %p385
        $region122: #{tpu_custom_call.1} parent=87 // pred_check_branch
          %747 = sbr.rel (%p745) target = $region124
        $region123: #{tpu_custom_call.1} parent=87 // pred_region
          %748 = dma.done [#allocation15], 1024
        $region124: #{tpu_custom_call.1} parent=87 // pred_fallthru
          _
        %s749 = sand.u32 %s57, 1
        %s750 = scalar_lea.sflag [#allocation3], %s749
        %s751 = sand.u32 %s57, 1
        %s752 = smul.addr %s751, 4
        %s753 = scalar_lea.vmem [#allocation2], %s752
        %p754 = pneg %p70
        %p755 = pneg %p67
        %p756 = pneg %p91
        %p757 = pneg %p88
        %p758 = pneg %p112
        %p759 = pneg %p109
        %p760 = pneg %p133
        %p761 = pneg %p130
        %p762 = pneg %p154
        %p763 = pneg %p151
        %p764 = pneg %p175
        %p765 = pneg %p172
        %p766 = pneg %p196
        %p767 = pneg %p193
        %p768 = pneg %p217
        %p769 = pneg %p214
        %p770 = pneg %p238
        %p771 = pneg %p235
        %p772 = pneg %p259
        %p773 = pneg %p256
        %p774 = pneg %p280
        %p775 = pneg %p277
        %p776 = pneg %p301
        %p777 = pneg %p298
        %p778 = pneg %p322
        %p779 = pneg %p319
        %p780 = pneg %p343
        %p781 = pneg %p340
        %p782 = pneg %p364
        %p783 = pneg %p361
        %p784 = pneg %p385
        %p785 = pneg %p382
        %p786 = pneg %p406
        %p787 = pneg %p403
        %p788 = pneg %p432
        %p789 = pneg %p429
        %s790 = sand.u32 %s419, 1
        %s791 = scalar_lea.sflag [#allocation4], %s790
        %s792 = sand.u32 %s419, 1
        %s793 = smul.addr %s792, 8
        %s794 = scalar_lea.vmem [#allocation17], %s793
        %p795 = pneg %p458
        %p796 = pneg %p455
        %s797 = sand.u32 %s49, 1
        %s798 = scalar_lea.sflag [#allocation19], %s797
        %s799 = sand.u32 %s445, 1
        %s800 = smul.addr %s799, 8
        %s801 = scalar_lea.vmem [#allocation18], %s800
        %p802 = pneg %p484
        %p803 = pneg %p481
        %s804 = sand.u32 %s49, 1
        %s805 = scalar_lea.sflag [#allocation19], %s804
        %s806 = sand.u32 %s471, 1
        %s807 = smul.addr %s806, 8
        %s808 = scalar_lea.vmem [#allocation20], %s807
        %p809 = pneg %p510
        %p810 = pneg %p507
        %s811 = sand.u32 %s49, 1
        %s812 = scalar_lea.sflag [#allocation22], %s811
        %s813 = sand.u32 %s497, 1
        %s814 = smul.addr %s813, 8
        %s815 = scalar_lea.vmem [#allocation21], %s814
        %p816 = pneg %p536
        %p817 = pneg %p533
        %s818 = sand.u32 %s49, 1
        %s819 = scalar_lea.sflag [#allocation22], %s818
        %s820 = sand.u32 %s523, 1
        %s821 = smul.addr %s820, 8
        %s822 = scalar_lea.vmem [#allocation23], %s821
        %v824 = vld [vmem:[%s712] sm:$0xf]
        %v825 = vld [vmem:[#allocation5] sm:$0xf]
        %v826 = vld [vmem:[#allocation5 + $0x4] sm:$0xf]
        %v827 = vld [vmem:[#allocation5 + $0x8] sm:$0xf]
        %v828 = vld [vmem:[#allocation5 + $0xc] sm:$0xf]
        %v829 = vld [vmem:[#allocation5 + $0x10] sm:$0xf]
        %v830 = vld [vmem:[#allocation5 + $0x14] sm:$0xf]
        %v831 = vld [vmem:[#allocation5 + $0x18] sm:$0xf]
        %v832 = vld [vmem:[#allocation5 + $0x1c] sm:$0xf]
        %v833 = vld [vmem:[#allocation5 + $0x20] sm:$0xf]
        %v834 = vld [vmem:[#allocation5 + $0x24] sm:$0xf]
        %v835 = vld [vmem:[#allocation5 + $0x28] sm:$0xf]
        %v836 = vld [vmem:[#allocation5 + $0x2c] sm:$0xf]
        %v837 = vld [vmem:[#allocation5 + $0x30] sm:$0xf]
        %v838 = vld [vmem:[#allocation5 + $0x34] sm:$0xf]
        %v839 = vld [vmem:[#allocation5 + $0x38] sm:$0xf]
        %v840 = vld [vmem:[#allocation5 + $0x3c] sm:$0xf]
        %v841 = vld [vmem:[%s2] sm:$0x1]
        %v843 = vlaneseq
        %v844 = vshrl.u32 %v843, 7
        %v845 = vsub.s32 0, %v844
        %v846 = vrot.slane %v841, %v845
        %v864 = vunpack.c.l.b16 %v825
        %v865 = vunpack.c.l.b16 %v826
        %v866 = vunpack.c.l.b16 %v827
        %v867 = vunpack.c.l.b16 %v828
        %v868 = vunpack.c.l.b16 %v829
        %v869 = vunpack.c.l.b16 %v830
        %v870 = vunpack.c.l.b16 %v831
        %v871 = vunpack.c.l.b16 %v832
        %v872 = vunpack.c.l.b16 %v833
        %v873 = vunpack.c.l.b16 %v834
        %v874 = vunpack.c.l.b16 %v835
        %v875 = vunpack.c.l.b16 %v836
        %v876 = vunpack.c.l.b16 %v837
        %v877 = vunpack.c.l.b16 %v838
        %v878 = vunpack.c.l.b16 %v839
        %v879 = vunpack.c.l.b16 %v840
        %v880 = vpack.c.b16 %v865, %v864
        %v881 = vpack.c.b16 %v867, %v866
        %v882 = vpack.c.b16 %v869, %v868
        %v883 = vpack.c.b16 %v871, %v870
        %v884 = vpack.c.b16 %v873, %v872
        %v885 = vpack.c.b16 %v875, %v874
        %v886 = vpack.c.b16 %v877, %v876
        %v887 = vpack.c.b16 %v879, %v878
        %896 = vmatprep.subr.bf16.mxu0 0
        %897 = vmatpush1.bf16.msra.mxu0 %v880
        %898 = vmatprep.subr.bf16.mxu0 0
        %899 = vmatpush1.bf16.msra.mxu0 %v881
        %900 = vmatprep.subr.bf16.mxu0 0
        %901 = vmatpush1.bf16.msra.mxu0 %v882
        %902 = vmatprep.subr.bf16.mxu0 0
        %903 = vmatpush1.bf16.msra.mxu0 %v883
        %904 = vmatprep.subr.bf16.mxu0 0
        %905 = vmatpush1.bf16.msra.mxu0 %v884
        %906 = vmatprep.subr.bf16.mxu0 0
        %907 = vmatpush1.bf16.msra.mxu0 %v885
        %908 = vmatprep.subr.bf16.mxu0 0
        %909 = vmatpush1.bf16.msra.mxu0 %v886
        %910 = vmatprep.subr.bf16.mxu0 0
        %911 = vmatpush1.bf16.msra.mxu0 %v887
        %912 = vmatprep.subr.bf16.mxu0 0
        %913 = vmatpush1.bf16.msra.mxu0 0
        %914 = vmatprep.subr.bf16.mxu0 0
        %915 = vmatpush1.bf16.msra.mxu0 0
        %916 = vmatprep.subr.bf16.mxu0 0
        %917 = vmatpush1.bf16.msra.mxu0 0
        %918 = vmatprep.subr.bf16.mxu0 0
        %919 = vmatpush1.bf16.msra.mxu0 0
        %920 = vmatprep.subr.bf16.mxu0 0
        %921 = vmatpush1.bf16.msra.mxu0 0
        %922 = vmatprep.subr.bf16.mxu0 0
        %923 = vmatpush1.bf16.msra.mxu0 0
        %924 = vmatprep.subr.bf16.mxu0 0
        %925 = vmatpush1.bf16.msra.mxu0 0
        %926 = vmatprep.subr.bf16.mxu0 0
        %927 = vmatpush1.bf16.msra.mxu0 0
        %928 = vmatprep.mubr.bf16.mxu0 0
        %929 = vmatmul.mubr.bf16.gmra.mrb[0].mxu0 %v824
        %v930 = vpop.f32.mrb[0].mxu0
        %v931 = vadd.f32 %v846, %v930
        %v932 = vpop.f32.mrb[0].mxu0
        %v933 = vpop.f32.mrb[0].mxu0
        %v934 = vpop.f32.mrb[0].mxu0
        %935 = vdwg.mxu0
        %v936 = vmax.f32 %v931, 0.0
        %v937 = vpack.c.bf16 %v936, %v936
        %v938 = vld [vmem:[#allocation7] sm:$0xf]
        %v939 = vld [vmem:[#allocation7 + $0x4] sm:$0xf]
        %v940 = vld [vmem:[#allocation7 + $0x8] sm:$0xf]
        %v941 = vld [vmem:[#allocation7 + $0xc] sm:$0xf]
        %v942 = vld [vmem:[#allocation7 + $0x10] sm:$0xf]
        %v943 = vld [vmem:[#allocation7 + $0x14] sm:$0xf]
        %v944 = vld [vmem:[#allocation7 + $0x18] sm:$0xf]
        %v945 = vld [vmem:[#allocation7 + $0x1c] sm:$0xf]
        %v946 = vld [vmem:[#allocation7 + $0x20] sm:$0xf]
        %v947 = vld [vmem:[#allocation7 + $0x24] sm:$0xf]
        %v948 = vld [vmem:[#allocation7 + $0x28] sm:$0xf]
        %v949 = vld [vmem:[#allocation7 + $0x2c] sm:$0xf]
        %v950 = vld [vmem:[#allocation7 + $0x30] sm:$0xf]
        %v951 = vld [vmem:[#allocation7 + $0x34] sm:$0xf]
        %v952 = vld [vmem:[#allocation7 + $0x38] sm:$0xf]
        %v953 = vld [vmem:[#allocation7 + $0x3c] sm:$0xf]
        %v954 = vld [vmem:[%s4] sm:$0x1]
        %v956 = vlaneseq
        %v957 = vshrl.u32 %v956, 7
        %v958 = vsub.s32 0, %v957
        %v959 = vrot.slane %v954, %v958
        %v977 = vunpack.c.l.b16 %v938
        %v978 = vunpack.c.l.b16 %v939
        %v979 = vunpack.c.l.b16 %v940
        %v980 = vunpack.c.l.b16 %v941
        %v981 = vunpack.c.l.b16 %v942
        %v982 = vunpack.c.l.b16 %v943
        %v983 = vunpack.c.l.b16 %v944
        %v984 = vunpack.c.l.b16 %v945
        %v985 = vunpack.c.l.b16 %v946
        %v986 = vunpack.c.l.b16 %v947
        %v987 = vunpack.c.l.b16 %v948
        %v988 = vunpack.c.l.b16 %v949
        %v989 = vunpack.c.l.b16 %v950
        %v990 = vunpack.c.l.b16 %v951
        %v991 = vunpack.c.l.b16 %v952
        %v992 = vunpack.c.l.b16 %v953
        %v993 = vpack.c.b16 %v978, %v977
        %v994 = vpack.c.b16 %v980, %v979
        %v995 = vpack.c.b16 %v982, %v981
        %v996 = vpack.c.b16 %v984, %v983
        %v997 = vpack.c.b16 %v986, %v985
        %v998 = vpack.c.b16 %v988, %v987
        %v999 = vpack.c.b16 %v990, %v989
        %v1000 = vpack.c.b16 %v992, %v991
        %1009 = vmatprep.subr.bf16.mxu0 0
        %1010 = vmatpush1.bf16.msra.mxu0 %v993
        %1011 = vmatprep.subr.bf16.mxu0 0
        %1012 = vmatpush1.bf16.msra.mxu0 %v994
        %1013 = vmatprep.subr.bf16.mxu0 0
        %1014 = vmatpush1.bf16.msra.mxu0 %v995
        %1015 = vmatprep.subr.bf16.mxu0 0
        %1016 = vmatpush1.bf16.msra.mxu0 %v996
        %1017 = vmatprep.subr.bf16.mxu0 0
        %1018 = vmatpush1.bf16.msra.mxu0 %v997
        %1019 = vmatprep.subr.bf16.mxu0 0
        %1020 = vmatpush1.bf16.msra.mxu0 %v998
        %1021 = vmatprep.subr.bf16.mxu0 0
        %1022 = vmatpush1.bf16.msra.mxu0 %v999
        %1023 = vmatprep.subr.bf16.mxu0 0
        %1024 = vmatpush1.bf16.msra.mxu0 %v1000
        %1025 = vmatprep.subr.bf16.mxu0 0
        %1026 = vmatpush1.bf16.msra.mxu0 0
        %1027 = vmatprep.subr.bf16.mxu0 0
        %1028 = vmatpush1.bf16.msra.mxu0 0
        %1029 = vmatprep.subr.bf16.mxu0 0
        %1030 = vmatpush1.bf16.msra.mxu0 0
        %1031 = vmatprep.subr.bf16.mxu0 0
        %1032 = vmatpush1.bf16.msra.mxu0 0
        %1033 = vmatprep.subr.bf16.mxu0 0
        %1034 = vmatpush1.bf16.msra.mxu0 0
        %1035 = vmatprep.subr.bf16.mxu0 0
        %1036 = vmatpush1.bf16.msra.mxu0 0
        %1037 = vmatprep.subr.bf16.mxu0 0
        %1038 = vmatpush1.bf16.msra.mxu0 0
        %1039 = vmatprep.subr.bf16.mxu0 0
        %1040 = vmatpush1.bf16.msra.mxu0 0
        %1041 = vmatprep.mubr.bf16.mxu0 0
        %1042 = vmatmul.mubr.bf16.gmra.mrb[0].mxu0 %v937
        %v1043 = vpop.f32.mrb[0].mxu0
        %v1044 = vadd.f32 %v959, %v1043
        %v1045 = vpop.f32.mrb[0].mxu0
        %v1046 = vpop.f32.mrb[0].mxu0
        %v1047 = vpop.f32.mrb[0].mxu0
        %1048 = vdwg.mxu0
        %v1049 = vmax.f32 %v1044, 0.0
        %v1050 = vpack.c.bf16 %v1049, %v1049
        %v1051 = vld [vmem:[#allocation8] sm:$0xf]
        %v1052 = vld [vmem:[#allocation8 + $0x4] sm:$0xf]
        %v1053 = vld [vmem:[#allocation8 + $0x8] sm:$0xf]
        %v1054 = vld [vmem:[#allocation8 + $0xc] sm:$0xf]
        %v1055 = vld [vmem:[#allocation8 + $0x10] sm:$0xf]
        %v1056 = vld [vmem:[#allocation8 + $0x14] sm:$0xf]
        %v1057 = vld [vmem:[#allocation8 + $0x18] sm:$0xf]
        %v1058 = vld [vmem:[#allocation8 + $0x1c] sm:$0xf]
        %v1059 = vld [vmem:[#allocation8 + $0x20] sm:$0xf]
        %v1060 = vld [vmem:[#allocation8 + $0x24] sm:$0xf]
        %v1061 = vld [vmem:[#allocation8 + $0x28] sm:$0xf]
        %v1062 = vld [vmem:[#allocation8 + $0x2c] sm:$0xf]
        %v1063 = vld [vmem:[#allocation8 + $0x30] sm:$0xf]
        %v1064 = vld [vmem:[#allocation8 + $0x34] sm:$0xf]
        %v1065 = vld [vmem:[#allocation8 + $0x38] sm:$0xf]
        %v1066 = vld [vmem:[#allocation8 + $0x3c] sm:$0xf]
        %v1067 = vld [vmem:[%s6] sm:$0x1]
        %v1069 = vlaneseq
        %v1070 = vshrl.u32 %v1069, 7
        %v1071 = vsub.s32 0, %v1070
        %v1072 = vrot.slane %v1067, %v1071
        %v1090 = vunpack.c.l.b16 %v1051
        %v1091 = vunpack.c.l.b16 %v1052
        %v1092 = vunpack.c.l.b16 %v1053
        %v1093 = vunpack.c.l.b16 %v1054
        %v1094 = vunpack.c.l.b16 %v1055
        %v1095 = vunpack.c.l.b16 %v1056
        %v1096 = vunpack.c.l.b16 %v1057
        %v1097 = vunpack.c.l.b16 %v1058
        %v1098 = vunpack.c.l.b16 %v1059
        %v1099 = vunpack.c.l.b16 %v1060
        %v1100 = vunpack.c.l.b16 %v1061
        %v1101 = vunpack.c.l.b16 %v1062
        %v1102 = vunpack.c.l.b16 %v1063
        %v1103 = vunpack.c.l.b16 %v1064
        %v1104 = vunpack.c.l.b16 %v1065
        %v1105 = vunpack.c.l.b16 %v1066
        %v1106 = vpack.c.b16 %v1091, %v1090
        %v1107 = vpack.c.b16 %v1093, %v1092
        %v1108 = vpack.c.b16 %v1095, %v1094
        %v1109 = vpack.c.b16 %v1097, %v1096
        %v1110 = vpack.c.b16 %v1099, %v1098
        %v1111 = vpack.c.b16 %v1101, %v1100
        %v1112 = vpack.c.b16 %v1103, %v1102
        %v1113 = vpack.c.b16 %v1105, %v1104
        %1122 = vmatprep.subr.bf16.mxu0 0
        %1123 = vmatpush1.bf16.msra.mxu0 %v1106
        %1124 = vmatprep.subr.bf16.mxu0 0
        %1125 = vmatpush1.bf16.msra.mxu0 %v1107
        %1126 = vmatprep.subr.bf16.mxu0 0
        %1127 = vmatpush1.bf16.msra.mxu0 %v1108
        %1128 = vmatprep.subr.bf16.mxu0 0
        %1129 = vmatpush1.bf16.msra.mxu0 %v1109
        %1130 = vmatprep.subr.bf16.mxu0 0
        %1131 = vmatpush1.bf16.msra.mxu0 %v1110
        %1132 = vmatprep.subr.bf16.mxu0 0
        %1133 = vmatpush1.bf16.msra.mxu0 %v1111
        %1134 = vmatprep.subr.bf16.mxu0 0
        %1135 = vmatpush1.bf16.msra.mxu0 %v1112
        %1136 = vmatprep.subr.bf16.mxu0 0
        %1137 = vmatpush1.bf16.msra.mxu0 %v1113
        %1138 = vmatprep.subr.bf16.mxu0 0
        %1139 = vmatpush1.bf16.msra.mxu0 0
        %1140 = vmatprep.subr.bf16.mxu0 0
        %1141 = vmatpush1.bf16.msra.mxu0 0
        %1142 = vmatprep.subr.bf16.mxu0 0
        %1143 = vmatpush1.bf16.msra.mxu0 0
        %1144 = vmatprep.subr.bf16.mxu0 0
        %1145 = vmatpush1.bf16.msra.mxu0 0
        %1146 = vmatprep.subr.bf16.mxu0 0
        %1147 = vmatpush1.bf16.msra.mxu0 0
        %1148 = vmatprep.subr.bf16.mxu0 0
        %1149 = vmatpush1.bf16.msra.mxu0 0
        %1150 = vmatprep.subr.bf16.mxu0 0
        %1151 = vmatpush1.bf16.msra.mxu0 0
        %1152 = vmatprep.subr.bf16.mxu0 0
        %1153 = vmatpush1.bf16.msra.mxu0 0
        %1154 = vmatprep.mubr.bf16.mxu0 0
        %1155 = vmatmul.mubr.bf16.gmra.mrb[0].mxu0 %v1050
        %v1156 = vpop.f32.mrb[0].mxu0
        %v1157 = vadd.f32 %v1072, %v1156
        %v1158 = vpop.f32.mrb[0].mxu0
        %v1159 = vpop.f32.mrb[0].mxu0
        %v1160 = vpop.f32.mrb[0].mxu0
        %1161 = vdwg.mxu0
        %v1162 = vmax.f32 %v1157, 0.0
        %v1163 = vpack.c.bf16 %v1162, %v1162
        %v1164 = vld [vmem:[#allocation10] sm:$0xf]
        %v1165 = vld [vmem:[#allocation10 + $0x4] sm:$0xf]
        %v1166 = vld [vmem:[#allocation10 + $0x8] sm:$0xf]
        %v1167 = vld [vmem:[#allocation10 + $0xc] sm:$0xf]
        %v1168 = vld [vmem:[#allocation10 + $0x10] sm:$0xf]
        %v1169 = vld [vmem:[#allocation10 + $0x14] sm:$0xf]
        %v1170 = vld [vmem:[#allocation10 + $0x18] sm:$0xf]
        %v1171 = vld [vmem:[#allocation10 + $0x1c] sm:$0xf]
        %v1172 = vld [vmem:[#allocation10 + $0x20] sm:$0xf]
        %v1173 = vld [vmem:[#allocation10 + $0x24] sm:$0xf]
        %v1174 = vld [vmem:[#allocation10 + $0x28] sm:$0xf]
        %v1175 = vld [vmem:[#allocation10 + $0x2c] sm:$0xf]
        %v1176 = vld [vmem:[#allocation10 + $0x30] sm:$0xf]
        %v1177 = vld [vmem:[#allocation10 + $0x34] sm:$0xf]
        %v1178 = vld [vmem:[#allocation10 + $0x38] sm:$0xf]
        %v1179 = vld [vmem:[#allocation10 + $0x3c] sm:$0xf]
        %v1180 = vld [vmem:[%s8] sm:$0x1]
        %v1182 = vlaneseq
        %v1183 = vshrl.u32 %v1182, 7
        %v1184 = vsub.s32 0, %v1183
        %v1185 = vrot.slane %v1180, %v1184
        %v1203 = vunpack.c.l.b16 %v1164
        %v1204 = vunpack.c.l.b16 %v1165
        %v1205 = vunpack.c.l.b16 %v1166
        %v1206 = vunpack.c.l.b16 %v1167
        %v1207 = vunpack.c.l.b16 %v1168
        %v1208 = vunpack.c.l.b16 %v1169
        %v1209 = vunpack.c.l.b16 %v1170
        %v1210 = vunpack.c.l.b16 %v1171
        %v1211 = vunpack.c.l.b16 %v1172
        %v1212 = vunpack.c.l.b16 %v1173
        %v1213 = vunpack.c.l.b16 %v1174
        %v1214 = vunpack.c.l.b16 %v1175
        %v1215 = vunpack.c.l.b16 %v1176
        %v1216 = vunpack.c.l.b16 %v1177
        %v1217 = vunpack.c.l.b16 %v1178
        %v1218 = vunpack.c.l.b16 %v1179
        %v1219 = vpack.c.b16 %v1204, %v1203
        %v1220 = vpack.c.b16 %v1206, %v1205
        %v1221 = vpack.c.b16 %v1208, %v1207
        %v1222 = vpack.c.b16 %v1210, %v1209
        %v1223 = vpack.c.b16 %v1212, %v1211
        %v1224 = vpack.c.b16 %v1214, %v1213
        %v1225 = vpack.c.b16 %v1216, %v1215
        %v1226 = vpack.c.b16 %v1218, %v1217
        %1235 = vmatprep.subr.bf16.mxu0 0
        %1236 = vmatpush1.bf16.msra.mxu0 %v1219
        %1237 = vmatprep.subr.bf16.mxu0 0
        %1238 = vmatpush1.bf16.msra.mxu0 %v1220
        %1239 = vmatprep.subr.bf16.mxu0 0
        %1240 = vmatpush1.bf16.msra.mxu0 %v1221
        %1241 = vmatprep.subr.bf16.mxu0 0
        %1242 = vmatpush1.bf16.msra.mxu0 %v1222
        %1243 = vmatprep.subr.bf16.mxu0 0
        %1244 = vmatpush1.bf16.msra.mxu0 %v1223
        %1245 = vmatprep.subr.bf16.mxu0 0
        %1246 = vmatpush1.bf16.msra.mxu0 %v1224
        %1247 = vmatprep.subr.bf16.mxu0 0
        %1248 = vmatpush1.bf16.msra.mxu0 %v1225
        %1249 = vmatprep.subr.bf16.mxu0 0
        %1250 = vmatpush1.bf16.msra.mxu0 %v1226
        %1251 = vmatprep.subr.bf16.mxu0 0
        %1252 = vmatpush1.bf16.msra.mxu0 0
        %1253 = vmatprep.subr.bf16.mxu0 0
        %1254 = vmatpush1.bf16.msra.mxu0 0
        %1255 = vmatprep.subr.bf16.mxu0 0
        %1256 = vmatpush1.bf16.msra.mxu0 0
        %1257 = vmatprep.subr.bf16.mxu0 0
        %1258 = vmatpush1.bf16.msra.mxu0 0
        %1259 = vmatprep.subr.bf16.mxu0 0
        %1260 = vmatpush1.bf16.msra.mxu0 0
        %1261 = vmatprep.subr.bf16.mxu0 0
        %1262 = vmatpush1.bf16.msra.mxu0 0
        %1263 = vmatprep.subr.bf16.mxu0 0
        %1264 = vmatpush1.bf16.msra.mxu0 0
        %1265 = vmatprep.subr.bf16.mxu0 0
        %1266 = vmatpush1.bf16.msra.mxu0 0
        %1267 = vmatprep.mubr.bf16.mxu0 0
        %1268 = vmatmul.mubr.bf16.gmra.mrb[0].mxu0 %v1163
        %v1269 = vpop.f32.mrb[0].mxu0
        %v1270 = vadd.f32 %v1185, %v1269
        %v1271 = vpop.f32.mrb[0].mxu0
        %v1272 = vpop.f32.mrb[0].mxu0
        %v1273 = vpop.f32.mrb[0].mxu0
        %1274 = vdwg.mxu0
        %v1275 = vpack.c.bf16 %v1270, %v1270
        %v1276 = vld [vmem:[#allocation11] sm:$0xf]
        %v1277 = vld [vmem:[#allocation11 + $0x4] sm:$0xf]
        %v1278 = vld [vmem:[#allocation11 + $0x8] sm:$0xf]
        %v1279 = vld [vmem:[#allocation11 + $0xc] sm:$0xf]
        %v1280 = vld [vmem:[#allocation11 + $0x10] sm:$0xf]
        %v1281 = vld [vmem:[#allocation11 + $0x14] sm:$0xf]
        %v1282 = vld [vmem:[#allocation11 + $0x18] sm:$0xf]
        %v1283 = vld [vmem:[#allocation11 + $0x1c] sm:$0xf]
        %v1284 = vld [vmem:[#allocation11 + $0x20] sm:$0xf]
        %v1285 = vld [vmem:[#allocation11 + $0x24] sm:$0xf]
        %v1286 = vld [vmem:[#allocation11 + $0x28] sm:$0xf]
        %v1287 = vld [vmem:[#allocation11 + $0x2c] sm:$0xf]
        %v1288 = vld [vmem:[#allocation11 + $0x30] sm:$0xf]
        %v1289 = vld [vmem:[#allocation11 + $0x34] sm:$0xf]
        %v1290 = vld [vmem:[#allocation11 + $0x38] sm:$0xf]
        %v1291 = vld [vmem:[#allocation11 + $0x3c] sm:$0xf]
        %v1292 = vld [vmem:[%s10] sm:$0x1]
        %v1294 = vlaneseq
        %v1295 = vshrl.u32 %v1294, 7
        %v1296 = vsub.s32 0, %v1295
        %v1297 = vrot.slane %v1292, %v1296
        %v1315 = vunpack.c.l.b16 %v1276
        %v1316 = vunpack.c.l.b16 %v1277
        %v1317 = vunpack.c.l.b16 %v1278
        %v1318 = vunpack.c.l.b16 %v1279
        %v1319 = vunpack.c.l.b16 %v1280
        %v1320 = vunpack.c.l.b16 %v1281
        %v1321 = vunpack.c.l.b16 %v1282
        %v1322 = vunpack.c.l.b16 %v1283
        %v1323 = vunpack.c.l.b16 %v1284
        %v1324 = vunpack.c.l.b16 %v1285
        %v1325 = vunpack.c.l.b16 %v1286
        %v1326 = vunpack.c.l.b16 %v1287
        %v1327 = vunpack.c.l.b16 %v1288
        %v1328 = vunpack.c.l.b16 %v1289
        %v1329 = vunpack.c.l.b16 %v1290
        %v1330 = vunpack.c.l.b16 %v1291
        %v1331 = vpack.c.b16 %v1316, %v1315
        %v1332 = vpack.c.b16 %v1318, %v1317
        %v1333 = vpack.c.b16 %v1320, %v1319
        %v1334 = vpack.c.b16 %v1322, %v1321
        %v1335 = vpack.c.b16 %v1324, %v1323
        %v1336 = vpack.c.b16 %v1326, %v1325
        %v1337 = vpack.c.b16 %v1328, %v1327
        %v1338 = vpack.c.b16 %v1330, %v1329
        %1347 = vmatprep.subr.bf16.mxu0 0
        %1348 = vmatpush1.bf16.msra.mxu0 %v1331
        %1349 = vmatprep.subr.bf16.mxu0 0
        %1350 = vmatpush1.bf16.msra.mxu0 %v1332
        %1351 = vmatprep.subr.bf16.mxu0 0
        %1352 = vmatpush1.bf16.msra.mxu0 %v1333
        %1353 = vmatprep.subr.bf16.mxu0 0
        %1354 = vmatpush1.bf16.msra.mxu0 %v1334
        %1355 = vmatprep.subr.bf16.mxu0 0
        %1356 = vmatpush1.bf16.msra.mxu0 %v1335
        %1357 = vmatprep.subr.bf16.mxu0 0
        %1358 = vmatpush1.bf16.msra.mxu0 %v1336
        %1359 = vmatprep.subr.bf16.mxu0 0
        %1360 = vmatpush1.bf16.msra.mxu0 %v1337
        %1361 = vmatprep.subr.bf16.mxu0 0
        %1362 = vmatpush1.bf16.msra.mxu0 %v1338
        %1363 = vmatprep.subr.bf16.mxu0 0
        %1364 = vmatpush1.bf16.msra.mxu0 0
        %1365 = vmatprep.subr.bf16.mxu0 0
        %1366 = vmatpush1.bf16.msra.mxu0 0
        %1367 = vmatprep.subr.bf16.mxu0 0
        %1368 = vmatpush1.bf16.msra.mxu0 0
        %1369 = vmatprep.subr.bf16.mxu0 0
        %1370 = vmatpush1.bf16.msra.mxu0 0
        %1371 = vmatprep.subr.bf16.mxu0 0
        %1372 = vmatpush1.bf16.msra.mxu0 0
        %1373 = vmatprep.subr.bf16.mxu0 0
        %1374 = vmatpush1.bf16.msra.mxu0 0
        %1375 = vmatprep.subr.bf16.mxu0 0
        %1376 = vmatpush1.bf16.msra.mxu0 0
        %1377 = vmatprep.subr.bf16.mxu0 0
        %1378 = vmatpush1.bf16.msra.mxu0 0
        %1379 = vmatprep.mubr.bf16.mxu0 0
        %1380 = vmatmul.mubr.bf16.gmra.mrb[0].mxu0 %v1275
        %v1381 = vpop.f32.mrb[0].mxu0
        %v1382 = vadd.f32 %v1297, %v1381
        %v1383 = vpop.f32.mrb[0].mxu0
        %v1384 = vpop.f32.mrb[0].mxu0
        %v1385 = vpop.f32.mrb[0].mxu0
        %1386 = vdwg.mxu0
        %v1387 = vmax.f32 %v1382, 0.0
        %v1388 = vpack.c.bf16 %v1387, %v1387
        %v1389 = vld [vmem:[#allocation13] sm:$0xf]
        %v1390 = vld [vmem:[#allocation13 + $0x4] sm:$0xf]
        %v1391 = vld [vmem:[#allocation13 + $0x8] sm:$0xf]
        %v1392 = vld [vmem:[#allocation13 + $0xc] sm:$0xf]
        %v1393 = vld [vmem:[#allocation13 + $0x10] sm:$0xf]
        %v1394 = vld [vmem:[#allocation13 + $0x14] sm:$0xf]
        %v1395 = vld [vmem:[#allocation13 + $0x18] sm:$0xf]
        %v1396 = vld [vmem:[#allocation13 + $0x1c] sm:$0xf]
        %v1397 = vld [vmem:[#allocation13 + $0x20] sm:$0xf]
        %v1398 = vld [vmem:[#allocation13 + $0x24] sm:$0xf]
        %v1399 = vld [vmem:[#allocation13 + $0x28] sm:$0xf]
        %v1400 = vld [vmem:[#allocation13 + $0x2c] sm:$0xf]
        %v1401 = vld [vmem:[#allocation13 + $0x30] sm:$0xf]
        %v1402 = vld [vmem:[#allocation13 + $0x34] sm:$0xf]
        %v1403 = vld [vmem:[#allocation13 + $0x38] sm:$0xf]
        %v1404 = vld [vmem:[#allocation13 + $0x3c] sm:$0xf]
        %v1405 = vld [vmem:[%s12] sm:$0x1]
        %v1407 = vlaneseq
        %v1408 = vshrl.u32 %v1407, 7
        %v1409 = vsub.s32 0, %v1408
        %v1410 = vrot.slane %v1405, %v1409
        %v1428 = vunpack.c.l.b16 %v1389
        %v1429 = vunpack.c.l.b16 %v1390
        %v1430 = vunpack.c.l.b16 %v1391
        %v1431 = vunpack.c.l.b16 %v1392
        %v1432 = vunpack.c.l.b16 %v1393
        %v1433 = vunpack.c.l.b16 %v1394
        %v1434 = vunpack.c.l.b16 %v1395
        %v1435 = vunpack.c.l.b16 %v1396
        %v1436 = vunpack.c.l.b16 %v1397
        %v1437 = vunpack.c.l.b16 %v1398
        %v1438 = vunpack.c.l.b16 %v1399
        %v1439 = vunpack.c.l.b16 %v1400
        %v1440 = vunpack.c.l.b16 %v1401
        %v1441 = vunpack.c.l.b16 %v1402
        %v1442 = vunpack.c.l.b16 %v1403
        %v1443 = vunpack.c.l.b16 %v1404
        %v1444 = vpack.c.b16 %v1429, %v1428
        %v1445 = vpack.c.b16 %v1431, %v1430
        %v1446 = vpack.c.b16 %v1433, %v1432
        %v1447 = vpack.c.b16 %v1435, %v1434
        %v1448 = vpack.c.b16 %v1437, %v1436
        %v1449 = vpack.c.b16 %v1439, %v1438
        %v1450 = vpack.c.b16 %v1441, %v1440
        %v1451 = vpack.c.b16 %v1443, %v1442
        %1460 = vmatprep.subr.bf16.mxu0 0
        %1461 = vmatpush1.bf16.msra.mxu0 %v1444
        %1462 = vmatprep.subr.bf16.mxu0 0
        %1463 = vmatpush1.bf16.msra.mxu0 %v1445
        %1464 = vmatprep.subr.bf16.mxu0 0
        %1465 = vmatpush1.bf16.msra.mxu0 %v1446
        %1466 = vmatprep.subr.bf16.mxu0 0
        %1467 = vmatpush1.bf16.msra.mxu0 %v1447
        %1468 = vmatprep.subr.bf16.mxu0 0
        %1469 = vmatpush1.bf16.msra.mxu0 %v1448
        %1470 = vmatprep.subr.bf16.mxu0 0
        %1471 = vmatpush1.bf16.msra.mxu0 %v1449
        %1472 = vmatprep.subr.bf16.mxu0 0
        %1473 = vmatpush1.bf16.msra.mxu0 %v1450
        %1474 = vmatprep.subr.bf16.mxu0 0
        %1475 = vmatpush1.bf16.msra.mxu0 %v1451
        %1476 = vmatprep.subr.bf16.mxu0 0
        %1477 = vmatpush1.bf16.msra.mxu0 0
        %1478 = vmatprep.subr.bf16.mxu0 0
        %1479 = vmatpush1.bf16.msra.mxu0 0
        %1480 = vmatprep.subr.bf16.mxu0 0
        %1481 = vmatpush1.bf16.msra.mxu0 0
        %1482 = vmatprep.subr.bf16.mxu0 0
        %1483 = vmatpush1.bf16.msra.mxu0 0
        %1484 = vmatprep.subr.bf16.mxu0 0
        %1485 = vmatpush1.bf16.msra.mxu0 0
        %1486 = vmatprep.subr.bf16.mxu0 0
        %1487 = vmatpush1.bf16.msra.mxu0 0
        %1488 = vmatprep.subr.bf16.mxu0 0
        %1489 = vmatpush1.bf16.msra.mxu0 0
        %1490 = vmatprep.subr.bf16.mxu0 0
        %1491 = vmatpush1.bf16.msra.mxu0 0
        %1492 = vmatprep.mubr.bf16.mxu0 0
        %1493 = vmatmul.mubr.bf16.gmra.mrb[0].mxu0 %v1388
        %v1494 = vpop.f32.mrb[0].mxu0
        %v1495 = vadd.f32 %v1410, %v1494
        %v1496 = vpop.f32.mrb[0].mxu0
        %v1497 = vpop.f32.mrb[0].mxu0
        %v1498 = vpop.f32.mrb[0].mxu0
        %1499 = vdwg.mxu0
        %v1500 = vmax.f32 %v1495, 0.0
        %v1501 = vpack.c.bf16 %v1500, %v1500
        %v1502 = vld [vmem:[#allocation14] sm:$0xf]
        %v1503 = vld [vmem:[#allocation14 + $0x4] sm:$0xf]
        %v1504 = vld [vmem:[#allocation14 + $0x8] sm:$0xf]
        %v1505 = vld [vmem:[#allocation14 + $0xc] sm:$0xf]
        %v1506 = vld [vmem:[#allocation14 + $0x10] sm:$0xf]
        %v1507 = vld [vmem:[#allocation14 + $0x14] sm:$0xf]
        %v1508 = vld [vmem:[#allocation14 + $0x18] sm:$0xf]
        %v1509 = vld [vmem:[#allocation14 + $0x1c] sm:$0xf]
        %v1510 = vld [vmem:[#allocation14 + $0x20] sm:$0xf]
        %v1511 = vld [vmem:[#allocation14 + $0x24] sm:$0xf]
        %v1512 = vld [vmem:[#allocation14 + $0x28] sm:$0xf]
        %v1513 = vld [vmem:[#allocation14 + $0x2c] sm:$0xf]
        %v1514 = vld [vmem:[#allocation14 + $0x30] sm:$0xf]
        %v1515 = vld [vmem:[#allocation14 + $0x34] sm:$0xf]
        %v1516 = vld [vmem:[#allocation14 + $0x38] sm:$0xf]
        %v1517 = vld [vmem:[#allocation14 + $0x3c] sm:$0xf]
        %v1518 = vld [vmem:[%s14] sm:$0x1]
        %v1520 = vlaneseq
        %v1521 = vshrl.u32 %v1520, 7
        %v1522 = vsub.s32 0, %v1521
        %v1523 = vrot.slane %v1518, %v1522
        %v1541 = vunpack.c.l.b16 %v1502
        %v1542 = vunpack.c.l.b16 %v1503
        %v1543 = vunpack.c.l.b16 %v1504
        %v1544 = vunpack.c.l.b16 %v1505
        %v1545 = vunpack.c.l.b16 %v1506
        %v1546 = vunpack.c.l.b16 %v1507
        %v1547 = vunpack.c.l.b16 %v1508
        %v1548 = vunpack.c.l.b16 %v1509
        %v1549 = vunpack.c.l.b16 %v1510
        %v1550 = vunpack.c.l.b16 %v1511
        %v1551 = vunpack.c.l.b16 %v1512
        %v1552 = vunpack.c.l.b16 %v1513
        %v1553 = vunpack.c.l.b16 %v1514
        %v1554 = vunpack.c.l.b16 %v1515
        %v1555 = vunpack.c.l.b16 %v1516
        %v1556 = vunpack.c.l.b16 %v1517
        %v1557 = vpack.c.b16 %v1542, %v1541
        %v1558 = vpack.c.b16 %v1544, %v1543
        %v1559 = vpack.c.b16 %v1546, %v1545
        %v1560 = vpack.c.b16 %v1548, %v1547
        %v1561 = vpack.c.b16 %v1550, %v1549
        %v1562 = vpack.c.b16 %v1552, %v1551
        %v1563 = vpack.c.b16 %v1554, %v1553
        %v1564 = vpack.c.b16 %v1556, %v1555
        %1573 = vmatprep.subr.bf16.mxu0 0
        %1574 = vmatpush1.bf16.msra.mxu0 %v1557
        %1575 = vmatprep.subr.bf16.mxu0 0
        %1576 = vmatpush1.bf16.msra.mxu0 %v1558
        %1577 = vmatprep.subr.bf16.mxu0 0
        %1578 = vmatpush1.bf16.msra.mxu0 %v1559
        %1579 = vmatprep.subr.bf16.mxu0 0
        %1580 = vmatpush1.bf16.msra.mxu0 %v1560
        %1581 = vmatprep.subr.bf16.mxu0 0
        %1582 = vmatpush1.bf16.msra.mxu0 %v1561
        %1583 = vmatprep.subr.bf16.mxu0 0
        %1584 = vmatpush1.bf16.msra.mxu0 %v1562
        %1585 = vmatprep.subr.bf16.mxu0 0
        %1586 = vmatpush1.bf16.msra.mxu0 %v1563
        %1587 = vmatprep.subr.bf16.mxu0 0
        %1588 = vmatpush1.bf16.msra.mxu0 %v1564
        %1589 = vmatprep.subr.bf16.mxu0 0
        %1590 = vmatpush1.bf16.msra.mxu0 0
        %1591 = vmatprep.subr.bf16.mxu0 0
        %1592 = vmatpush1.bf16.msra.mxu0 0
        %1593 = vmatprep.subr.bf16.mxu0 0
        %1594 = vmatpush1.bf16.msra.mxu0 0
        %1595 = vmatprep.subr.bf16.mxu0 0
        %1596 = vmatpush1.bf16.msra.mxu0 0
        %1597 = vmatprep.subr.bf16.mxu0 0
        %1598 = vmatpush1.bf16.msra.mxu0 0
        %1599 = vmatprep.subr.bf16.mxu0 0
        %1600 = vmatpush1.bf16.msra.mxu0 0
        %1601 = vmatprep.subr.bf16.mxu0 0
        %1602 = vmatpush1.bf16.msra.mxu0 0
        %1603 = vmatprep.subr.bf16.mxu0 0
        %1604 = vmatpush1.bf16.msra.mxu0 0
        %1605 = vmatprep.mubr.bf16.mxu0 0
        %1606 = vmatmul.mubr.bf16.gmra.mrb[0].mxu0 %v1501
        %v1607 = vpop.f32.mrb[0].mxu0
        %v1608 = vadd.f32 %v1523, %v1607
        %v1609 = vpop.f32.mrb[0].mxu0
        %v1610 = vpop.f32.mrb[0].mxu0
        %v1611 = vpop.f32.mrb[0].mxu0
        %1612 = vdwg.mxu0
        %v1613 = vmax.f32 %v1608, 0.0
        %v1614 = vpack.c.bf16 %v1613, %v1613
        %v1615 = vld [vmem:[#allocation16] sm:$0xf]
        %v1616 = vld [vmem:[#allocation16 + $0x4] sm:$0xf]
        %v1617 = vld [vmem:[#allocation16 + $0x8] sm:$0xf]
        %v1618 = vld [vmem:[#allocation16 + $0xc] sm:$0xf]
        %v1619 = vld [vmem:[#allocation16 + $0x10] sm:$0xf]
        %v1620 = vld [vmem:[#allocation16 + $0x14] sm:$0xf]
        %v1621 = vld [vmem:[#allocation16 + $0x18] sm:$0xf]
        %v1622 = vld [vmem:[#allocation16 + $0x1c] sm:$0xf]
        %v1623 = vld [vmem:[#allocation16 + $0x20] sm:$0xf]
        %v1624 = vld [vmem:[#allocation16 + $0x24] sm:$0xf]
        %v1625 = vld [vmem:[#allocation16 + $0x28] sm:$0xf]
        %v1626 = vld [vmem:[#allocation16 + $0x2c] sm:$0xf]
        %v1627 = vld [vmem:[#allocation16 + $0x30] sm:$0xf]
        %v1628 = vld [vmem:[#allocation16 + $0x34] sm:$0xf]
        %v1629 = vld [vmem:[#allocation16 + $0x38] sm:$0xf]
        %v1630 = vld [vmem:[#allocation16 + $0x3c] sm:$0xf]
        %v1631 = vld [vmem:[%s16] sm:$0x1]
        %v1633 = vlaneseq
        %v1634 = vshrl.u32 %v1633, 7
        %v1635 = vsub.s32 0, %v1634
        %v1636 = vrot.slane %v1631, %v1635
        %v1654 = vunpack.c.l.b16 %v1615
        %v1655 = vunpack.c.l.b16 %v1616
        %v1656 = vunpack.c.l.b16 %v1617
        %v1657 = vunpack.c.l.b16 %v1618
        %v1658 = vunpack.c.l.b16 %v1619
        %v1659 = vunpack.c.l.b16 %v1620
        %v1660 = vunpack.c.l.b16 %v1621
        %v1661 = vunpack.c.l.b16 %v1622
        %v1662 = vunpack.c.l.b16 %v1623
        %v1663 = vunpack.c.l.b16 %v1624
        %v1664 = vunpack.c.l.b16 %v1625
        %v1665 = vunpack.c.l.b16 %v1626
        %v1666 = vunpack.c.l.b16 %v1627
        %v1667 = vunpack.c.l.b16 %v1628
        %v1668 = vunpack.c.l.b16 %v1629
        %v1669 = vunpack.c.l.b16 %v1630
        %v1670 = vpack.c.b16 %v1655, %v1654
        %v1671 = vpack.c.b16 %v1657, %v1656
        %v1672 = vpack.c.b16 %v1659, %v1658
        %v1673 = vpack.c.b16 %v1661, %v1660
        %v1674 = vpack.c.b16 %v1663, %v1662
        %v1675 = vpack.c.b16 %v1665, %v1664
        %v1676 = vpack.c.b16 %v1667, %v1666
        %v1677 = vpack.c.b16 %v1669, %v1668
        %1686 = vmatprep.subr.bf16.mxu0 0
        %1687 = vmatpush1.bf16.msra.mxu0 %v1670
        %1688 = vmatprep.subr.bf16.mxu0 0
        %1689 = vmatpush1.bf16.msra.mxu0 %v1671
        %1690 = vmatprep.subr.bf16.mxu0 0
        %1691 = vmatpush1.bf16.msra.mxu0 %v1672
        %1692 = vmatprep.subr.bf16.mxu0 0
        %1693 = vmatpush1.bf16.msra.mxu0 %v1673
        %1694 = vmatprep.subr.bf16.mxu0 0
        %1695 = vmatpush1.bf16.msra.mxu0 %v1674
        %1696 = vmatprep.subr.bf16.mxu0 0
        %1697 = vmatpush1.bf16.msra.mxu0 %v1675
        %1698 = vmatprep.subr.bf16.mxu0 0
        %1699 = vmatpush1.bf16.msra.mxu0 %v1676
        %1700 = vmatprep.subr.bf16.mxu0 0
        %1701 = vmatpush1.bf16.msra.mxu0 %v1677
        %1702 = vmatprep.subr.bf16.mxu0 0
        %1703 = vmatpush1.bf16.msra.mxu0 0
        %1704 = vmatprep.subr.bf16.mxu0 0
        %1705 = vmatpush1.bf16.msra.mxu0 0
        %1706 = vmatprep.subr.bf16.mxu0 0
        %1707 = vmatpush1.bf16.msra.mxu0 0
        %1708 = vmatprep.subr.bf16.mxu0 0
        %1709 = vmatpush1.bf16.msra.mxu0 0
        %1710 = vmatprep.subr.bf16.mxu0 0
        %1711 = vmatpush1.bf16.msra.mxu0 0
        %1712 = vmatprep.subr.bf16.mxu0 0
        %1713 = vmatpush1.bf16.msra.mxu0 0
        %1714 = vmatprep.subr.bf16.mxu0 0
        %1715 = vmatpush1.bf16.msra.mxu0 0
        %1716 = vmatprep.subr.bf16.mxu0 0
        %1717 = vmatpush1.bf16.msra.mxu0 0
        %1718 = vmatprep.mubr.bf16.mxu0 0
        %1719 = vmatmul.mubr.bf16.gmra.mrb[0].mxu0 %v1614
        %v1720 = vpop.f32.mrb[0].mxu0
        %v1721 = vadd.f32 %v1636, %v1720
        %v1722 = vpop.f32.mrb[0].mxu0
        %v1723 = vpop.f32.mrb[0].mxu0
        %v1724 = vpop.f32.mrb[0].mxu0
        %1725 = vdwg.mxu0
        %1726 = vst [vmem:[%s794] sm:$0xff] %v1721
        %1727 = vst [vmem:[%s801] sm:$0xff] %v936
        %1728 = vst [vmem:[%s808] sm:$0xff] %v1049
        %1729 = vst [vmem:[%s815] sm:$0xff] %v1162
        %1730 = vst [vmem:[%s822] sm:$0xff] %v1270
        %s1731 = sand.u32 %s419, 1
        %s1732 = scalar_lea.sflag [#allocation4], %s1731
        %s1733 = sand.u32 %s419, 1
        %s1734 = smul.addr %s1733, 8
        %s1735 = scalar_lea.vmem [#allocation17], %s1734
        %s1736 = sand.u32 %s49, 1
        %s1737 = scalar_lea.sflag [#allocation19], %s1736
        %s1738 = sand.u32 %s445, 1
        %s1739 = smul.addr %s1738, 8
        %s1740 = scalar_lea.vmem [#allocation18], %s1739
        %s1741 = sand.u32 %s49, 1
        %s1742 = scalar_lea.sflag [#allocation19], %s1741
        %s1743 = sand.u32 %s471, 1
        %s1744 = smul.addr %s1743, 8
        %s1745 = scalar_lea.vmem [#allocation20], %s1744
        %s1746 = sand.u32 %s49, 1
        %s1747 = scalar_lea.sflag [#allocation22], %s1746
        %s1748 = sand.u32 %s497, 1
        %s1749 = smul.addr %s1748, 8
        %s1750 = scalar_lea.vmem [#allocation21], %s1749
        %s1751 = sand.u32 %s49, 1
        %s1752 = scalar_lea.sflag [#allocation22], %s1751
        %s1753 = sand.u32 %s523, 1
        %s1754 = smul.addr %s1753, 8
        %s1755 = scalar_lea.vmem [#allocation23], %s1754
        // Predicated region
        $region125: #{tpu_custom_call.1} parent=87 // pred_check
          %p1756 = pneg %p429
        $region126: #{tpu_custom_call.1} parent=87 // pred_check_branch
          %1758 = sbr.rel (%p1756) target = $region128
        $region127: #{tpu_custom_call.1} parent=87 // pred_region
          %s1760 = ssub.s32 128, 128
          %1761 = vsyncadd %s1732, %s1760
          %s1762 = smul.addr %s49, 128
          %s1763 = scalar_lea.hbm %s17, %s1762
          %s1765 = sshll.u32 %s1735, 4
          %s1766 = int_to_ptr.vmem [resolvable:$true] %s1765
          %1768 = dma.vmem_to_hbm [thread:$0]  %s1766, 128, %s1763, %s1732
        $region128: #{tpu_custom_call.1} parent=87 // pred_fallthru
          _
        // Predicated region
        $region129: #{tpu_custom_call.1} parent=87 // pred_check
          %p1769 = pneg %p455
        $region130: #{tpu_custom_call.1} parent=87 // pred_check_branch
          %1771 = sbr.rel (%p1769) target = $region132
        $region131: #{tpu_custom_call.1} parent=87 // pred_region
          %s1773 = ssub.s32 128, 128
          %1774 = vsyncadd %s1737, %s1773
          %s1775 = smul.addr %s49, 128
          %s1776 = scalar_lea.hbm %s18, %s1775
          %s1778 = sshll.u32 %s1740, 4
          %s1779 = int_to_ptr.vmem [resolvable:$true] %s1778
          %1781 = dma.vmem_to_hbm [thread:$0]  %s1779, 128, %s1776, %s1737
        $region132: #{tpu_custom_call.1} parent=87 // pred_fallthru
          _
        // Predicated region
        $region133: #{tpu_custom_call.1} parent=87 // pred_check
          %p1782 = pneg %p481
        $region134: #{tpu_custom_call.1} parent=87 // pred_check_branch
          %1784 = sbr.rel (%p1782) target = $region136
        $region135: #{tpu_custom_call.1} parent=87 // pred_region
          %s1786 = ssub.s32 128, 128
          %1787 = vsyncadd %s1742, %s1786
          %s1788 = smul.addr %s49, 128
          %s1789 = scalar_lea.hbm %s19, %s1788
          %s1791 = sshll.u32 %s1745, 4
          %s1792 = int_to_ptr.vmem [resolvable:$true] %s1791
          %1794 = dma.vmem_to_hbm [thread:$0]  %s1792, 128, %s1789, %s1742
        $region136: #{tpu_custom_call.1} parent=87 // pred_fallthru
          _
        // Predicated region
        $region137: #{tpu_custom_call.1} parent=87 // pred_check
          %p1795 = pneg %p507
        $region138: #{tpu_custom_call.1} parent=87 // pred_check_branch
          %1797 = sbr.rel (%p1795) target = $region140
        $region139: #{tpu_custom_call.1} parent=87 // pred_region
          %s1799 = ssub.s32 128, 128
          %1800 = vsyncadd %s1747, %s1799
          %s1801 = smul.addr %s49, 128
          %s1802 = scalar_lea.hbm %s20, %s1801
          %s1804 = sshll.u32 %s1750, 4
          %s1805 = int_to_ptr.vmem [resolvable:$true] %s1804
          %1807 = dma.vmem_to_hbm [thread:$0]  %s1805, 128, %s1802, %s1747
        $region140: #{tpu_custom_call.1} parent=87 // pred_fallthru
          _
        // Predicated region
        $region141: #{tpu_custom_call.1} parent=87 // pred_check
          %p1808 = pneg %p533
        $region142: #{tpu_custom_call.1} parent=87 // pred_check_branch
          %1810 = sbr.rel (%p1808) target = $region144
        $region143: #{tpu_custom_call.1} parent=87 // pred_region
          %s1812 = ssub.s32 128, 128
          %1813 = vsyncadd %s1752, %s1812
          %s1814 = smul.addr %s49, 128
          %s1815 = scalar_lea.hbm %s21, %s1814
          %s1817 = sshll.u32 %s1755, 4
          %s1818 = int_to_ptr.vmem [resolvable:$true] %s1817
          %1820 = dma.vmem_to_hbm [thread:$0]  %s1818, 128, %s1815, %s1752
        $region144: #{tpu_custom_call.1} parent=87 // pred_fallthru
          _
      $region88: #{tpu_custom_call.1} parent=5 // pred_fallthru
        _
      %p1821 = scmp.le.s32.totalorder 2, %s44
      // Predicated region
      $region145: #{tpu_custom_call.1} parent=5 // pred_check
        %p1822 = pneg %p1821
      $region146: #{tpu_custom_call.1} parent=5 // pred_check_branch
        %1824 = sbr.rel (%p1822) target = $region148
      $region147: #{tpu_custom_call.1} parent=5 // pred_region
        %s1825 = ssub.s32 %s44, 2
        // Predicated region
        $region149: #{tpu_custom_call.1} parent=147 // pred_check
          %p1826 = pneg %p435
        $region150: #{tpu_custom_call.1} parent=147 // pred_check_branch
          %1828 = sbr.rel (%p1826) target = $region152
        $region151: #{tpu_custom_call.1} parent=147 // pred_region
          %s1829 = sand.u32 %s420, 1
          %s1830 = scalar_lea.sflag [#allocation4], %s1829
          %s1831 = sand.u32 %s420, 1
          %s1832 = smul.addr %s1831, 8
          %s1833 = scalar_lea.vmem [#allocation17], %s1832
          %1834 = dma.done %s1830, 128
        $region152: #{tpu_custom_call.1} parent=147 // pred_fallthru
          _
        // Predicated region
        $region153: #{tpu_custom_call.1} parent=147 // pred_check
          %p1835 = pneg %p461
        $region154: #{tpu_custom_call.1} parent=147 // pred_check_branch
          %1837 = sbr.rel (%p1835) target = $region156
        $region155: #{tpu_custom_call.1} parent=147 // pred_region
          %s1838 = sand.u32 %s50, 1
          %s1839 = scalar_lea.sflag [#allocation19], %s1838
          %s1840 = sand.u32 %s446, 1
          %s1841 = smul.addr %s1840, 8
          %s1842 = scalar_lea.vmem [#allocation18], %s1841
          %1843 = dma.done %s1839, 128
        $region156: #{tpu_custom_call.1} parent=147 // pred_fallthru
          _
        // Predicated region
        $region157: #{tpu_custom_call.1} parent=147 // pred_check
          %p1844 = pneg %p487
        $region158: #{tpu_custom_call.1} parent=147 // pred_check_branch
          %1846 = sbr.rel (%p1844) target = $region160
        $region159: #{tpu_custom_call.1} parent=147 // pred_region
          %s1847 = sand.u32 %s50, 1
          %s1848 = scalar_lea.sflag [#allocation19], %s1847
          %s1849 = sand.u32 %s472, 1
          %s1850 = smul.addr %s1849, 8
          %s1851 = scalar_lea.vmem [#allocation20], %s1850
          %1852 = dma.done %s1848, 128
        $region160: #{tpu_custom_call.1} parent=147 // pred_fallthru
          _
        // Predicated region
        $region161: #{tpu_custom_call.1} parent=147 // pred_check
          %p1853 = pneg %p513
        $region162: #{tpu_custom_call.1} parent=147 // pred_check_branch
          %1855 = sbr.rel (%p1853) target = $region164
        $region163: #{tpu_custom_call.1} parent=147 // pred_region
          %s1856 = sand.u32 %s50, 1
          %s1857 = scalar_lea.sflag [#allocation22], %s1856
          %s1858 = sand.u32 %s498, 1
          %s1859 = smul.addr %s1858, 8
          %s1860 = scalar_lea.vmem [#allocation21], %s1859
          %1861 = dma.done %s1857, 128
        $region164: #{tpu_custom_call.1} parent=147 // pred_fallthru
          _
        // Predicated region
        $region165: #{tpu_custom_call.1} parent=147 // pred_check
          %p1862 = pneg %p539
        $region166: #{tpu_custom_call.1} parent=147 // pred_check_branch
          %1864 = sbr.rel (%p1862) target = $region168
        $region167: #{tpu_custom_call.1} parent=147 // pred_region
          %s1865 = sand.u32 %s50, 1
          %s1866 = scalar_lea.sflag [#allocation22], %s1865
          %s1867 = sand.u32 %s524, 1
          %s1868 = smul.addr %s1867, 8
          %s1869 = scalar_lea.vmem [#allocation23], %s1868
          %1870 = dma.done %s1866, 128
        $region168: #{tpu_custom_call.1} parent=147 // pred_fallthru
          _
      $region148: #{tpu_custom_call.1} parent=5 // pred_fallthru
        _
    $region6: #{tpu_custom_call.1} parent=1 // loop_footer
      %s48 = sadd.s32 1, %s44
    $region7: #{tpu_custom_call.1} parent=1 // loop_footer_branch
      %43 = sbr.rel target = $region3
    $region8: #{tpu_custom_call.1} parent=1 // loop_exit
      _
    %1871 = vsyncpa [#allocation3], 1
    %s1872 = scalar_lea.sflag [#allocation3], 1
    %1873 = vsyncpa %s1872, 1
    %1874 = vsyncpa [#allocation6], 1
    %1875 = vsyncpa [#allocation9], 1
    %1876 = vsyncpa [#allocation12], 1
    %1877 = vsyncpa [#allocation15], 1
    %1878 = vsyncpa [#allocation4], 1
    %s1879 = scalar_lea.sflag [#allocation4], 1
    %1880 = vsyncpa %s1879, 1
    %1881 = vsyncpa [#allocation19], 1
    %s1882 = scalar_lea.sflag [#allocation19], 1
    %1883 = vsyncpa %s1882, 1
    %1884 = vsyncpa [#allocation22], 1
    %s1885 = scalar_lea.sflag [#allocation22], 1
    %1886 = vsyncpa %s1885, 1

// kernel: tpu_custom_call.1
$region0: #{tpu_custom_call.1}
  #allocation0 [shape = 'u32[]', space=smem, size = 0x4, offset = 0x4, fixed_abs, tag = 'smem constant byte address 0x4 - core index']
  #allocation1 [shape = 'u32[144,128]{1,0:T(1,128)}', space=vmem, size = 0x12000, scoped, tag = 'internal scratch']
  %s0 = inlined_call_operand.hbm [shape: bf16[16,128], index: 0, kind: input, shape index: {}]
  %s1 = inlined_call_operand.hbm [shape: bf16[128,128], index: 1, kind: input, shape index: {}]
  %s2 = inlined_call_operand.vmem [shape: f32[1,128], index: 2, kind: input, shape index: {}]
  %s3 = inlined_call_operand.hbm [shape: bf16[128,128], index: 3, kind: input, shape index: {}]
  %s4 = inlined_call_operand.vmem [shape: f32[1,128], index: 4, kind: input, shape index: {}]
  %s5 = inlined_call_operand.hbm [shape: bf16[128,128], index: 5, kind: input, shape index: {}]
  %s6 = inlined_call_operand.vmem [shape: f32[1,128], index: 6, kind: input, shape index: {}]
  %s7 = inlined_call_operand.hbm [shape: bf16[128,128], index: 7, kind: input, shape index: {}]
  %s8 = inlined_call_operand.vmem [shape: f32[1,128], index: 8, kind: input, shape index: {}]
  %s9 = inlined_call_operand.hbm [shape: bf16[128,128], index: 9, kind: input, shape index: {}]
  %s10 = inlined_call_operand.vmem [shape: f32[1,128], index: 10, kind: input, shape index: {}]
  %s11 = inlined_call_operand.hbm [shape: bf16[128,128], index: 11, kind: input, shape index: {}]
  %s12 = inlined_call_operand.vmem [shape: f32[1,128], index: 12, kind: input, shape index: {}]
  %s13 = inlined_call_operand.hbm [shape: bf16[128,128], index: 13, kind: input, shape index: {}]
  %s14 = inlined_call_operand.vmem [shape: f32[1,128], index: 14, kind: input, shape index: {}]
  %s15 = inlined_call_operand.hbm [shape: bf16[128,128], index: 15, kind: input, shape index: {}]
  %s16 = inlined_call_operand.vmem [shape: f32[1,128], index: 16, kind: input, shape index: {}]
  %s17 = inlined_call_operand.hbm [shape: f32[16,128], index: 17, kind: output, shape index: {0}]
  %s18 = inlined_call_operand.hbm [shape: f32[16,128], index: 18, kind: output, shape index: {1}]
  %s19 = inlined_call_operand.hbm [shape: f32[16,128], index: 19, kind: output, shape index: {2}]
  %s20 = inlined_call_operand.hbm [shape: f32[16,128], index: 20, kind: output, shape index: {3}]
  %s21 = inlined_call_operand.hbm [shape: f32[16,128], index: 21, kind: output, shape index: {4}]
  %22 = xla_tuple %s17, %s18, %s19, %s20, %s21
  %s23 = sld [smem:[#allocation0]]
  $region169: #{tpu_custom_call.1} parent=0
    _
  %s25 = ssub.s32 1, %s23
  %s26 = scalar_select 0, %s25, %s23
  $region1: #{tpu_custom_call.1} parent=0
    #allocation2 [shape = 'u8[4096]{0}', space=vmem, size = 0x1000, scoped, tag = 'input window, operand 0']
    #allocation3 [shape = 's32[2]{0}', space=sflag, size = 0x8, scoped, tag = 'scoped memory for tpu_custom_call.1']
    #allocation4 [shape = 's32[2]{0}', space=sflag, size = 0x8, scoped, tag = 'scoped memory for tpu_custom_call.1']
    #allocation5 [shape = 'u8[32768]{0}', space=vmem, size = 0x8000, scoped, tag = 'input window, operand 1, single buffered']
    #allocation6 [shape = 's32[1]{0}', space=sflag, size = 0x4, scoped, tag = 'scoped memory for tpu_custom_call.1']
    #allocation7 [shape = 'u8[32768]{0}', space=vmem, size = 0x8000, scoped, tag = 'input window, operand 3, single buffered']
    #allocation8 [shape = 'u8[32768]{0}', space=vmem, size = 0x8000, scoped, tag = 'input window, operand 5, single buffered']
    #allocation9 [shape = 's32[1]{0}', space=sflag, size = 0x4, scoped, tag = 'scoped memory for tpu_custom_call.1']
    #allocation10 [shape = 'u8[32768]{0}', space=vmem, size = 0x8000, scoped, tag = 'input window, operand 7, single buffered']
    #allocation11 [shape = 'u8[32768]{0}', space=vmem, size = 0x8000, scoped, tag = 'input window, operand 9, single buffered']
    #allocation12 [shape = 's32[1]{0}', space=sflag, size = 0x4, scoped, tag = 'scoped memory for tpu_custom_call.1']
    #allocation13 [shape = 'u8[32768]{0}', space=vmem, size = 0x8000, scoped, tag = 'input window, operand 11, single buffered']
    #allocation14 [shape = 'u8[32768]{0}', space=vmem, size = 0x8000, scoped, tag = 'input window, operand 13, single buffered']
    #allocation15 [shape = 's32[1]{0}', space=sflag, size = 0x4, scoped, tag = 'scoped memory for tpu_custom_call.1']
    #allocation16 [shape = 'u8[32768]{0}', space=vmem, size = 0x8000, scoped, tag = 'input window, operand 15, single buffered']
    #allocation17 [shape = 'u8[8192]{0}', space=vmem, size = 0x2000, scoped, tag = 'output window, operand 0']
    #allocation18 [shape = 'u8[8192]{0}', space=vmem, size = 0x2000, scoped, tag = 'output window, operand 1']
    #allocation19 [shape = 's32[2]{0}', space=sflag, size = 0x8, scoped, tag = 'scoped memory for tpu_custom_call.1']
    #allocation20 [shape = 'u8[8192]{0}', space=vmem, size = 0x2000, scoped, tag = 'output window, operand 2']
    #allocation21 [shape = 'u8[8192]{0}', space=vmem, size = 0x2000, scoped, tag = 'output window, operand 3']
    #allocation22 [shape = 's32[2]{0}', space=sflag, size = 0x8, scoped, tag = 'scoped memory for tpu_custom_call.1']
    #allocation23 [shape = 'u8[8192]{0}', space=vmem, size = 0x2000, scoped, tag = 'output window, operand 4']
    %27 = vsyncpa [#allocation3], 0
    %s28 = scalar_lea.sflag [#allocation3], 1
    %29 = vsyncpa %s28, 0
    %30 = vsyncpa [#allocation6], 0
    %31 = vsyncpa [#allocation9], 0
    %32 = vsyncpa [#allocation12], 0
    %33 = vsyncpa [#allocation15], 0
    %34 = vsyncpa [#allocation4], 0
    %s35 = scalar_lea.sflag [#allocation4], 1
    %36 = vsyncpa %s35, 0
    %37 = vsyncpa [#allocation19], 0
    %s38 = scalar_lea.sflag [#allocation19], 1
    %39 = vsyncpa %s38, 0
    %40 = vsyncpa [#allocation22], 0
    %s41 = scalar_lea.sflag [#allocation22], 1
    %42 = vsyncpa %s41, 0
    loop: start=0, step=1, limit=4
    $region2: #{tpu_custom_call.1} parent=1 // loop_pre_header
      _
    $region3: #{tpu_custom_call.1} parent=1 // loop_header
      %s44 = sphi 0, %s48
      %p45 = scmp.ge.s32.totalorder %s44, 4
      %s54 = sphi 0, %s56
      %s57 = sphi 0, %s54
      %s58 = sphi 0, %s57
      %s74 = sphi 0, %s58
      %s78 = sphi 0, %s78
      %s80 = sphi 0, %s78
      %s81 = sphi 0, %s80
      %s95 = sphi 0, %s81
      %s99 = sphi 0, %s99
      %s101 = sphi 0, %s99
      %s102 = sphi 0, %s101
      %s116 = sphi 0, %s102
      %s120 = sphi 0, %s120
      %s122 = sphi 0, %s120
      %s123 = sphi 0, %s122
      %s137 = sphi 0, %s123
      %s141 = sphi 0, %s141
      %s143 = sphi 0, %s141
      %s144 = sphi 0, %s143
      %s158 = sphi 0, %s144
      %s162 = sphi 0, %s162
      %s164 = sphi 0, %s162
      %s165 = sphi 0, %s164
      %s179 = sphi 0, %s165
      %s183 = sphi 0, %s183
      %s185 = sphi 0, %s183
      %s186 = sphi 0, %s185
      %s200 = sphi 0, %s186
      %s204 = sphi 0, %s204
      %s206 = sphi 0, %s204
      %s207 = sphi 0, %s206
      %s221 = sphi 0, %s207
      %s225 = sphi 0, %s225
      %s227 = sphi 0, %s225
      %s228 = sphi 0, %s227
      %s242 = sphi 0, %s228
      %s246 = sphi 0, %s246
      %s248 = sphi 0, %s246
      %s249 = sphi 0, %s248
      %s263 = sphi 0, %s249
      %s267 = sphi 0, %s267
      %s269 = sphi 0, %s267
      %s270 = sphi 0, %s269
      %s284 = sphi 0, %s270
      %s288 = sphi 0, %s288
      %s290 = sphi 0, %s288
      %s291 = sphi 0, %s290
      %s305 = sphi 0, %s291
      %s309 = sphi 0, %s309
      %s311 = sphi 0, %s309
      %s312 = sphi 0, %s311
      %s326 = sphi 0, %s312
      %s330 = sphi 0, %s330
      %s332 = sphi 0, %s330
      %s333 = sphi 0, %s332
      %s347 = sphi 0, %s333
      %s351 = sphi 0, %s351
      %s353 = sphi 0, %s351
      %s354 = sphi 0, %s353
      %s368 = sphi 0, %s354
      %s372 = sphi 0, %s372
      %s374 = sphi 0, %s372
      %s375 = sphi 0, %s374
      %s389 = sphi 0, %s375
      %s393 = sphi 0, %s393
      %s395 = sphi 0, %s393
      %s396 = sphi 0, %s395
      %s410 = sphi 0, %s396
      %s416 = sphi 0, %s418
      %s419 = sphi 0, %s416
      %s420 = sphi 0, %s419
      %s436 = sphi 0, %s420
      %s442 = sphi 0, %s444
      %s445 = sphi 0, %s442
      %s446 = sphi 0, %s445
      %s462 = sphi 0, %s446
      %s468 = sphi 0, %s470
      %s471 = sphi 0, %s468
      %s472 = sphi 0, %s471
      %s488 = sphi 0, %s472
      %s494 = sphi 0, %s496
      %s497 = sphi 0, %s494
      %s498 = sphi 0, %s497
      %s514 = sphi 0, %s498
      %s520 = sphi 0, %s522
      %s523 = sphi 0, %s520
      %s524 = sphi 0, %s523
      %s540 = sphi 0, %s524
    $region4: #{tpu_custom_call.1} parent=1 // loop_header_branch
      %47 = sbr.rel (%p45) target = $region8
    $region5: #{tpu_custom_call.1} parent=1 // loop_body
      %s49 = ssub.s32 %s44, 1
      %s50 = ssub.s32 %s44, 2
      %s51 = sadd.s32 %s44, 1
      %s52 = ssub.s32 %s44, %s51
      %p53 = scmp.eq.s32.totalorder %s52, 0
      %s55 = sadd.s32 %s54, 1
      %s56 = scalar_select %p53, %s54, %s55
      %p59 = pneg %p53
      %p60 = scmp.eq.s32.totalorder %s44, 1
      %p61 = por %p59, %p60
      %p62 = scmp.ne.s32.totalorder %s54, %s57
      %p63 = scmp.eq.s32.totalorder %s44, 0
      %p64 = por %p62, %p63
      %p65 = scmp.ne.s32.totalorder %s54, %s57
      %p66 = scmp.eq.s32.totalorder %s49, 1
      %p67 = por %p65, %p66
      %p68 = scmp.ne.s32.totalorder %s57, %s58
      %p69 = scmp.eq.s32.totalorder %s49, 0
      %p70 = por %p68, %p69
      %p71 = scmp.ne.s32.totalorder %s57, %s58
      %p72 = scmp.eq.s32.totalorder %s50, 1
      %p73 = por %p71, %p72
      %p75 = scmp.ne.s32.totalorder %s58, %s74
      %p76 = scmp.eq.s32.totalorder %s50, 0
      %p77 = por %p75, %p76
      %s79 = sadd.s32 %s78, 1
      %p82 = scmp.eq.s32.totalorder %s44, 1
      %p83 = scmp.ne.s32.totalorder %s78, %s80
      %p84 = scmp.eq.s32.totalorder %s44, 0
      %p85 = por %p83, %p84
      %p86 = scmp.ne.s32.totalorder %s78, %s80
      %p87 = scmp.eq.s32.totalorder %s49, 1
      %p88 = por %p86, %p87
      %p89 = scmp.ne.s32.totalorder %s80, %s81
      %p90 = scmp.eq.s32.totalorder %s49, 0
      %p91 = por %p89, %p90
      %p92 = scmp.ne.s32.totalorder %s80, %s81
      %p93 = scmp.eq.s32.totalorder %s50, 1
      %p94 = por %p92, %p93
      %p96 = scmp.ne.s32.totalorder %s81, %s95
      %p97 = scmp.eq.s32.totalorder %s50, 0
      %p98 = por %p96, %p97
      %s100 = sadd.s32 %s99, 1
      %p103 = scmp.eq.s32.totalorder %s44, 1
      %p104 = scmp.ne.s32.totalorder %s99, %s101
      %p105 = scmp.eq.s32.totalorder %s44, 0
      %p106 = por %p104, %p105
      %p107 = scmp.ne.s32.totalorder %s99, %s101
      %p108 = scmp.eq.s32.totalorder %s49, 1
      %p109 = por %p107, %p108
      %p110 = scmp.ne.s32.totalorder %s101, %s102
      %p111 = scmp.eq.s32.totalorder %s49, 0
      %p112 = por %p110, %p111
      %p113 = scmp.ne.s32.totalorder %s101, %s102
      %p114 = scmp.eq.s32.totalorder %s50, 1
      %p115 = por %p113, %p114
      %p117 = scmp.ne.s32.totalorder %s102, %s116
      %p118 = scmp.eq.s32.totalorder %s50, 0
      %p119 = por %p117, %p118
      %s121 = sadd.s32 %s120, 1
      %p124 = scmp.eq.s32.totalorder %s44, 1
      %p125 = scmp.ne.s32.totalorder %s120, %s122
      %p126 = scmp.eq.s32.totalorder %s44, 0
      %p127 = por %p125, %p126
      %p128 = scmp.ne.s32.totalorder %s120, %s122
      %p129 = scmp.eq.s32.totalorder %s49, 1
      %p130 = por %p128, %p129
      %p131 = scmp.ne.s32.totalorder %s122, %s123
      %p132 = scmp.eq.s32.totalorder %s49, 0
      %p133 = por %p131, %p132
      %p134 = scmp.ne.s32.totalorder %s122, %s123
      %p135 = scmp.eq.s32.totalorder %s50, 1
      %p136 = por %p134, %p135
      %p138 = scmp.ne.s32.totalorder %s123, %s137
      %p139 = scmp.eq.s32.totalorder %s50, 0
      %p140 = por %p138, %p139
      %s142 = sadd.s32 %s141, 1
      %p145 = scmp.eq.s32.totalorder %s44, 1
      %p146 = scmp.ne.s32.totalorder %s141, %s143
      %p147 = scmp.eq.s32.totalorder %s44, 0
      %p148 = por %p146, %p147
      %p149 = scmp.ne.s32.totalorder %s141, %s143
      %p150 = scmp.eq.s32.totalorder %s49, 1
      %p151 = por %p149, %p150
      %p152 = scmp.ne.s32.totalorder %s143, %s144
      %p153 = scmp.eq.s32.totalorder %s49, 0
      %p154 = por %p152, %p153
      %p155 = scmp.ne.s32.totalorder %s143, %s144
      %p156 = scmp.eq.s32.totalorder %s50, 1
      %p157 = por %p155, %p156
      %p159 = scmp.ne.s32.totalorder %s144, %s158
      %p160 = scmp.eq.s32.totalorder %s50, 0
      %p161 = por %p159, %p160
      %s163 = sadd.s32 %s162, 1
      %p166 = scmp.eq.s32.totalorder %s44, 1
      %p167 = scmp.ne.s32.totalorder %s162, %s164
      %p168 = scmp.eq.s32.totalorder %s44, 0
      %p169 = por %p167, %p168
      %p170 = scmp.ne.s32.totalorder %s162, %s164
      %p171 = scmp.eq.s32.totalorder %s49, 1
      %p172 = por %p170, %p171
      %p173 = scmp.ne.s32.totalorder %s164, %s165
      %p174 = scmp.eq.s32.totalorder %s49, 0
      %p175 = por %p173, %p174
      %p176 = scmp.ne.s32.totalorder %s164, %s165
      %p177 = scmp.eq.s32.totalorder %s50, 1
      %p178 = por %p176, %p177
      %p180 = scmp.ne.s32.totalorder %s165, %s179
      %p181 = scmp.eq.s32.totalorder %s50, 0
      %p182 = por %p180, %p181
      %s184 = sadd.s32 %s183, 1
      %p187 = scmp.eq.s32.totalorder %s44, 1
      %p188 = scmp.ne.s32.totalorder %s183, %s185
      %p189 = scmp.eq.s32.totalorder %s44, 0
      %p190 = por %p188, %p189
      %p191 = scmp.ne.s32.totalorder %s183, %s185
      %p192 = scmp.eq.s32.totalorder %s49, 1
      %p193 = por %p191, %p192
      %p194 = scmp.ne.s32.totalorder %s185, %s186
      %p195 = scmp.eq.s32.totalorder %s49, 0
      %p196 = por %p194, %p195
      %p197 = scmp.ne.s32.totalorder %s185, %s186
      %p198 = scmp.eq.s32.totalorder %s50, 1
      %p199 = por %p197, %p198
      %p201 = scmp.ne.s32.totalorder %s186, %s200
      %p202 = scmp.eq.s32.totalorder %s50, 0
      %p203 = por %p201, %p202
      %s205 = sadd.s32 %s204, 1
      %p208 = scmp.eq.s32.totalorder %s44, 1
      %p209 = scmp.ne.s32.totalorder %s204, %s206
      %p210 = scmp.eq.s32.totalorder %s44, 0
      %p211 = por %p209, %p210
      %p212 = scmp.ne.s32.totalorder %s204, %s206
      %p213 = scmp.eq.s32.totalorder %s49, 1
      %p214 = por %p212, %p213
      %p215 = scmp.ne.s32.totalorder %s206, %s207
      %p216 = scmp.eq.s32.totalorder %s49, 0
      %p217 = por %p215, %p216
      %p218 = scmp.ne.s32.totalorder %s206, %s207
      %p219 = scmp.eq.s32.totalorder %s50, 1
      %p220 = por %p218, %p219
      %p222 = scmp.ne.s32.totalorder %s207, %s221
      %p223 = scmp.eq.s32.totalorder %s50, 0
      %p224 = por %p222, %p223
      %s226 = sadd.s32 %s225, 1
      %p229 = scmp.eq.s32.totalorder %s44, 1
      %p230 = scmp.ne.s32.totalorder %s225, %s227
      %p231 = scmp.eq.s32.totalorder %s44, 0
      %p232 = por %p230, %p231
      %p233 = scmp.ne.s32.totalorder %s225, %s227
      %p234 = scmp.eq.s32.totalorder %s49, 1
      %p235 = por %p233, %p234
      %p236 = scmp.ne.s32.totalorder %s227, %s228
      %p237 = scmp.eq.s32.totalorder %s49, 0
      %p238 = por %p236, %p237
      %p239 = scmp.ne.s32.totalorder %s227, %s228
      %p240 = scmp.eq.s32.totalorder %s50, 1
      %p241 = por %p239, %p240
      %p243 = scmp.ne.s32.totalorder %s228, %s242
      %p244 = scmp.eq.s32.totalorder %s50, 0
      %p245 = por %p243, %p244
      %s247 = sadd.s32 %s246, 1
      %p250 = scmp.eq.s32.totalorder %s44, 1
      %p251 = scmp.ne.s32.totalorder %s246, %s248
      %p252 = scmp.eq.s32.totalorder %s44, 0
      %p253 = por %p251, %p252
      %p254 = scmp.ne.s32.totalorder %s246, %s248
      %p255 = scmp.eq.s32.totalorder %s49, 1
      %p256 = por %p254, %p255
      %p257 = scmp.ne.s32.totalorder %s248, %s249
      %p258 = scmp.eq.s32.totalorder %s49, 0
      %p259 = por %p257, %p258
      %p260 = scmp.ne.s32.totalorder %s248, %s249
      %p261 = scmp.eq.s32.totalorder %s50, 1
      %p262 = por %p260, %p261
      %p264 = scmp.ne.s32.totalorder %s249, %s263
      %p265 = scmp.eq.s32.totalorder %s50, 0
      %p266 = por %p264, %p265
      %s268 = sadd.s32 %s267, 1
      %p271 = scmp.eq.s32.totalorder %s44, 1
      %p272 = scmp.ne.s32.totalorder %s267, %s269
      %p273 = scmp.eq.s32.totalorder %s44, 0
      %p274 = por %p272, %p273
      %p275 = scmp.ne.s32.totalorder %s267, %s269
      %p276 = scmp.eq.s32.totalorder %s49, 1
      %p277 = por %p275, %p276
      %p278 = scmp.ne.s32.totalorder %s269, %s270
      %p279 = scmp.eq.s32.totalorder %s49, 0
      %p280 = por %p278, %p279
      %p281 = scmp.ne.s32.totalorder %s269, %s270
      %p282 = scmp.eq.s32.totalorder %s50, 1
      %p283 = por %p281, %p282
      %p285 = scmp.ne.s32.totalorder %s270, %s284
      %p286 = scmp.eq.s32.totalorder %s50, 0
      %p287 = por %p285, %p286
      %s289 = sadd.s32 %s288, 1
      %p292 = scmp.eq.s32.totalorder %s44, 1
      %p293 = scmp.ne.s32.totalorder %s288, %s290
      %p294 = scmp.eq.s32.totalorder %s44, 0
      %p295 = por %p293, %p294
      %p296 = scmp.ne.s32.totalorder %s288, %s290
      %p297 = scmp.eq.s32.totalorder %s49, 1
      %p298 = por %p296, %p297
      %p299 = scmp.ne.s32.totalorder %s290, %s291
      %p300 = scmp.eq.s32.totalorder %s49, 0
      %p301 = por %p299, %p300
      %p302 = scmp.ne.s32.totalorder %s290, %s291
      %p303 = scmp.eq.s32.totalorder %s50, 1
      %p304 = por %p302, %p303
      %p306 = scmp.ne.s32.totalorder %s291, %s305
      %p307 = scmp.eq.s32.totalorder %s50, 0
      %p308 = por %p306, %p307
      %s310 = sadd.s32 %s309, 1
      %p313 = scmp.eq.s32.totalorder %s44, 1
      %p314 = scmp.ne.s32.totalorder %s309, %s311
      %p315 = scmp.eq.s32.totalorder %s44, 0
      %p316 = por %p314, %p315
      %p317 = scmp.ne.s32.totalorder %s309, %s311
      %p318 = scmp.eq.s32.totalorder %s49, 1
      %p319 = por %p317, %p318
      %p320 = scmp.ne.s32.totalorder %s311, %s312
      %p321 = scmp.eq.s32.totalorder %s49, 0
      %p322 = por %p320, %p321
      %p323 = scmp.ne.s32.totalorder %s311, %s312
      %p324 = scmp.eq.s32.totalorder %s50, 1
      %p325 = por %p323, %p324
      %p327 = scmp.ne.s32.totalorder %s312, %s326
      %p328 = scmp.eq.s32.totalorder %s50, 0
      %p329 = por %p327, %p328
      %s331 = sadd.s32 %s330, 1
      %p334 = scmp.eq.s32.totalorder %s44, 1
      %p335 = scmp.ne.s32.totalorder %s330, %s332
      %p336 = scmp.eq.s32.totalorder %s44, 0
      %p337 = por %p335, %p336
      %p338 = scmp.ne.s32.totalorder %s330, %s332
      %p339 = scmp.eq.s32.totalorder %s49, 1
      %p340 = por %p338, %p339
      %p341 = scmp.ne.s32.totalorder %s332, %s333
      %p342 = scmp.eq.s32.totalorder %s49, 0
      %p343 = por %p341, %p342
      %p344 = scmp.ne.s32.totalorder %s332, %s333
      %p345 = scmp.eq.s32.totalorder %s50, 1
      %p346 = por %p344, %p345
      %p348 = scmp.ne.s32.totalorder %s333, %s347
      %p349 = scmp.eq.s32.totalorder %s50, 0
      %p350 = por %p348, %p349
      %s352 = sadd.s32 %s351, 1
      %p355 = scmp.eq.s32.totalorder %s44, 1
      %p356 = scmp.ne.s32.totalorder %s351, %s353
      %p357 = scmp.eq.s32.totalorder %s44, 0
      %p358 = por %p356, %p357
      %p359 = scmp.ne.s32.totalorder %s351, %s353
      %p360 = scmp.eq.s32.totalorder %s49, 1
      %p361 = por %p359, %p360
      %p362 = scmp.ne.s32.totalorder %s353, %s354
      %p363 = scmp.eq.s32.totalorder %s49, 0
      %p364 = por %p362, %p363
      %p365 = scmp.ne.s32.totalorder %s353, %s354
      %p366 = scmp.eq.s32.totalorder %s50, 1
      %p367 = por %p365, %p366
      %p369 = scmp.ne.s32.totalorder %s354, %s368
      %p370 = scmp.eq.s32.totalorder %s50, 0
      %p371 = por %p369, %p370
      %s373 = sadd.s32 %s372, 1
      %p376 = scmp.eq.s32.totalorder %s44, 1
      %p377 = scmp.ne.s32.totalorder %s372, %s374
      %p378 = scmp.eq.s32.totalorder %s44, 0
      %p379 = por %p377, %p378
      %p380 = scmp.ne.s32.totalorder %s372, %s374
      %p381 = scmp.eq.s32.totalorder %s49, 1
      %p382 = por %p380, %p381
      %p383 = scmp.ne.s32.totalorder %s374, %s375
      %p384 = scmp.eq.s32.totalorder %s49, 0
      %p385 = por %p383, %p384
      %p386 = scmp.ne.s32.totalorder %s374, %s375
      %p387 = scmp.eq.s32.totalorder %s50, 1
      %p388 = por %p386, %p387
      %p390 = scmp.ne.s32.totalorder %s375, %s389
      %p391 = scmp.eq.s32.totalorder %s50, 0
      %p392 = por %p390, %p391
      %s394 = sadd.s32 %s393, 1
      %p397 = scmp.eq.s32.totalorder %s44, 1
      %p398 = scmp.ne.s32.totalorder %s393, %s395
      %p399 = scmp.eq.s32.totalorder %s44, 0
      %p400 = por %p398, %p399
      %p401 = scmp.ne.s32.totalorder %s393, %s395
      %p402 = scmp.eq.s32.totalorder %s49, 1
      %p403 = por %p401, %p402
      %p404 = scmp.ne.s32.totalorder %s395, %s396
      %p405 = scmp.eq.s32.totalorder %s49, 0
      %p406 = por %p404, %p405
      %p407 = scmp.ne.s32.totalorder %s395, %s396
      %p408 = scmp.eq.s32.totalorder %s50, 1
      %p409 = por %p407, %p408
      %p411 = scmp.ne.s32.totalorder %s396, %s410
      %p412 = scmp.eq.s32.totalorder %s50, 0
      %p413 = por %p411, %p412
      %s414 = ssub.s32 %s44, %s51
      %p415 = scmp.eq.s32.totalorder %s414, 0
      %s417 = sadd.s32 %s416, 1
      %s418 = scalar_select %p415, %s416, %s417
      %p421 = pneg %p415
      %p422 = scmp.eq.s32.totalorder %s44, 1
      %p423 = por %p421, %p422
      %p424 = scmp.ne.s32.totalorder %s416, %s419
      %p425 = scmp.eq.s32.totalorder %s44, 0
      %p426 = por %p424, %p425
      %p427 = scmp.ne.s32.totalorder %s416, %s419
      %p428 = scmp.eq.s32.totalorder %s49, 1
      %p429 = por %p427, %p428
      %p430 = scmp.ne.s32.totalorder %s419, %s420
      %p431 = scmp.eq.s32.totalorder %s49, 0
      %p432 = por %p430, %p431
      %p433 = scmp.ne.s32.totalorder %s419, %s420
      %p434 = scmp.eq.s32.totalorder %s50, 1
      %p435 = por %p433, %p434
      %p437 = scmp.ne.s32.totalorder %s420, %s436
      %p438 = scmp.eq.s32.totalorder %s50, 0
      %p439 = por %p437, %p438
      %s440 = ssub.s32 %s44, %s51
      %p441 = scmp.eq.s32.totalorder %s440, 0
      %s443 = sadd.s32 %s442, 1
      %s444 = scalar_select %p441, %s442, %s443
      %p447 = pneg %p441
      %p448 = scmp.eq.s32.totalorder %s44, 1
      %p449 = por %p447, %p448
      %p450 = scmp.ne.s32.totalorder %s442, %s445
      %p451 = scmp.eq.s32.totalorder %s44, 0
      %p452 = por %p450, %p451
      %p453 = scmp.ne.s32.totalorder %s442, %s445
      %p454 = scmp.eq.s32.totalorder %s49, 1
      %p455 = por %p453, %p454
      %p456 = scmp.ne.s32.totalorder %s445, %s446
      %p457 = scmp.eq.s32.totalorder %s49, 0
      %p458 = por %p456, %p457
      %p459 = scmp.ne.s32.totalorder %s445, %s446
      %p460 = scmp.eq.s32.totalorder %s50, 1
      %p461 = por %p459, %p460
      %p463 = scmp.ne.s32.totalorder %s446, %s462
      %p464 = scmp.eq.s32.totalorder %s50, 0
      %p465 = por %p463, %p464
      %s466 = ssub.s32 %s44, %s51
      %p467 = scmp.eq.s32.totalorder %s466, 0
      %s469 = sadd.s32 %s468, 1
      %s470 = scalar_select %p467, %s468, %s469
      %p473 = pneg %p467
      %p474 = scmp.eq.s32.totalorder %s44, 1
      %p475 = por %p473, %p474
      %p476 = scmp.ne.s32.totalorder %s468, %s471
      %p477 = scmp.eq.s32.totalorder %s44, 0
      %p478 = por %p476, %p477
      %p479 = scmp.ne.s32.totalorder %s468, %s471
      %p480 = scmp.eq.s32.totalorder %s49, 1
      %p481 = por %p479, %p480
      %p482 = scmp.ne.s32.totalorder %s471, %s472
      %p483 = scmp.eq.s32.totalorder %s49, 0
      %p484 = por %p482, %p483
      %p485 = scmp.ne.s32.totalorder %s471, %s472
      %p486 = scmp.eq.s32.totalorder %s50, 1
      %p487 = por %p485, %p486
      %p489 = scmp.ne.s32.totalorder %s472, %s488
      %p490 = scmp.eq.s32.totalorder %s50, 0
      %p491 = por %p489, %p490
      %s492 = ssub.s32 %s44, %s51
      %p493 = scmp.eq.s32.totalorder %s492, 0
      %s495 = sadd.s32 %s494, 1
      %s496 = scalar_select %p493, %s494, %s495
      %p499 = pneg %p493
      %p500 = scmp.eq.s32.totalorder %s44, 1
      %p501 = por %p499, %p500
      %p502 = scmp.ne.s32.totalorder %s494, %s497
      %p503 = scmp.eq.s32.totalorder %s44, 0
      %p504 = por %p502, %p503
      %p505 = scmp.ne.s32.totalorder %s494, %s497
      %p506 = scmp.eq.s32.totalorder %s49, 1
      %p507 = por %p505, %p506
      %p508 = scmp.ne.s32.totalorder %s497, %s498
      %p509 = scmp.eq.s32.totalorder %s49, 0
      %p510 = por %p508, %p509
      %p511 = scmp.ne.s32.totalorder %s497, %s498
      %p512 = scmp.eq.s32.totalorder %s50, 1
      %p513 = por %p511, %p512
      %p515 = scmp.ne.s32.totalorder %s498, %s514
      %p516 = scmp.eq.s32.totalorder %s50, 0
      %p517 = por %p515, %p516
      %s518 = ssub.s32 %s44, %s51
      %p519 = scmp.eq.s32.totalorder %s518, 0
      %s521 = sadd.s32 %s520, 1
      %s522 = scalar_select %p519, %s520, %s521
      %p525 = pneg %p519
      %p526 = scmp.eq.s32.totalorder %s44, 1
      %p527 = por %p525, %p526
      %p528 = scmp.ne.s32.totalorder %s520, %s523
      %p529 = scmp.eq.s32.totalorder %s44, 0
      %p530 = por %p528, %p529
      %p531 = scmp.ne.s32.totalorder %s520, %s523
      %p532 = scmp.eq.s32.totalorder %s49, 1
      %p533 = por %p531, %p532
      %p534 = scmp.ne.s32.totalorder %s523, %s524
      %p535 = scmp.eq.s32.totalorder %s49, 0
      %p536 = por %p534, %p535
      %p537 = scmp.ne.s32.totalorder %s523, %s524
      %p538 = scmp.eq.s32.totalorder %s50, 1
      %p539 = por %p537, %p538
      %p541 = scmp.ne.s32.totalorder %s524, %s540
      %p542 = scmp.eq.s32.totalorder %s50, 0
      %p543 = por %p541, %p542
      %p544 = scmp.le.s32.totalorder 1, %s44
      %p545 = scmp.lt.s32.totalorder %s44, 3
      %p546 = pnand %p544, %p545
      %p547 = pneg %p546
      // Predicated region
      $region9: #{tpu_custom_call.1} parent=5 // pred_check
        _
      $region10: #{tpu_custom_call.1} parent=5 // pred_check_branch
        %549 = sbr.rel (%p546) target = $region12
      $region11: #{tpu_custom_call.1} parent=5 // pred_region
        %s550 = ssub.s32 %s44, 1
        // Predicated region
        $region13: #{tpu_custom_call.1} parent=11 // pred_check
          %p551 = pneg %p91
        $region14: #{tpu_custom_call.1} parent=11 // pred_check_branch
          %553 = sbr.rel (%p551) target = $region16
        $region15: #{tpu_custom_call.1} parent=11 // pred_region
          %s555 = ssub.s32 1024, 1024
          %556 = vsyncadd [#allocation6], %s555
          %s557 = sshll.u32 [#allocation5], 4
          %s558 = int_to_ptr.vmem [resolvable:$true] %s557
          %563 = dma.hbm_to_vmem [thread:$0]  %s1, 1024, %s558, [#allocation6], 64, 64, 4
        $region16: #{tpu_custom_call.1} parent=11 // pred_fallthru
          _
        // Predicated region
        $region17: #{tpu_custom_call.1} parent=11 // pred_check
          %p564 = pneg %p112
        $region18: #{tpu_custom_call.1} parent=11 // pred_check_branch
          %566 = sbr.rel (%p564) target = $region20
        $region19: #{tpu_custom_call.1} parent=11 // pred_region
          _
        $region20: #{tpu_custom_call.1} parent=11 // pred_fallthru
          _
        // Predicated region
        $region21: #{tpu_custom_call.1} parent=11 // pred_check
          %p567 = pneg %p133
        $region22: #{tpu_custom_call.1} parent=11 // pred_check_branch
          %569 = sbr.rel (%p567) target = $region24
        $region23: #{tpu_custom_call.1} parent=11 // pred_region
          %s571 = ssub.s32 1024, 1024
          %572 = vsyncadd [#allocation6], %s571
          %s573 = sshll.u32 [#allocation7], 4
          %s574 = int_to_ptr.vmem [resolvable:$true] %s573
          %579 = dma.hbm_to_vmem [thread:$0]  %s3, 1024, %s574, [#allocation6], 64, 64, 4
        $region24: #{tpu_custom_call.1} parent=11 // pred_fallthru
          _
        // Predicated region
        $region25: #{tpu_custom_call.1} parent=11 // pred_check
          %p580 = pneg %p154
        $region26: #{tpu_custom_call.1} parent=11 // pred_check_branch
          %582 = sbr.rel (%p580) target = $region28
        $region27: #{tpu_custom_call.1} parent=11 // pred_region
          _
        $region28: #{tpu_custom_call.1} parent=11 // pred_fallthru
          _
        // Predicated region
        $region29: #{tpu_custom_call.1} parent=11 // pred_check
          %p583 = pneg %p175
        $region30: #{tpu_custom_call.1} parent=11 // pred_check_branch
          %585 = sbr.rel (%p583) target = $region32
        $region31: #{tpu_custom_call.1} parent=11 // pred_region
          %s587 = ssub.s32 1024, 1024
          %588 = vsyncadd [#allocation9], %s587
          %s589 = sshll.u32 [#allocation8], 4
          %s590 = int_to_ptr.vmem [resolvable:$true] %s589
          %595 = dma.hbm_to_vmem [thread:$0]  %s5, 1024, %s590, [#allocation9], 64, 64, 4
        $region32: #{tpu_custom_call.1} parent=11 // pred_fallthru
          _
        // Predicated region
        $region33: #{tpu_custom_call.1} parent=11 // pred_check
          %p596 = pneg %p196
        $region34: #{tpu_custom_call.1} parent=11 // pred_check_branch
          %598 = sbr.rel (%p596) target = $region36
        $region35: #{tpu_custom_call.1} parent=11 // pred_region
          _
        $region36: #{tpu_custom_call.1} parent=11 // pred_fallthru
          _
        // Predicated region
        $region37: #{tpu_custom_call.1} parent=11 // pred_check
          %p599 = pneg %p217
        $region38: #{tpu_custom_call.1} parent=11 // pred_check_branch
          %601 = sbr.rel (%p599) target = $region40
        $region39: #{tpu_custom_call.1} parent=11 // pred_region
          %s603 = ssub.s32 1024, 1024
          %604 = vsyncadd [#allocation9], %s603
          %s605 = sshll.u32 [#allocation10], 4
          %s606 = int_to_ptr.vmem [resolvable:$true] %s605
          %611 = dma.hbm_to_vmem [thread:$0]  %s7, 1024, %s606, [#allocation9], 64, 64, 4
        $region40: #{tpu_custom_call.1} parent=11 // pred_fallthru
          _
        // Predicated region
        $region41: #{tpu_custom_call.1} parent=11 // pred_check
          %p612 = pneg %p238
        $region42: #{tpu_custom_call.1} parent=11 // pred_check_branch
          %614 = sbr.rel (%p612) target = $region44
        $region43: #{tpu_custom_call.1} parent=11 // pred_region
          _
        $region44: #{tpu_custom_call.1} parent=11 // pred_fallthru
          _
        // Predicated region
        $region45: #{tpu_custom_call.1} parent=11 // pred_check
          %p615 = pneg %p259
        $region46: #{tpu_custom_call.1} parent=11 // pred_check_branch
          %617 = sbr.rel (%p615) target = $region48
        $region47: #{tpu_custom_call.1} parent=11 // pred_region
          %s619 = ssub.s32 1024, 1024
          %620 = vsyncadd [#allocation12], %s619
          %s621 = sshll.u32 [#allocation11], 4
          %s622 = int_to_ptr.vmem [resolvable:$true] %s621
          %627 = dma.hbm_to_vmem [thread:$0]  %s9, 1024, %s622, [#allocation12], 64, 64, 4
        $region48: #{tpu_custom_call.1} parent=11 // pred_fallthru
          _
        // Predicated region
        $region49: #{tpu_custom_call.1} parent=11 // pred_check
          %p628 = pneg %p280
        $region50: #{tpu_custom_call.1} parent=11 // pred_check_branch
          %630 = sbr.rel (%p628) target = $region52
        $region51: #{tpu_custom_call.1} parent=11 // pred_region
          _
        $region52: #{tpu_custom_call.1} parent=11 // pred_fallthru
          _
        // Predicated region
        $region53: #{tpu_custom_call.1} parent=11 // pred_check
          %p631 = pneg %p301
        $region54: #{tpu_custom_call.1} parent=11 // pred_check_branch
          %633 = sbr.rel (%p631) target = $region56
        $region55: #{tpu_custom_call.1} parent=11 // pred_region
          %s635 = ssub.s32 1024, 1024
          %636 = vsyncadd [#allocation12], %s635
          %s637 = sshll.u32 [#allocation13], 4
          %s638 = int_to_ptr.vmem [resolvable:$true] %s637
          %643 = dma.hbm_to_vmem [thread:$0]  %s11, 1024, %s638, [#allocation12], 64, 64, 4
        $region56: #{tpu_custom_call.1} parent=11 // pred_fallthru
          _
        // Predicated region
        $region57: #{tpu_custom_call.1} parent=11 // pred_check
          %p644 = pneg %p322
        $region58: #{tpu_custom_call.1} parent=11 // pred_check_branch
          %646 = sbr.rel (%p644) target = $region60
        $region59: #{tpu_custom_call.1} parent=11 // pred_region
          _
        $region60: #{tpu_custom_call.1} parent=11 // pred_fallthru
          _
        // Predicated region
        $region61: #{tpu_custom_call.1} parent=11 // pred_check
          %p647 = pneg %p343
        $region62: #{tpu_custom_call.1} parent=11 // pred_check_branch
          %649 = sbr.rel (%p647) target = $region64
        $region63: #{tpu_custom_call.1} parent=11 // pred_region
          %s651 = ssub.s32 1024, 1024
          %652 = vsyncadd [#allocation15], %s651
          %s653 = sshll.u32 [#allocation14], 4
          %s654 = int_to_ptr.vmem [resolvable:$true] %s653
          %659 = dma.hbm_to_vmem [thread:$0]  %s13, 1024, %s654, [#allocation15], 64, 64, 4
        $region64: #{tpu_custom_call.1} parent=11 // pred_fallthru
          _
        // Predicated region
        $region65: #{tpu_custom_call.1} parent=11 // pred_check
          %p660 = pneg %p364
        $region66: #{tpu_custom_call.1} parent=11 // pred_check_branch
          %662 = sbr.rel (%p660) target = $region68
        $region67: #{tpu_custom_call.1} parent=11 // pred_region
          _
        $region68: #{tpu_custom_call.1} parent=11 // pred_fallthru
          _
        // Predicated region
        $region69: #{tpu_custom_call.1} parent=11 // pred_check
          %p663 = pneg %p385
        $region70: #{tpu_custom_call.1} parent=11 // pred_check_branch
          %665 = sbr.rel (%p663) target = $region72
        $region71: #{tpu_custom_call.1} parent=11 // pred_region
          %s667 = ssub.s32 1024, 1024
          %668 = vsyncadd [#allocation15], %s667
          %s669 = sshll.u32 [#allocation16], 4
          %s670 = int_to_ptr.vmem [resolvable:$true] %s669
          %675 = dma.hbm_to_vmem [thread:$0]  %s15, 1024, %s670, [#allocation15], 64, 64, 4
        $region72: #{tpu_custom_call.1} parent=11 // pred_fallthru
          _
        // Predicated region
        $region73: #{tpu_custom_call.1} parent=11 // pred_check
          %p676 = pneg %p406
        $region74: #{tpu_custom_call.1} parent=11 // pred_check_branch
          %678 = sbr.rel (%p676) target = $region76
        $region75: #{tpu_custom_call.1} parent=11 // pred_region
          _
        $region76: #{tpu_custom_call.1} parent=11 // pred_fallthru
          _
      $region12: #{tpu_custom_call.1} parent=5 // pred_fallthru
        _
      %p679 = scmp.lt.s32.totalorder %s44, 2
      // Predicated region
      $region77: #{tpu_custom_call.1} parent=5 // pred_check
        %p680 = pneg %p679
      $region78: #{tpu_custom_call.1} parent=5 // pred_check_branch
        %682 = sbr.rel (%p680) target = $region80
      $region79: #{tpu_custom_call.1} parent=5 // pred_region
        // Predicated region
        $region81: #{tpu_custom_call.1} parent=79 // pred_check
          %p683 = pneg %p64
        $region82: #{tpu_custom_call.1} parent=79 // pred_check_branch
          %685 = sbr.rel (%p683) target = $region84
        $region83: #{tpu_custom_call.1} parent=79 // pred_region
          %s686 = sand.u32 %s54, 1
          %s687 = scalar_lea.sflag [#allocation3], %s686
          %s688 = sand.u32 %s54, 1
          %s689 = smul.addr %s688, 4
          %s690 = scalar_lea.vmem [#allocation2], %s689
          %s692 = ssub.s32 64, 64
          %693 = vsyncadd %s687, %s692
          %s694 = smul.addr %s44, 64
          %s695 = scalar_lea.hbm %s0, %s694
          %s697 = sshll.u32 %s690, 4
          %s698 = int_to_ptr.vmem [resolvable:$true] %s697
          %700 = dma.hbm_to_vmem [thread:$0]  %s695, 64, %s698, %s687
        $region84: #{tpu_custom_call.1} parent=79 // pred_fallthru
          _
      $region80: #{tpu_custom_call.1} parent=5 // pred_fallthru
        _
      %p701 = scmp.le.s32.totalorder 1, %s44
      %p702 = scmp.lt.s32.totalorder %s44, 3
      %p703 = pnand %p701, %p702
      %p704 = pneg %p703
      // Predicated region
      $region85: #{tpu_custom_call.1} parent=5 // pred_check
        _
      $region86: #{tpu_custom_call.1} parent=5 // pred_check_branch
        %706 = sbr.rel (%p703) target = $region88
      $region87: #{tpu_custom_call.1} parent=5 // pred_region
        %s707 = ssub.s32 %s44, 1
        %s708 = sand.u32 %s57, 1
        %s709 = scalar_lea.sflag [#allocation3], %s708
        %s710 = sand.u32 %s57, 1
        %s711 = smul.addr %s710, 4
        %s712 = scalar_lea.vmem [#allocation2], %s711
        // Predicated region
        $region89: #{tpu_custom_call.1} parent=87 // pred_check
          %p713 = pneg %p70
        $region90: #{tpu_custom_call.1} parent=87 // pred_check_branch
          %715 = sbr.rel (%p713) target = $region92
        $region91: #{tpu_custom_call.1} parent=87 // pred_region
          %716 = dma.done %s709, 64
        $region92: #{tpu_custom_call.1} parent=87 // pred_fallthru
          _
        // Predicated region
        $region93: #{tpu_custom_call.1} parent=87 // pred_check
          %p717 = pneg %p91
        $region94: #{tpu_custom_call.1} parent=87 // pred_check_branch
          %719 = sbr.rel (%p717) target = $region96
        $region95: #{tpu_custom_call.1} parent=87 // pred_region
          %720 = dma.done [#allocation6], 1024
        $region96: #{tpu_custom_call.1} parent=87 // pred_fallthru
          _
        // Predicated region
        $region97: #{tpu_custom_call.1} parent=87 // pred_check
          %p721 = pneg %p133
        $region98: #{tpu_custom_call.1} parent=87 // pred_check_branch
          %723 = sbr.rel (%p721) target = $region100
        $region99: #{tpu_custom_call.1} parent=87 // pred_region
          %724 = dma.done [#allocation6], 1024
        $region100: #{tpu_custom_call.1} parent=87 // pred_fallthru
          _
        // Predicated region
        $region101: #{tpu_custom_call.1} parent=87 // pred_check
          %p725 = pneg %p175
        $region102: #{tpu_custom_call.1} parent=87 // pred_check_branch
          %727 = sbr.rel (%p725) target = $region104
        $region103: #{tpu_custom_call.1} parent=87 // pred_region
          %728 = dma.done [#allocation9], 1024
        $region104: #{tpu_custom_call.1} parent=87 // pred_fallthru
          _
        // Predicated region
        $region105: #{tpu_custom_call.1} parent=87 // pred_check
          %p729 = pneg %p217
        $region106: #{tpu_custom_call.1} parent=87 // pred_check_branch
          %731 = sbr.rel (%p729) target = $region108
        $region107: #{tpu_custom_call.1} parent=87 // pred_region
          %732 = dma.done [#allocation9], 1024
        $region108: #{tpu_custom_call.1} parent=87 // pred_fallthru
          _
        // Predicated region
        $region109: #{tpu_custom_call.1} parent=87 // pred_check
          %p733 = pneg %p259
        $region110: #{tpu_custom_call.1} parent=87 // pred_check_branch
          %735 = sbr.rel (%p733) target = $region112
        $region111: #{tpu_custom_call.1} parent=87 // pred_region
          %736 = dma.done [#allocation12], 1024
        $region112: #{tpu_custom_call.1} parent=87 // pred_fallthru
          _
        // Predicated region
        $region113: #{tpu_custom_call.1} parent=87 // pred_check
          %p737 = pneg %p301
        $region114: #{tpu_custom_call.1} parent=87 // pred_check_branch
          %739 = sbr.rel (%p737) target = $region116
        $region115: #{tpu_custom_call.1} parent=87 // pred_region
          %740 = dma.done [#allocation12], 1024
        $region116: #{tpu_custom_call.1} parent=87 // pred_fallthru
          _
        // Predicated region
        $region117: #{tpu_custom_call.1} parent=87 // pred_check
          %p741 = pneg %p343
        $region118: #{tpu_custom_call.1} parent=87 // pred_check_branch
          %743 = sbr.rel (%p741) target = $region120
        $region119: #{tpu_custom_call.1} parent=87 // pred_region
          %744 = dma.done [#allocation15], 1024
        $region120: #{tpu_custom_call.1} parent=87 // pred_fallthru
          _
        // Predicated region
        $region121: #{tpu_custom_call.1} parent=87 // pred_check
          %p745 = pneg %p385
        $region122: #{tpu_custom_call.1} parent=87 // pred_check_branch
          %747 = sbr.rel (%p745) target = $region124
        $region123: #{tpu_custom_call.1} parent=87 // pred_region
          %748 = dma.done [#allocation15], 1024
        $region124: #{tpu_custom_call.1} parent=87 // pred_fallthru
          _
        %s749 = sand.u32 %s57, 1
        %s750 = scalar_lea.sflag [#allocation3], %s749
        %s751 = sand.u32 %s57, 1
        %s752 = smul.addr %s751, 4
        %s753 = scalar_lea.vmem [#allocation2], %s752
        %p754 = pneg %p70
        %p755 = pneg %p67
        %p756 = pneg %p91
        %p757 = pneg %p88
        %p758 = pneg %p112
        %p759 = pneg %p109
        %p760 = pneg %p133
        %p761 = pneg %p130
        %p762 = pneg %p154
        %p763 = pneg %p151
        %p764 = pneg %p175
        %p765 = pneg %p172
        %p766 = pneg %p196
        %p767 = pneg %p193
        %p768 = pneg %p217
        %p769 = pneg %p214
        %p770 = pneg %p238
        %p771 = pneg %p235
        %p772 = pneg %p259
        %p773 = pneg %p256
        %p774 = pneg %p280
        %p775 = pneg %p277
        %p776 = pneg %p301
        %p777 = pneg %p298
        %p778 = pneg %p322
        %p779 = pneg %p319
        %p780 = pneg %p343
        %p781 = pneg %p340
        %p782 = pneg %p364
        %p783 = pneg %p361
        %p784 = pneg %p385
        %p785 = pneg %p382
        %p786 = pneg %p406
        %p787 = pneg %p403
        %p788 = pneg %p432
        %p789 = pneg %p429
        %s790 = sand.u32 %s419, 1
        %s791 = scalar_lea.sflag [#allocation4], %s790
        %s792 = sand.u32 %s419, 1
        %s793 = smul.addr %s792, 8
        %s794 = scalar_lea.vmem [#allocation17], %s793
        %p795 = pneg %p458
        %p796 = pneg %p455
        %s797 = sand.u32 %s49, 1
        %s798 = scalar_lea.sflag [#allocation19], %s797
        %s799 = sand.u32 %s445, 1
        %s800 = smul.addr %s799, 8
        %s801 = scalar_lea.vmem [#allocation18], %s800
        %p802 = pneg %p484
        %p803 = pneg %p481
        %s804 = sand.u32 %s49, 1
        %s805 = scalar_lea.sflag [#allocation19], %s804
        %s806 = sand.u32 %s471, 1
        %s807 = smul.addr %s806, 8
        %s808 = scalar_lea.vmem [#allocation20], %s807
        %p809 = pneg %p510
        %p810 = pneg %p507
        %s811 = sand.u32 %s49, 1
        %s812 = scalar_lea.sflag [#allocation22], %s811
        %s813 = sand.u32 %s497, 1
        %s814 = smul.addr %s813, 8
        %s815 = scalar_lea.vmem [#allocation21], %s814
        %p816 = pneg %p536
        %p817 = pneg %p533
        %s818 = sand.u32 %s49, 1
        %s819 = scalar_lea.sflag [#allocation22], %s818
        %s820 = sand.u32 %s523, 1
        %s821 = smul.addr %s820, 8
        %s822 = scalar_lea.vmem [#allocation23], %s821
        %v824 = vld [vmem:[%s712] sm:$0xf]
        %v825 = vld [vmem:[#allocation5] sm:$0xf]
        %v826 = vld [vmem:[#allocation5 + $0x4] sm:$0xf]
        %v827 = vld [vmem:[#allocation5 + $0x8] sm:$0xf]
        %v828 = vld [vmem:[#allocation5 + $0xc] sm:$0xf]
        %v829 = vld [vmem:[#allocation5 + $0x10] sm:$0xf]
        %v830 = vld [vmem:[#allocation5 + $0x14] sm:$0xf]
        %v831 = vld [vmem:[#allocation5 + $0x18] sm:$0xf]
        %v832 = vld [vmem:[#allocation5 + $0x1c] sm:$0xf]
        %v833 = vld [vmem:[#allocation5 + $0x20] sm:$0xf]
        %v834 = vld [vmem:[#allocation5 + $0x24] sm:$0xf]
        %v835 = vld [vmem:[#allocation5 + $0x28] sm:$0xf]
        %v836 = vld [vmem:[#allocation5 + $0x2c] sm:$0xf]
        %v837 = vld [vmem:[#allocation5 + $0x30] sm:$0xf]
        %v838 = vld [vmem:[#allocation5 + $0x34] sm:$0xf]
        %v839 = vld [vmem:[#allocation5 + $0x38] sm:$0xf]
        %v840 = vld [vmem:[#allocation5 + $0x3c] sm:$0xf]
        %v841 = vld [vmem:[%s2] sm:$0x1]
        %v843 = vlaneseq
        %v844 = vshrl.u32 %v843, 7
        %v845 = vsub.s32 0, %v844
        %v846 = vrot.slane %v841, %v845
        %v864 = vunpack.c.l.b16 %v825
        %v865 = vunpack.c.l.b16 %v826
        %v866 = vunpack.c.l.b16 %v827
        %v867 = vunpack.c.l.b16 %v828
        %v868 = vunpack.c.l.b16 %v829
        %v869 = vunpack.c.l.b16 %v830
        %v870 = vunpack.c.l.b16 %v831
        %v871 = vunpack.c.l.b16 %v832
        %v872 = vunpack.c.l.b16 %v833
        %v873 = vunpack.c.l.b16 %v834
        %v874 = vunpack.c.l.b16 %v835
        %v875 = vunpack.c.l.b16 %v836
        %v876 = vunpack.c.l.b16 %v837
        %v877 = vunpack.c.l.b16 %v838
        %v878 = vunpack.c.l.b16 %v839
        %v879 = vunpack.c.l.b16 %v840
        %v880 = vpack.c.b16 %v865, %v864
        %v881 = vpack.c.b16 %v867, %v866
        %v882 = vpack.c.b16 %v869, %v868
        %v883 = vpack.c.b16 %v871, %v870
        %v884 = vpack.c.b16 %v873, %v872
        %v885 = vpack.c.b16 %v875, %v874
        %v886 = vpack.c.b16 %v877, %v876
        %v887 = vpack.c.b16 %v879, %v878
        %896 = vmatprep.subr.bf16.mxu0 0
        %897 = vmatpush1.bf16.msra.mxu0 %v880
        %898 = vmatprep.subr.bf16.mxu0 0
        %899 = vmatpush1.bf16.msra.mxu0 %v881
        %900 = vmatprep.subr.bf16.mxu0 0
        %901 = vmatpush1.bf16.msra.mxu0 %v882
        %902 = vmatprep.subr.bf16.mxu0 0
        %903 = vmatpush1.bf16.msra.mxu0 %v883
        %904 = vmatprep.subr.bf16.mxu0 0
        %905 = vmatpush1.bf16.msra.mxu0 %v884
        %906 = vmatprep.subr.bf16.mxu0 0
        %907 = vmatpush1.bf16.msra.mxu0 %v885
        %908 = vmatprep.subr.bf16.mxu0 0
        %909 = vmatpush1.bf16.msra.mxu0 %v886
        %910 = vmatprep.subr.bf16.mxu0 0
        %911 = vmatpush1.bf16.msra.mxu0 %v887
        %912 = vmatprep.subr.bf16.mxu0 0
        %913 = vmatpush1.bf16.msra.mxu0 0
        %914 = vmatprep.subr.bf16.mxu0 0
        %915 = vmatpush1.bf16.msra.mxu0 0
        %916 = vmatprep.subr.bf16.mxu0 0
        %917 = vmatpush1.bf16.msra.mxu0 0
        %918 = vmatprep.subr.bf16.mxu0 0
        %919 = vmatpush1.bf16.msra.mxu0 0
        %920 = vmatprep.subr.bf16.mxu0 0
        %921 = vmatpush1.bf16.msra.mxu0 0
        %922 = vmatprep.subr.bf16.mxu0 0
        %923 = vmatpush1.bf16.msra.mxu0 0
        %924 = vmatprep.subr.bf16.mxu0 0
        %925 = vmatpush1.bf16.msra.mxu0 0
        %926 = vmatprep.subr.bf16.mxu0 0
        %927 = vmatpush1.bf16.msra.mxu0 0
        %928 = vmatprep.mubr.bf16.mxu0 0
        %929 = vmatmul.mubr.bf16.gmra.mrb[0].mxu0 %v824
        %v930 = vpop.f32.mrb[0].mxu0
        %v931 = vadd.f32 %v846, %v930
        %v932 = vpop.f32.mrb[0].mxu0
        %v933 = vpop.f32.mrb[0].mxu0
        %v934 = vpop.f32.mrb[0].mxu0
        %935 = vdwg.mxu0
        %v936 = vmax.f32 %v931, 0.0
        %v937 = vpack.c.bf16 %v936, %v936
        %v938 = vld [vmem:[#allocation7] sm:$0xf]
        %v939 = vld [vmem:[#allocation7 + $0x4] sm:$0xf]
        %v940 = vld [vmem:[#allocation7 + $0x8] sm:$0xf]
        %v941 = vld [vmem:[#allocation7 + $0xc] sm:$0xf]
        %v942 = vld [vmem:[#allocation7 + $0x10] sm:$0xf]
        %v943 = vld [vmem:[#allocation7 + $0x14] sm:$0xf]
        %v944 = vld [vmem:[#allocation7 + $0x18] sm:$0xf]
        %v945 = vld [vmem:[#allocation7 + $0x1c] sm:$0xf]
        %v946 = vld [vmem:[#allocation7 + $0x20] sm:$0xf]
        %v947 = vld [vmem:[#allocation7 + $0x24] sm:$0xf]
        %v948 = vld [vmem:[#allocation7 + $0x28] sm:$0xf]
        %v949 = vld [vmem:[#allocation7 + $0x2c] sm:$0xf]
        %v950 = vld [vmem:[#allocation7 + $0x30] sm:$0xf]
        %v951 = vld [vmem:[#allocation7 + $0x34] sm:$0xf]
        %v952 = vld [vmem:[#allocation7 + $0x38] sm:$0xf]
        %v953 = vld [vmem:[#allocation7 + $0x3c] sm:$0xf]
        %v954 = vld [vmem:[%s4] sm:$0x1]
        %v956 = vlaneseq
        %v957 = vshrl.u32 %v956, 7
        %v958 = vsub.s32 0, %v957
        %v959 = vrot.slane %v954, %v958
        %v977 = vunpack.c.l.b16 %v938
        %v978 = vunpack.c.l.b16 %v939
        %v979 = vunpack.c.l.b16 %v940
        %v980 = vunpack.c.l.b16 %v941
        %v981 = vunpack.c.l.b16 %v942
        %v982 = vunpack.c.l.b16 %v943
        %v983 = vunpack.c.l.b16 %v944
        %v984 = vunpack.c.l.b16 %v945
        %v985 = vunpack.c.l.b16 %v946
        %v986 = vunpack.c.l.b16 %v947
        %v987 = vunpack.c.l.b16 %v948
        %v988 = vunpack.c.l.b16 %v949
        %v989 = vunpack.c.l.b16 %v950
        %v990 = vunpack.c.l.b16 %v951
        %v991 = vunpack.c.l.b16 %v952
        %v992 = vunpack.c.l.b16 %v953
        %v993 = vpack.c.b16 %v978, %v977
        %v994 = vpack.c.b16 %v980, %v979
        %v995 = vpack.c.b16 %v982, %v981
        %v996 = vpack.c.b16 %v984, %v983
        %v997 = vpack.c.b16 %v986, %v985
        %v998 = vpack.c.b16 %v988, %v987
        %v999 = vpack.c.b16 %v990, %v989
        %v1000 = vpack.c.b16 %v992, %v991
        %1009 = vmatprep.subr.bf16.mxu0 0
        %1010 = vmatpush1.bf16.msra.mxu0 %v993
        %1011 = vmatprep.subr.bf16.mxu0 0
        %1012 = vmatpush1.bf16.msra.mxu0 %v994
        %1013 = vmatprep.subr.bf16.mxu0 0
        %1014 = vmatpush1.bf16.msra.mxu0 %v995
        %1015 = vmatprep.subr.bf16.mxu0 0
        %1016 = vmatpush1.bf16.msra.mxu0 %v996
        %1017 = vmatprep.subr.bf16.mxu0 0
        %1018 = vmatpush1.bf16.msra.mxu0 %v997
        %1019 = vmatprep.subr.bf16.mxu0 0
        %1020 = vmatpush1.bf16.msra.mxu0 %v998
        %1021 = vmatprep.subr.bf16.mxu0 0
        %1022 = vmatpush1.bf16.msra.mxu0 %v999
        %1023 = vmatprep.subr.bf16.mxu0 0
        %1024 = vmatpush1.bf16.msra.mxu0 %v1000
        %1025 = vmatprep.subr.bf16.mxu0 0
        %1026 = vmatpush1.bf16.msra.mxu0 0
        %1027 = vmatprep.subr.bf16.mxu0 0
        %1028 = vmatpush1.bf16.msra.mxu0 0
        %1029 = vmatprep.subr.bf16.mxu0 0
        %1030 = vmatpush1.bf16.msra.mxu0 0
        %1031 = vmatprep.subr.bf16.mxu0 0
        %1032 = vmatpush1.bf16.msra.mxu0 0
        %1033 = vmatprep.subr.bf16.mxu0 0
        %1034 = vmatpush1.bf16.msra.mxu0 0
        %1035 = vmatprep.subr.bf16.mxu0 0
        %1036 = vmatpush1.bf16.msra.mxu0 0
        %1037 = vmatprep.subr.bf16.mxu0 0
        %1038 = vmatpush1.bf16.msra.mxu0 0
        %1039 = vmatprep.subr.bf16.mxu0 0
        %1040 = vmatpush1.bf16.msra.mxu0 0
        %1041 = vmatprep.mubr.bf16.mxu0 0
        %1042 = vmatmul.mubr.bf16.gmra.mrb[0].mxu0 %v937
        %v1043 = vpop.f32.mrb[0].mxu0
        %v1044 = vadd.f32 %v959, %v1043
        %v1045 = vpop.f32.mrb[0].mxu0
        %v1046 = vpop.f32.mrb[0].mxu0
        %v1047 = vpop.f32.mrb[0].mxu0
        %1048 = vdwg.mxu0
        %v1049 = vmax.f32 %v1044, 0.0
        %v1050 = vpack.c.bf16 %v1049, %v1049
        %v1051 = vld [vmem:[#allocation8] sm:$0xf]
        %v1052 = vld [vmem:[#allocation8 + $0x4] sm:$0xf]
        %v1053 = vld [vmem:[#allocation8 + $0x8] sm:$0xf]
        %v1054 = vld [vmem:[#allocation8 + $0xc] sm:$0xf]
        %v1055 = vld [vmem:[#allocation8 + $0x10] sm:$0xf]
        %v1056 = vld [vmem:[#allocation8 + $0x14] sm:$0xf]
        %v1057 = vld [vmem:[#allocation8 + $0x18] sm:$0xf]
        %v1058 = vld [vmem:[#allocation8 + $0x1c] sm:$0xf]
        %v1059 = vld [vmem:[#allocation8 + $0x20] sm:$0xf]
        %v1060 = vld [vmem:[#allocation8 + $0x24] sm:$0xf]
        %v1061 = vld [vmem:[#allocation8 + $0x28] sm:$0xf]
        %v1062 = vld [vmem:[#allocation8 + $0x2c] sm:$0xf]
        %v1063 = vld [vmem:[#allocation8 + $0x30] sm:$0xf]
        %v1064 = vld [vmem:[#allocation8 + $0x34] sm:$0xf]
        %v1065 = vld [vmem:[#allocation8 + $0x38] sm:$0xf]
        %v1066 = vld [vmem:[#allocation8 + $0x3c] sm:$0xf]
        %v1067 = vld [vmem:[%s6] sm:$0x1]
        %v1069 = vlaneseq
        %v1070 = vshrl.u32 %v1069, 7
        %v1071 = vsub.s32 0, %v1070
        %v1072 = vrot.slane %v1067, %v1071
        %v1090 = vunpack.c.l.b16 %v1051
        %v1091 = vunpack.c.l.b16 %v1052
        %v1092 = vunpack.c.l.b16 %v1053
        %v1093 = vunpack.c.l.b16 %v1054
        %v1094 = vunpack.c.l.b16 %v1055
        %v1095 = vunpack.c.l.b16 %v1056
        %v1096 = vunpack.c.l.b16 %v1057
        %v1097 = vunpack.c.l.b16 %v1058
        %v1098 = vunpack.c.l.b16 %v1059
        %v1099 = vunpack.c.l.b16 %v1060
        %v1100 = vunpack.c.l.b16 %v1061
        %v1101 = vunpack.c.l.b16 %v1062
        %v1102 = vunpack.c.l.b16 %v1063
        %v1103 = vunpack.c.l.b16 %v1064
        %v1104 = vunpack.c.l.b16 %v1065
        %v1105 = vunpack.c.l.b16 %v1066
        %v1106 = vpack.c.b16 %v1091, %v1090
        %v1107 = vpack.c.b16 %v1093, %v1092
        %v1108 = vpack.c.b16 %v1095, %v1094
        %v1109 = vpack.c.b16 %v1097, %v1096
        %v1110 = vpack.c.b16 %v1099, %v1098
        %v1111 = vpack.c.b16 %v1101, %v1100
        %v1112 = vpack.c.b16 %v1103, %v1102
        %v1113 = vpack.c.b16 %v1105, %v1104
        %1122 = vmatprep.subr.bf16.mxu0 0
        %1123 = vmatpush1.bf16.msra.mxu0 %v1106
        %1124 = vmatprep.subr.bf16.mxu0 0
        %1125 = vmatpush1.bf16.msra.mxu0 %v1107
        %1126 = vmatprep.subr.bf16.mxu0 0
        %1127 = vmatpush1.bf16.msra.mxu0 %v1108
        %1128 = vmatprep.subr.bf16.mxu0 0
        %1129 = vmatpush1.bf16.msra.mxu0 %v1109
        %1130 = vmatprep.subr.bf16.mxu0 0
        %1131 = vmatpush1.bf16.msra.mxu0 %v1110
        %1132 = vmatprep.subr.bf16.mxu0 0
        %1133 = vmatpush1.bf16.msra.mxu0 %v1111
        %1134 = vmatprep.subr.bf16.mxu0 0
        %1135 = vmatpush1.bf16.msra.mxu0 %v1112
        %1136 = vmatprep.subr.bf16.mxu0 0
        %1137 = vmatpush1.bf16.msra.mxu0 %v1113
        %1138 = vmatprep.subr.bf16.mxu0 0
        %1139 = vmatpush1.bf16.msra.mxu0 0
        %1140 = vmatprep.subr.bf16.mxu0 0
        %1141 = vmatpush1.bf16.msra.mxu0 0
        %1142 = vmatprep.subr.bf16.mxu0 0
        %1143 = vmatpush1.bf16.msra.mxu0 0
        %1144 = vmatprep.subr.bf16.mxu0 0
        %1145 = vmatpush1.bf16.msra.mxu0 0
        %1146 = vmatprep.subr.bf16.mxu0 0
        %1147 = vmatpush1.bf16.msra.mxu0 0
        %1148 = vmatprep.subr.bf16.mxu0 0
        %1149 = vmatpush1.bf16.msra.mxu0 0
        %1150 = vmatprep.subr.bf16.mxu0 0
        %1151 = vmatpush1.bf16.msra.mxu0 0
        %1152 = vmatprep.subr.bf16.mxu0 0
        %1153 = vmatpush1.bf16.msra.mxu0 0
        %1154 = vmatprep.mubr.bf16.mxu0 0
        %1155 = vmatmul.mubr.bf16.gmra.mrb[0].mxu0 %v1050
        %v1156 = vpop.f32.mrb[0].mxu0
        %v1157 = vadd.f32 %v1072, %v1156
        %v1158 = vpop.f32.mrb[0].mxu0
        %v1159 = vpop.f32.mrb[0].mxu0
        %v1160 = vpop.f32.mrb[0].mxu0
        %1161 = vdwg.mxu0
        %v1162 = vmax.f32 %v1157, 0.0
        %v1163 = vpack.c.bf16 %v1162, %v1162
        %v1164 = vld [vmem:[#allocation10] sm:$0xf]
        %v1165 = vld [vmem:[#allocation10 + $0x4] sm:$0xf]
        %v1166 = vld [vmem:[#allocation10 + $0x8] sm:$0xf]
        %v1167 = vld [vmem:[#allocation10 + $0xc] sm:$0xf]
        %v1168 = vld [vmem:[#allocation10 + $0x10] sm:$0xf]
        %v1169 = vld [vmem:[#allocation10 + $0x14] sm:$0xf]
        %v1170 = vld [vmem:[#allocation10 + $0x18] sm:$0xf]
        %v1171 = vld [vmem:[#allocation10 + $0x1c] sm:$0xf]
        %v1172 = vld [vmem:[#allocation10 + $0x20] sm:$0xf]
        %v1173 = vld [vmem:[#allocation10 + $0x24] sm:$0xf]
        %v1174 = vld [vmem:[#allocation10 + $0x28] sm:$0xf]
        %v1175 = vld [vmem:[#allocation10 + $0x2c] sm:$0xf]
        %v1176 = vld [vmem:[#allocation10 + $0x30] sm:$0xf]
        %v1177 = vld [vmem:[#allocation10 + $0x34] sm:$0xf]
        %v1178 = vld [vmem:[#allocation10 + $0x38] sm:$0xf]
        %v1179 = vld [vmem:[#allocation10 + $0x3c] sm:$0xf]
        %v1180 = vld [vmem:[%s8] sm:$0x1]
        %v1182 = vlaneseq
        %v1183 = vshrl.u32 %v1182, 7
        %v1184 = vsub.s32 0, %v1183
        %v1185 = vrot.slane %v1180, %v1184
        %v1203 = vunpack.c.l.b16 %v1164
        %v1204 = vunpack.c.l.b16 %v1165
        %v1205 = vunpack.c.l.b16 %v1166
        %v1206 = vunpack.c.l.b16 %v1167
        %v1207 = vunpack.c.l.b16 %v1168
        %v1208 = vunpack.c.l.b16 %v1169
        %v1209 = vunpack.c.l.b16 %v1170
        %v1210 = vunpack.c.l.b16 %v1171
        %v1211 = vunpack.c.l.b16 %v1172
        %v1212 = vunpack.c.l.b16 %v1173
        %v1213 = vunpack.c.l.b16 %v1174
        %v1214 = vunpack.c.l.b16 %v1175
        %v1215 = vunpack.c.l.b16 %v1176
        %v1216 = vunpack.c.l.b16 %v1177
        %v1217 = vunpack.c.l.b16 %v1178
        %v1218 = vunpack.c.l.b16 %v1179
        %v1219 = vpack.c.b16 %v1204, %v1203
        %v1220 = vpack.c.b16 %v1206, %v1205
        %v1221 = vpack.c.b16 %v1208, %v1207
        %v1222 = vpack.c.b16 %v1210, %v1209
        %v1223 = vpack.c.b16 %v1212, %v1211
        %v1224 = vpack.c.b16 %v1214, %v1213
        %v1225 = vpack.c.b16 %v1216, %v1215
        %v1226 = vpack.c.b16 %v1218, %v1217
        %1235 = vmatprep.subr.bf16.mxu0 0
        %1236 = vmatpush1.bf16.msra.mxu0 %v1219
        %1237 = vmatprep.subr.bf16.mxu0 0
        %1238 = vmatpush1.bf16.msra.mxu0 %v1220
        %1239 = vmatprep.subr.bf16.mxu0 0
        %1240 = vmatpush1.bf16.msra.mxu0 %v1221
        %1241 = vmatprep.subr.bf16.mxu0 0
        %1242 = vmatpush1.bf16.msra.mxu0 %v1222
        %1243 = vmatprep.subr.bf16.mxu0 0
        %1244 = vmatpush1.bf16.msra.mxu0 %v1223
        %1245 = vmatprep.subr.bf16.mxu0 0
        %1246 = vmatpush1.bf16.msra.mxu0 %v1224
        %1247 = vmatprep.subr.bf16.mxu0 0
        %1248 = vmatpush1.bf16.msra.mxu0 %v1225
        %1249 = vmatprep.subr.bf16.mxu0 0
        %1250 = vmatpush1.bf16.msra.mxu0 %v1226
        %1251 = vmatprep.subr.bf16.mxu0 0
        %1252 = vmatpush1.bf16.msra.mxu0 0
        %1253 = vmatprep.subr.bf16.mxu0 0
        %1254 = vmatpush1.bf16.msra.mxu0 0
        %1255 = vmatprep.subr.bf16.mxu0 0
        %1256 = vmatpush1.bf16.msra.mxu0 0
        %1257 = vmatprep.subr.bf16.mxu0 0
        %1258 = vmatpush1.bf16.msra.mxu0 0
        %1259 = vmatprep.subr.bf16.mxu0 0
        %1260 = vmatpush1.bf16.msra.mxu0 0
        %1261 = vmatprep.subr.bf16.mxu0 0
        %1262 = vmatpush1.bf16.msra.mxu0 0
        %1263 = vmatprep.subr.bf16.mxu0 0
        %1264 = vmatpush1.bf16.msra.mxu0 0
        %1265 = vmatprep.subr.bf16.mxu0 0
        %1266 = vmatpush1.bf16.msra.mxu0 0
        %1267 = vmatprep.mubr.bf16.mxu0 0
        %1268 = vmatmul.mubr.bf16.gmra.mrb[0].mxu0 %v1163
        %v1269 = vpop.f32.mrb[0].mxu0
        %v1270 = vadd.f32 %v1185, %v1269
        %v1271 = vpop.f32.mrb[0].mxu0
        %v1272 = vpop.f32.mrb[0].mxu0
        %v1273 = vpop.f32.mrb[0].mxu0
        %1274 = vdwg.mxu0
        %v1275 = vpack.c.bf16 %v1270, %v1270
        %v1276 = vld [vmem:[#allocation11] sm:$0xf]
        %v1277 = vld [vmem:[#allocation11 + $0x4] sm:$0xf]
        %v1278 = vld [vmem:[#allocation11 + $0x8] sm:$0xf]
        %v1279 = vld [vmem:[#allocation11 + $0xc] sm:$0xf]
        %v1280 = vld [vmem:[#allocation11 + $0x10] sm:$0xf]
        %v1281 = vld [vmem:[#allocation11 + $0x14] sm:$0xf]
        %v1282 = vld [vmem:[#allocation11 + $0x18] sm:$0xf]
        %v1283 = vld [vmem:[#allocation11 + $0x1c] sm:$0xf]
        %v1284 = vld [vmem:[#allocation11 + $0x20] sm:$0xf]
        %v1285 = vld [vmem:[#allocation11 + $0x24] sm:$0xf]
        %v1286 = vld [vmem:[#allocation11 + $0x28] sm:$0xf]
        %v1287 = vld [vmem:[#allocation11 + $0x2c] sm:$0xf]
        %v1288 = vld [vmem:[#allocation11 + $0x30] sm:$0xf]
        %v1289 = vld [vmem:[#allocation11 + $0x34] sm:$0xf]
        %v1290 = vld [vmem:[#allocation11 + $0x38] sm:$0xf]
        %v1291 = vld [vmem:[#allocation11 + $0x3c] sm:$0xf]
        %v1292 = vld [vmem:[%s10] sm:$0x1]
        %v1294 = vlaneseq
        %v1295 = vshrl.u32 %v1294, 7
        %v1296 = vsub.s32 0, %v1295
        %v1297 = vrot.slane %v1292, %v1296
        %v1315 = vunpack.c.l.b16 %v1276
        %v1316 = vunpack.c.l.b16 %v1277
        %v1317 = vunpack.c.l.b16 %v1278
        %v1318 = vunpack.c.l.b16 %v1279
        %v1319 = vunpack.c.l.b16 %v1280
        %v1320 = vunpack.c.l.b16 %v1281
        %v1321 = vunpack.c.l.b16 %v1282
        %v1322 = vunpack.c.l.b16 %v1283
        %v1323 = vunpack.c.l.b16 %v1284
        %v1324 = vunpack.c.l.b16 %v1285
        %v1325 = vunpack.c.l.b16 %v1286
        %v1326 = vunpack.c.l.b16 %v1287
        %v1327 = vunpack.c.l.b16 %v1288
        %v1328 = vunpack.c.l.b16 %v1289
        %v1329 = vunpack.c.l.b16 %v1290
        %v1330 = vunpack.c.l.b16 %v1291
        %v1331 = vpack.c.b16 %v1316, %v1315
        %v1332 = vpack.c.b16 %v1318, %v1317
        %v1333 = vpack.c.b16 %v1320, %v1319
        %v1334 = vpack.c.b16 %v1322, %v1321
        %v1335 = vpack.c.b16 %v1324, %v1323
        %v1336 = vpack.c.b16 %v1326, %v1325
        %v1337 = vpack.c.b16 %v1328, %v1327
        %v1338 = vpack.c.b16 %v1330, %v1329
        %1347 = vmatprep.subr.bf16.mxu0 0
        %1348 = vmatpush1.bf16.msra.mxu0 %v1331
        %1349 = vmatprep.subr.bf16.mxu0 0
        %1350 = vmatpush1.bf16.msra.mxu0 %v1332
        %1351 = vmatprep.subr.bf16.mxu0 0
        %1352 = vmatpush1.bf16.msra.mxu0 %v1333
        %1353 = vmatprep.subr.bf16.mxu0 0
        %1354 = vmatpush1.bf16.msra.mxu0 %v1334
        %1355 = vmatprep.subr.bf16.mxu0 0
        %1356 = vmatpush1.bf16.msra.mxu0 %v1335
        %1357 = vmatprep.subr.bf16.mxu0 0
        %1358 = vmatpush1.bf16.msra.mxu0 %v1336
        %1359 = vmatprep.subr.bf16.mxu0 0
        %1360 = vmatpush1.bf16.msra.mxu0 %v1337
        %1361 = vmatprep.subr.bf16.mxu0 0
        %1362 = vmatpush1.bf16.msra.mxu0 %v1338
        %1363 = vmatprep.subr.bf16.mxu0 0
        %1364 = vmatpush1.bf16.msra.mxu0 0
        %1365 = vmatprep.subr.bf16.mxu0 0
        %1366 = vmatpush1.bf16.msra.mxu0 0
        %1367 = vmatprep.subr.bf16.mxu0 0
        %1368 = vmatpush1.bf16.msra.mxu0 0
        %1369 = vmatprep.subr.bf16.mxu0 0
        %1370 = vmatpush1.bf16.msra.mxu0 0
        %1371 = vmatprep.subr.bf16.mxu0 0
        %1372 = vmatpush1.bf16.msra.mxu0 0
        %1373 = vmatprep.subr.bf16.mxu0 0
        %1374 = vmatpush1.bf16.msra.mxu0 0
        %1375 = vmatprep.subr.bf16.mxu0 0
        %1376 = vmatpush1.bf16.msra.mxu0 0
        %1377 = vmatprep.subr.bf16.mxu0 0
        %1378 = vmatpush1.bf16.msra.mxu0 0
        %1379 = vmatprep.mubr.bf16.mxu0 0
        %1380 = vmatmul.mubr.bf16.gmra.mrb[0].mxu0 %v1275
        %v1381 = vpop.f32.mrb[0].mxu0
        %v1382 = vadd.f32 %v1297, %v1381
        %v1383 = vpop.f32.mrb[0].mxu0
        %v1384 = vpop.f32.mrb[0].mxu0
        %v1385 = vpop.f32.mrb[0].mxu0
        %1386 = vdwg.mxu0
        %v1387 = vmax.f32 %v1382, 0.0
        %v1388 = vpack.c.bf16 %v1387, %v1387
        %v1389 = vld [vmem:[#allocation13] sm:$0xf]
        %v1390 = vld [vmem:[#allocation13 + $0x4] sm:$0xf]
        %v1391 = vld [vmem:[#allocation13 + $0x8] sm:$0xf]
        %v1392 = vld [vmem:[#allocation13 + $0xc] sm:$0xf]
        %v1393 = vld [vmem:[#allocation13 + $0x10] sm:$0xf]
        %v1394 = vld [vmem:[#allocation13 + $0x14] sm:$0xf]
        %v1395 = vld [vmem:[#allocation13 + $0x18] sm:$0xf]
        %v1396 = vld [vmem:[#allocation13 + $0x1c] sm:$0xf]
        %v1397 = vld [vmem:[#allocation13 + $0x20] sm:$0xf]
        %v1398 = vld [vmem:[#allocation13 + $0x24] sm:$0xf]
        %v1399 = vld [vmem:[#allocation13 + $0x28] sm:$0xf]
        %v1400 = vld [vmem:[#allocation13 + $0x2c] sm:$0xf]
        %v1401 = vld [vmem:[#allocation13 + $0x30] sm:$0xf]
        %v1402 = vld [vmem:[#allocation13 + $0x34] sm:$0xf]
        %v1403 = vld [vmem:[#allocation13 + $0x38] sm:$0xf]
        %v1404 = vld [vmem:[#allocation13 + $0x3c] sm:$0xf]
        %v1405 = vld [vmem:[%s12] sm:$0x1]
        %v1407 = vlaneseq
        %v1408 = vshrl.u32 %v1407, 7
        %v1409 = vsub.s32 0, %v1408
        %v1410 = vrot.slane %v1405, %v1409
        %v1428 = vunpack.c.l.b16 %v1389
        %v1429 = vunpack.c.l.b16 %v1390
        %v1430 = vunpack.c.l.b16 %v1391
        %v1431 = vunpack.c.l.b16 %v1392
        %v1432 = vunpack.c.l.b16 %v1393
        %v1433 = vunpack.c.l.b16 %v1394
        %v1434 = vunpack.c.l.b16 %v1395
        %v1435 = vunpack.c.l.b16 %v1396
        %v1436 = vunpack.c.l.b16 %v1397
        %v1437 = vunpack.c.l.b16 %v1398
        %v1438 = vunpack.c.l.b16 %v1399
        %v1439 = vunpack.c.l.b16 %v1400
        %v1440 = vunpack.c.l.b16 %v1401
        %v1441 = vunpack.c.l.b16 %v1402
        %v1442 = vunpack.c.l.b16 %v1403
        %v1443 = vunpack.c.l.b16 %v1404
        %v1444 = vpack.c.b16 %v1429, %v1428
        %v1445 = vpack.c.b16 %v1431, %v1430
        %v1446 = vpack.c.b16 %v1433, %v1432
        %v1447 = vpack.c.b16 %v1435, %v1434
        %v1448 = vpack.c.b16 %v1437, %v1436
        %v1449 = vpack.c.b16 %v1439, %v1438
        %v1450 = vpack.c.b16 %v1441, %v1440
        %v1451 = vpack.c.b16 %v1443, %v1442
        %1460 = vmatprep.subr.bf16.mxu0 0
        %1461 = vmatpush1.bf16.msra.mxu0 %v1444
        %1462 = vmatprep.subr.bf16.mxu0 0
        %1463 = vmatpush1.bf16.msra.mxu0 %v1445
        %1464 = vmatprep.subr.bf16.mxu0 0
        %1465 = vmatpush1.bf16.msra.mxu0 %v1446
        %1466 = vmatprep.subr.bf16.mxu0 0
        %1467 = vmatpush1.bf16.msra.mxu0 %v1447
        %1468 = vmatprep.subr.bf16.mxu0 0
        %1469 = vmatpush1.bf16.msra.mxu0 %v1448
        %1470 = vmatprep.subr.bf16.mxu0 0
        %1471 = vmatpush1.bf16.msra.mxu0 %v1449
        %1472 = vmatprep.subr.bf16.mxu0 0
        %1473 = vmatpush1.bf16.msra.mxu0 %v1450
        %1474 = vmatprep.subr.bf16.mxu0 0
        %1475 = vmatpush1.bf16.msra.mxu0 %v1451
        %1476 = vmatprep.subr.bf16.mxu0 0
        %1477 = vmatpush1.bf16.msra.mxu0 0
        %1478 = vmatprep.subr.bf16.mxu0 0
        %1479 = vmatpush1.bf16.msra.mxu0 0
        %1480 = vmatprep.subr.bf16.mxu0 0
        %1481 = vmatpush1.bf16.msra.mxu0 0
        %1482 = vmatprep.subr.bf16.mxu0 0
        %1483 = vmatpush1.bf16.msra.mxu0 0
        %1484 = vmatprep.subr.bf16.mxu0 0
        %1485 = vmatpush1.bf16.msra.mxu0 0
        %1486 = vmatprep.subr.bf16.mxu0 0
        %1487 = vmatpush1.bf16.msra.mxu0 0
        %1488 = vmatprep.subr.bf16.mxu0 0
        %1489 = vmatpush1.bf16.msra.mxu0 0
        %1490 = vmatprep.subr.bf16.mxu0 0
        %1491 = vmatpush1.bf16.msra.mxu0 0
        %1492 = vmatprep.mubr.bf16.mxu0 0
        %1493 = vmatmul.mubr.bf16.gmra.mrb[0].mxu0 %v1388
        %v1494 = vpop.f32.mrb[0].mxu0
        %v1495 = vadd.f32 %v1410, %v1494
        %v1496 = vpop.f32.mrb[0].mxu0
        %v1497 = vpop.f32.mrb[0].mxu0
        %v1498 = vpop.f32.mrb[0].mxu0
        %1499 = vdwg.mxu0
        %v1500 = vmax.f32 %v1495, 0.0
        %v1501 = vpack.c.bf16 %v1500, %v1500
        %v1502 = vld [vmem:[#allocation14] sm:$0xf]
        %v1503 = vld [vmem:[#allocation14 + $0x4] sm:$0xf]
        %v1504 = vld [vmem:[#allocation14 + $0x8] sm:$0xf]
        %v1505 = vld [vmem:[#allocation14 + $0xc] sm:$0xf]
        %v1506 = vld [vmem:[#allocation14 + $0x10] sm:$0xf]
        %v1507 = vld [vmem:[#allocation14 + $0x14] sm:$0xf]
        %v1508 = vld [vmem:[#allocation14 + $0x18] sm:$0xf]
        %v1509 = vld [vmem:[#allocation14 + $0x1c] sm:$0xf]
        %v1510 = vld [vmem:[#allocation14 + $0x20] sm:$0xf]
        %v1511 = vld [vmem:[#allocation14 + $0x24] sm:$0xf]
        %v1512 = vld [vmem:[#allocation14 + $0x28] sm:$0xf]
        %v1513 = vld [vmem:[#allocation14 + $0x2c] sm:$0xf]
        %v1514 = vld [vmem:[#allocation14 + $0x30] sm:$0xf]
        %v1515 = vld [vmem:[#allocation14 + $0x34] sm:$0xf]
        %v1516 = vld [vmem:[#allocation14 + $0x38] sm:$0xf]
        %v1517 = vld [vmem:[#allocation14 + $0x3c] sm:$0xf]
        %v1518 = vld [vmem:[%s14] sm:$0x1]
        %v1520 = vlaneseq
        %v1521 = vshrl.u32 %v1520, 7
        %v1522 = vsub.s32 0, %v1521
        %v1523 = vrot.slane %v1518, %v1522
        %v1541 = vunpack.c.l.b16 %v1502
        %v1542 = vunpack.c.l.b16 %v1503
        %v1543 = vunpack.c.l.b16 %v1504
        %v1544 = vunpack.c.l.b16 %v1505
        %v1545 = vunpack.c.l.b16 %v1506
        %v1546 = vunpack.c.l.b16 %v1507
        %v1547 = vunpack.c.l.b16 %v1508
        %v1548 = vunpack.c.l.b16 %v1509
        %v1549 = vunpack.c.l.b16 %v1510
        %v1550 = vunpack.c.l.b16 %v1511
        %v1551 = vunpack.c.l.b16 %v1512
        %v1552 = vunpack.c.l.b16 %v1513
        %v1553 = vunpack.c.l.b16 %v1514
        %v1554 = vunpack.c.l.b16 %v1515
        %v1555 = vunpack.c.l.b16 %v1516
        %v1556 = vunpack.c.l.b16 %v1517
        %v1557 = vpack.c.b16 %v1542, %v1541
        %v1558 = vpack.c.b16 %v1544, %v1543
        %v1559 = vpack.c.b16 %v1546, %v1545
        %v1560 = vpack.c.b16 %v1548, %v1547
        %v1561 = vpack.c.b16 %v1550, %v1549
        %v1562 = vpack.c.b16 %v1552, %v1551
        %v1563 = vpack.c.b16 %v1554, %v1553
        %v1564 = vpack.c.b16 %v1556, %v1555
        %1573 = vmatprep.subr.bf16.mxu0 0
        %1574 = vmatpush1.bf16.msra.mxu0 %v1557
        %1575 = vmatprep.subr.bf16.mxu0 0
        %1576 = vmatpush1.bf16.msra.mxu0 %v1558
        %1577 = vmatprep.subr.bf16.mxu0 0
        %1578 = vmatpush1.bf16.msra.mxu0 %v1559
        %1579 = vmatprep.subr.bf16.mxu0 0
        %1580 = vmatpush1.bf16.msra.mxu0 %v1560
        %1581 = vmatprep.subr.bf16.mxu0 0
        %1582 = vmatpush1.bf16.msra.mxu0 %v1561
        %1583 = vmatprep.subr.bf16.mxu0 0
        %1584 = vmatpush1.bf16.msra.mxu0 %v1562
        %1585 = vmatprep.subr.bf16.mxu0 0
        %1586 = vmatpush1.bf16.msra.mxu0 %v1563
        %1587 = vmatprep.subr.bf16.mxu0 0
        %1588 = vmatpush1.bf16.msra.mxu0 %v1564
        %1589 = vmatprep.subr.bf16.mxu0 0
        %1590 = vmatpush1.bf16.msra.mxu0 0
        %1591 = vmatprep.subr.bf16.mxu0 0
        %1592 = vmatpush1.bf16.msra.mxu0 0
        %1593 = vmatprep.subr.bf16.mxu0 0
        %1594 = vmatpush1.bf16.msra.mxu0 0
        %1595 = vmatprep.subr.bf16.mxu0 0
        %1596 = vmatpush1.bf16.msra.mxu0 0
        %1597 = vmatprep.subr.bf16.mxu0 0
        %1598 = vmatpush1.bf16.msra.mxu0 0
        %1599 = vmatprep.subr.bf16.mxu0 0
        %1600 = vmatpush1.bf16.msra.mxu0 0
        %1601 = vmatprep.subr.bf16.mxu0 0
        %1602 = vmatpush1.bf16.msra.mxu0 0
        %1603 = vmatprep.subr.bf16.mxu0 0
        %1604 = vmatpush1.bf16.msra.mxu0 0
        %1605 = vmatprep.mubr.bf16.mxu0 0
        %1606 = vmatmul.mubr.bf16.gmra.mrb[0].mxu0 %v1501
        %v1607 = vpop.f32.mrb[0].mxu0
        %v1608 = vadd.f32 %v1523, %v1607
        %v1609 = vpop.f32.mrb[0].mxu0
        %v1610 = vpop.f32.mrb[0].mxu0
        %v1611 = vpop.f32.mrb[0].mxu0
        %1612 = vdwg.mxu0
        %v1613 = vmax.f32 %v1608, 0.0
        %v1614 = vpack.c.bf16 %v1613, %v1613
        %v1615 = vld [vmem:[#allocation16] sm:$0xf]
        %v1616 = vld [vmem:[#allocation16 + $0x4] sm:$0xf]
        %v1617 = vld [vmem:[#allocation16 + $0x8] sm:$0xf]
        %v1618 = vld [vmem:[#allocation16 + $0xc] sm:$0xf]
        %v1619 = vld [vmem:[#allocation16 + $0x10] sm:$0xf]
        %v1620 = vld [vmem:[#allocation16 + $0x14] sm:$0xf]
        %v1621 = vld [vmem:[#allocation16 + $0x18] sm:$0xf]
        %v1622 = vld [vmem:[#allocation16 + $0x1c] sm:$0xf]
        %v1623 = vld [vmem:[#allocation16 + $0x20] sm:$0xf]
        %v1624 = vld [vmem:[#allocation16 + $0x24] sm:$0xf]
        %v1625 = vld [vmem:[#allocation16 + $0x28] sm:$0xf]
        %v1626 = vld [vmem:[#allocation16 + $0x2c] sm:$0xf]
        %v1627 = vld [vmem:[#allocation16 + $0x30] sm:$0xf]
        %v1628 = vld [vmem:[#allocation16 + $0x34] sm:$0xf]
        %v1629 = vld [vmem:[#allocation16 + $0x38] sm:$0xf]
        %v1630 = vld [vmem:[#allocation16 + $0x3c] sm:$0xf]
        %v1631 = vld [vmem:[%s16] sm:$0x1]
        %v1633 = vlaneseq
        %v1634 = vshrl.u32 %v1633, 7
        %v1635 = vsub.s32 0, %v1634
        %v1636 = vrot.slane %v1631, %v1635
        %v1654 = vunpack.c.l.b16 %v1615
        %v1655 = vunpack.c.l.b16 %v1616
        %v1656 = vunpack.c.l.b16 %v1617
        %v1657 = vunpack.c.l.b16 %v1618
        %v1658 = vunpack.c.l.b16 %v1619
        %v1659 = vunpack.c.l.b16 %v1620
        %v1660 = vunpack.c.l.b16 %v1621
        %v1661 = vunpack.c.l.b16 %v1622
        %v1662 = vunpack.c.l.b16 %v1623
        %v1663 = vunpack.c.l.b16 %v1624
        %v1664 = vunpack.c.l.b16 %v1625
        %v1665 = vunpack.c.l.b16 %v1626
        %v1666 = vunpack.c.l.b16 %v1627
        %v1667 = vunpack.c.l.b16 %v1628
        %v1668 = vunpack.c.l.b16 %v1629
        %v1669 = vunpack.c.l.b16 %v1630
        %v1670 = vpack.c.b16 %v1655, %v1654
        %v1671 = vpack.c.b16 %v1657, %v1656
        %v1672 = vpack.c.b16 %v1659, %v1658
        %v1673 = vpack.c.b16 %v1661, %v1660
        %v1674 = vpack.c.b16 %v1663, %v1662
        %v1675 = vpack.c.b16 %v1665, %v1664
        %v1676 = vpack.c.b16 %v1667, %v1666
        %v1677 = vpack.c.b16 %v1669, %v1668
        %1686 = vmatprep.subr.bf16.mxu0 0
        %1687 = vmatpush1.bf16.msra.mxu0 %v1670
        %1688 = vmatprep.subr.bf16.mxu0 0
        %1689 = vmatpush1.bf16.msra.mxu0 %v1671
        %1690 = vmatprep.subr.bf16.mxu0 0
        %1691 = vmatpush1.bf16.msra.mxu0 %v1672
        %1692 = vmatprep.subr.bf16.mxu0 0
        %1693 = vmatpush1.bf16.msra.mxu0 %v1673
        %1694 = vmatprep.subr.bf16.mxu0 0
        %1695 = vmatpush1.bf16.msra.mxu0 %v1674
        %1696 = vmatprep.subr.bf16.mxu0 0
        %1697 = vmatpush1.bf16.msra.mxu0 %v1675
        %1698 = vmatprep.subr.bf16.mxu0 0
        %1699 = vmatpush1.bf16.msra.mxu0 %v1676
        %1700 = vmatprep.subr.bf16.mxu0 0
        %1701 = vmatpush1.bf16.msra.mxu0 %v1677
        %1702 = vmatprep.subr.bf16.mxu0 0
        %1703 = vmatpush1.bf16.msra.mxu0 0
        %1704 = vmatprep.subr.bf16.mxu0 0
        %1705 = vmatpush1.bf16.msra.mxu0 0
        %1706 = vmatprep.subr.bf16.mxu0 0
        %1707 = vmatpush1.bf16.msra.mxu0 0
        %1708 = vmatprep.subr.bf16.mxu0 0
        %1709 = vmatpush1.bf16.msra.mxu0 0
        %1710 = vmatprep.subr.bf16.mxu0 0
        %1711 = vmatpush1.bf16.msra.mxu0 0
        %1712 = vmatprep.subr.bf16.mxu0 0
        %1713 = vmatpush1.bf16.msra.mxu0 0
        %1714 = vmatprep.subr.bf16.mxu0 0
        %1715 = vmatpush1.bf16.msra.mxu0 0
        %1716 = vmatprep.subr.bf16.mxu0 0
        %1717 = vmatpush1.bf16.msra.mxu0 0
        %1718 = vmatprep.mubr.bf16.mxu0 0
        %1719 = vmatmul.mubr.bf16.gmra.mrb[0].mxu0 %v1614
        %v1720 = vpop.f32.mrb[0].mxu0
        %v1721 = vadd.f32 %v1636, %v1720
        %v1722 = vpop.f32.mrb[0].mxu0
        %v1723 = vpop.f32.mrb[0].mxu0
        %v1724 = vpop.f32.mrb[0].mxu0
        %1725 = vdwg.mxu0
        %1726 = vst [vmem:[%s794] sm:$0xff] %v1721
        %1727 = vst [vmem:[%s801] sm:$0xff] %v936
        %1728 = vst [vmem:[%s808] sm:$0xff] %v1049
        %1729 = vst [vmem:[%s815] sm:$0xff] %v1162
        %1730 = vst [vmem:[%s822] sm:$0xff] %v1270
        %s1731 = sand.u32 %s419, 1
        %s1732 = scalar_lea.sflag [#allocation4], %s1731
        %s1733 = sand.u32 %s419, 1
        %s1734 = smul.addr %s1733, 8
        %s1735 = scalar_lea.vmem [#allocation17], %s1734
        %s1736 = sand.u32 %s49, 1
        %s1737 = scalar_lea.sflag [#allocation19], %s1736
        %s1738 = sand.u32 %s445, 1
        %s1739 = smul.addr %s1738, 8
        %s1740 = scalar_lea.vmem [#allocation18], %s1739
        %s1741 = sand.u32 %s49, 1
        %s1742 = scalar_lea.sflag [#allocation19], %s1741
        %s1743 = sand.u32 %s471, 1
        %s1744 = smul.addr %s1743, 8
        %s1745 = scalar_lea.vmem [#allocation20], %s1744
        %s1746 = sand.u32 %s49, 1
        %s1747 = scalar_lea.sflag [#allocation22], %s1746
        %s1748 = sand.u32 %s497, 1
        %s1749 = smul.addr %s1748, 8
        %s1750 = scalar_lea.vmem [#allocation21], %s1749
        %s1751 = sand.u32 %s49, 1
        %s1752 = scalar_lea.sflag [#allocation22], %s1751
        %s1753 = sand.u32 %s523, 1
        %s1754 = smul.addr %s1753, 8
        %s1755 = scalar_lea.vmem [#allocation23], %s1754
        // Predicated region
        $region125: #{tpu_custom_call.1} parent=87 // pred_check
          %p1756 = pneg %p429
        $region126: #{tpu_custom_call.1} parent=87 // pred_check_branch
          %1758 = sbr.rel (%p1756) target = $region128
        $region127: #{tpu_custom_call.1} parent=87 // pred_region
          %s1760 = ssub.s32 128, 128
          %1761 = vsyncadd %s1732, %s1760
          %s1762 = smul.addr %s49, 128
          %s1763 = scalar_lea.hbm %s17, %s1762
          %s1765 = sshll.u32 %s1735, 4
          %s1766 = int_to_ptr.vmem [resolvable:$true] %s1765
          %1768 = dma.vmem_to_hbm [thread:$0]  %s1766, 128, %s1763, %s1732
        $region128: #{tpu_custom_call.1} parent=87 // pred_fallthru
          _
        // Predicated region
        $region129: #{tpu_custom_call.1} parent=87 // pred_check
          %p1769 = pneg %p455
        $region130: #{tpu_custom_call.1} parent=87 // pred_check_branch
          %1771 = sbr.rel (%p1769) target = $region132
        $region131: #{tpu_custom_call.1} parent=87 // pred_region
          %s1773 = ssub.s32 128, 128
          %1774 = vsyncadd %s1737, %s1773
          %s1775 = smul.addr %s49, 128
          %s1776 = scalar_lea.hbm %s18, %s1775
          %s1778 = sshll.u32 %s1740, 4
          %s1779 = int_to_ptr.vmem [resolvable:$true] %s1778
          %1781 = dma.vmem_to_hbm [thread:$0]  %s1779, 128, %s1776, %s1737
        $region132: #{tpu_custom_call.1} parent=87 // pred_fallthru
          _
        // Predicated region
        $region133: #{tpu_custom_call.1} parent=87 // pred_check
          %p1782 = pneg %p481
        $region134: #{tpu_custom_call.1} parent=87 // pred_check_branch
          %1784 = sbr.rel (%p1782) target = $region136
        $region135: #{tpu_custom_call.1} parent=87 // pred_region
          %s1786 = ssub.s32 128, 128
          %1787 = vsyncadd %s1742, %s1786
          %s1788 = smul.addr %s49, 128
          %s1789 = scalar_lea.hbm %s19, %s1788
          %s1791 = sshll.u32 %s1745, 4
          %s1792 = int_to_ptr.vmem [resolvable:$true] %s1791
          %1794 = dma.vmem_to_hbm [thread:$0]  %s1792, 128, %s1789, %s1742
        $region136: #{tpu_custom_call.1} parent=87 // pred_fallthru
          _
        // Predicated region
        $region137: #{tpu_custom_call.1} parent=87 // pred_check
          %p1795 = pneg %p507
        $region138: #{tpu_custom_call.1} parent=87 // pred_check_branch
          %1797 = sbr.rel (%p1795) target = $region140
        $region139: #{tpu_custom_call.1} parent=87 // pred_region
          %s1799 = ssub.s32 128, 128
          %1800 = vsyncadd %s1747, %s1799
          %s1801 = smul.addr %s49, 128
          %s1802 = scalar_lea.hbm %s20, %s1801
          %s1804 = sshll.u32 %s1750, 4
          %s1805 = int_to_ptr.vmem [resolvable:$true] %s1804
          %1807 = dma.vmem_to_hbm [thread:$0]  %s1805, 128, %s1802, %s1747
        $region140: #{tpu_custom_call.1} parent=87 // pred_fallthru
          _
        // Predicated region
        $region141: #{tpu_custom_call.1} parent=87 // pred_check
          %p1808 = pneg %p533
        $region142: #{tpu_custom_call.1} parent=87 // pred_check_branch
          %1810 = sbr.rel (%p1808) target = $region144
        $region143: #{tpu_custom_call.1} parent=87 // pred_region
          %s1812 = ssub.s32 128, 128
          %1813 = vsyncadd %s1752, %s1812
          %s1814 = smul.addr %s49, 128
          %s1815 = scalar_lea.hbm %s21, %s1814
          %s1817 = sshll.u32 %s1755, 4
          %s1818 = int_to_ptr.vmem [resolvable:$true] %s1817
          %1820 = dma.vmem_to_hbm [thread:$0]  %s1818, 128, %s1815, %s1752
        $region144: #{tpu_custom_call.1} parent=87 // pred_fallthru
          _
      $region88: #{tpu_custom_call.1} parent=5 // pred_fallthru
        _
      %p1821 = scmp.le.s32.totalorder 2, %s44
      // Predicated region
      $region145: #{tpu_custom_call.1} parent=5 // pred_check
        %p1822 = pneg %p1821
      $region146: #{tpu_custom_call.1} parent=5 // pred_check_branch
        %1824 = sbr.rel (%p1822) target = $region148
      $region147: #{tpu_custom_call.1} parent=5 // pred_region
        %s1825 = ssub.s32 %s44, 2
        // Predicated region
        $region149: #{tpu_custom_call.1} parent=147 // pred_check
          %p1826 = pneg %p435
        $region150: #{tpu_custom_call.1} parent=147 // pred_check_branch
          %1828 = sbr.rel (%p1826) target = $region152
        $region151: #{tpu_custom_call.1} parent=147 // pred_region
          %s1829 = sand.u32 %s420, 1
          %s1830 = scalar_lea.sflag [#allocation4], %s1829
          %s1831 = sand.u32 %s420, 1
          %s1832 = smul.addr %s1831, 8
          %s1833 = scalar_lea.vmem [#allocation17], %s1832
          %1834 = dma.done %s1830, 128
        $region152: #{tpu_custom_call.1} parent=147 // pred_fallthru
          _
        // Predicated region
        $region153: #{tpu_custom_call.1} parent=147 // pred_check
          %p1835 = pneg %p461
        $region154: #{tpu_custom_call.1} parent=147 // pred_check_branch
          %1837 = sbr.rel (%p1835) target = $region156
        $region155: #{tpu_custom_call.1} parent=147 // pred_region
          %s1838 = sand.u32 %s50, 1
          %s1839 = scalar_lea.sflag [#allocation19], %s1838
          %s1840 = sand.u32 %s446, 1
          %s1841 = smul.addr %s1840, 8
          %s1842 = scalar_lea.vmem [#allocation18], %s1841
          %1843 = dma.done %s1839, 128
        $region156: #{tpu_custom_call.1} parent=147 // pred_fallthru
          _
        // Predicated region
        $region157: #{tpu_custom_call.1} parent=147 // pred_check
          %p1844 = pneg %p487
        $region158: #{tpu_custom_call.1} parent=147 // pred_check_branch
          %1846 = sbr.rel (%p1844) target = $region160
        $region159: #{tpu_custom_call.1} parent=147 // pred_region
          %s1847 = sand.u32 %s50, 1
          %s1848 = scalar_lea.sflag [#allocation19], %s1847
          %s1849 = sand.u32 %s472, 1
          %s1850 = smul.addr %s1849, 8
          %s1851 = scalar_lea.vmem [#allocation20], %s1850
          %1852 = dma.done %s1848, 128
        $region160: #{tpu_custom_call.1} parent=147 // pred_fallthru
          _
        // Predicated region
        $region161: #{tpu_custom_call.1} parent=147 // pred_check
          %p1853 = pneg %p513
        $region162: #{tpu_custom_call.1} parent=147 // pred_check_branch
          %1855 = sbr.rel (%p1853) target = $region164
        $region163: #{tpu_custom_call.1} parent=147 // pred_region
          %s1856 = sand.u32 %s50, 1
          %s1857 = scalar_lea.sflag [#allocation22], %s1856
          %s1858 = sand.u32 %s498, 1
          %s1859 = smul.addr %s1858, 8
          %s1860 = scalar_lea.vmem [#allocation21], %s1859
          %1861 = dma.done %s1857, 128
        $region164: #{tpu_custom_call.1} parent=147 // pred_fallthru
          _
        // Predicated region
        $region165: #{tpu_custom_call.1} parent=147 // pred_check
          %p1862 = pneg %p539
        $region166: #{tpu_custom_call.1} parent=147 // pred_check_branch
          %1864 = sbr.rel (%p1862) target = $region168
        $region167: #{tpu_custom_call.1} parent=147 // pred_region
          %s1865 = sand.u32 %s50, 1
          %s1866 = scalar_lea.sflag [#allocation22], %s1865
          %s1867 = sand.u32 %s524, 1
          %s1868 = smul.addr %s1867, 8
          %s1869 = scalar_lea.vmem [#allocation23], %s1868
          %1870 = dma.done %s1866, 128
        $region168: #{tpu_custom_call.1} parent=147 // pred_fallthru
          _
      $region148: #{tpu_custom_call.1} parent=5 // pred_fallthru
        _
    $region6: #{tpu_custom_call.1} parent=1 // loop_footer
      %s48 = sadd.s32 1, %s44
    $region7: #{tpu_custom_call.1} parent=1 // loop_footer_branch
      %43 = sbr.rel target = $region3
    $region8: #{tpu_custom_call.1} parent=1 // loop_exit
      _
    %1871 = vsyncpa [#allocation3], 1
    %s1872 = scalar_lea.sflag [#allocation3], 1
    %1873 = vsyncpa %s1872, 1
    %1874 = vsyncpa [#allocation6], 1
    %1875 = vsyncpa [#allocation9], 1
    %1876 = vsyncpa [#allocation12], 1
    %1877 = vsyncpa [#allocation15], 1
    %1878 = vsyncpa [#allocation4], 1
    %s1879 = scalar_lea.sflag [#allocation4], 1
    %1880 = vsyncpa %s1879, 1
    %1881 = vsyncpa [#allocation19], 1
    %s1882 = scalar_lea.sflag [#allocation19], 1
    %1883 = vsyncpa %s1882, 1
    %1884 = vsyncpa [#allocation22], 1
    %s1885 = scalar_lea.sflag [#allocation22], 1
    %1886 = vsyncpa %s1885, 1

</llo_original>
